<compile_context>
chip_gen: v6e
topology: v6e:2x2x1
jax: 0.10.0
libtpu: 0.0.40
codegen_flags: <defaults>
</compile_context>

<pallas_src>
import functools

import jax
import jax.numpy as jnp
from jax.experimental import pallas as pl
from jax.experimental.pallas import tpu as pltpu

EXPANSION = 4
_VMEM_LIMIT = 32 * 1024 * 1024  # explicit scoped-VMEM budget, safe on v5e/v6e/v7x


def _round_up(x, m):
    return (x + m - 1) // m * m


# ----------------------------------------------------------------------------
# Kernel A: out = relu(x @ w + b)    (BN scale pre-folded into w; b = BN shift)
#   x: (M, K) bf16   w: (K, C) bf16   b: (1, C) f32   out: (M, C) bf16
# ----------------------------------------------------------------------------
def _matmul_bias_relu_kernel(x_ref, w_ref, b_ref, o_ref):
    y = jnp.dot(x_ref[...], w_ref[...], preferred_element_type=jnp.float32)
    o_ref[...] = jnp.maximum(y + b_ref[...], 0.0).astype(o_ref.dtype)


def matmul_bias_relu(x, w, b, *, out_dtype=jnp.bfloat16, tm=512):
    M, K = x.shape
    Kw, C = w.shape
    assert K == Kw
    tm = min(tm, _round_up(M, 8))          # large row tiles, no host-side padding
    grid = (pl.cdiv(M, tm),)               # partial last block handled by Pallas
    return pl.pallas_call(
        _matmul_bias_relu_kernel,
        out_shape=jax.ShapeDtypeStruct((M, C), out_dtype),
        grid=grid,
        in_specs=[
            pl.BlockSpec((tm, K), lambda i: (i, 0)),     # activation row tile
            pl.BlockSpec((K, C), lambda i: (0, 0)),      # folded conv1 weight
            pl.BlockSpec((1, C), lambda i: (0, 0)),      # BN1 shift
        ],
        out_specs=pl.BlockSpec((tm, C), lambda i: (i, 0)),
        compiler_params=pltpu.CompilerParams(
            dimension_semantics=("parallel",),
            vmem_limit_bytes=_VMEM_LIMIT,
        ),
    )(x, w, b)


# ----------------------------------------------------------------------------
# Kernel B: per-image fused conv2(3x3) + BN2 + ReLU + conv3(1x1) + BN3
#           + (downsample | identity) residual + add + ReLU.
# ----------------------------------------------------------------------------
def _make_tail_kernel(Ho, Wo, stride, has_downsample):
    span_h = (Ho - 1) * stride + 1
    span_w = (Wo - 1) * stride + 1

    def kernel(hp_ref, w2_ref, b2_ref, w3_ref, b3_ref, xr_ref, *rest):
        if has_downsample:
            wd_ref, bd_ref, o_ref = rest
        else:
            (o_ref,) = rest
        cmid = w2_ref.shape[-1]

        # conv2 (3x3, input already zero-padded) as 9 accumulated tap matmuls
        # over shifted windows of the VMEM-resident activation (no im2col).
        acc = jnp.zeros((Ho * Wo, cmid), jnp.float32)
        for t in range(9):
            dy, dx = divmod(t, 3)
            win = hp_ref[pl.ds(dy, span_h), pl.ds(dx, span_w), :]
            if stride != 1:
                # TODO(synk): strided window slice (stride>1) is an untested
                # lowering path; the demo exercises stride == 1.
                win = win[::stride, ::stride, :]
            acc = acc + jnp.dot(win.reshape(Ho * Wo, cmid), w2_ref[t],
                                preferred_element_type=jnp.float32)
        h2 = jnp.maximum(acc + b2_ref[...], 0.0).astype(jnp.bfloat16)

        # conv3 (1x1) with folded BN3 scale, shift as bias.
        y = jnp.dot(h2, w3_ref[...], preferred_element_type=jnp.float32)
        y = y + b3_ref[...]

        # Residual branch: fused 1x1 downsample conv + BN, or exact identity.
        if has_downsample:
            r = jnp.dot(xr_ref[...], wd_ref[...],
                        preferred_element_type=jnp.float32) + bd_ref[...]
        else:
            r = xr_ref[...].astype(jnp.float32)

        o_ref[...] = jnp.maximum(y + r, 0.0).astype(o_ref.dtype)

    return kernel


def bottleneck_tail(hp, w2f, b2, w3f, b3, xr, wdf=None, bd=None, *,
                    Ho, Wo, stride):
    N, Hp, Wp, Cmid = hp.shape
    Cout = w3f.shape[-1]
    Cres = xr.shape[-1]
    has_ds = wdf is not None

    in_specs = [
        pl.BlockSpec((None, Hp, Wp, Cmid), lambda n: (n, 0, 0, 0)),   # padded h1
        pl.BlockSpec((9, Cmid, Cmid), lambda n: (0, 0, 0)),           # conv2 taps
        pl.BlockSpec((1, Cmid), lambda n: (0, 0)),                    # BN2 shift
        pl.BlockSpec((Cmid, Cout), lambda n: (0, 0)),                 # conv3 weight
        pl.BlockSpec((1, Cout), lambda n: (0, 0)),                    # BN3 shift
        pl.BlockSpec((None, Ho * Wo, Cres), lambda n: (n, 0, 0)),     # residual in
    ]
    args = [hp, w2f, b2, w3f, b3, xr]
    if has_ds:
        in_specs += [pl.BlockSpec((Cres, Cout), lambda n: (0, 0)),    # downsample w
                     pl.BlockSpec((1, Cout), lambda n: (0, 0))]       # BN_d shift
        args += [wdf, bd]

    return pl.pallas_call(
        _make_tail_kernel(Ho, Wo, stride, has_ds),
        out_shape=jax.ShapeDtypeStruct((N, Ho * Wo, Cout), jnp.float32),
        grid=(N,),
        in_specs=in_specs,
        out_specs=pl.BlockSpec((None, Ho * Wo, Cout), lambda n: (n, 0, 0)),
        compiler_params=pltpu.CompilerParams(
            dimension_semantics=("parallel",),
            vmem_limit_bytes=_VMEM_LIMIT,
        ),
    )(*args)


# ----------------------------------------------------------------------------
# Helpers / forward wrapper (NCHW PyTorch-compatible interface)
# ----------------------------------------------------------------------------
def bn_fold(gamma, beta, mean, var, eps=1e-5):
    scale = gamma / jnp.sqrt(var + eps)
    shift = beta - mean * scale
    return scale, shift


def bottleneck_forward(x_nchw, params, stride=1):
    N, Cin, H, W = x_nchw.shape
    w1, w2, w3 = params["w1"], params["w2"], params["w3"]
    Cmid, Cout = w1.shape[-1], w3.shape[-1]
    Ho = (H + 2 - 3) // stride + 1
    Wo = (W + 2 - 3) // stride + 1

    # Fold inference-BN scale into the conv weights; keep only the shift as a
    # bias.  Cast MXU operands to bf16 (f32 accumulation inside the kernels).
    s1, b1 = bn_fold(*params["bn1"])
    s2, b2 = bn_fold(*params["bn2"])
    s3, b3 = bn_fold(*params["bn3"])
    w1f = (w1.reshape(Cin, Cmid) * s1[None, :]).astype(jnp.bfloat16)
    w2f = (w2 * s2[None, None, None, :]).reshape(9, Cmid, Cmid).astype(jnp.bfloat16)
    w3f = (w3.reshape(Cmid, Cout) * s3[None, :]).astype(jnp.bfloat16)
    b1 = b1.reshape(1, Cmid).astype(jnp.float32)
    b2 = b2.reshape(1, Cmid).astype(jnp.float32)
    b3 = b3.reshape(1, Cout).astype(jnp.float32)

    # NCHW -> NHWC once at the interface boundary (an NHWC pipeline drops this).
    x = jnp.transpose(x_nchw, (0, 2, 3, 1))

    # conv1 (1x1) + BN1 + ReLU: row-tiled fused matmul kernel.
    h1 = matmul_bias_relu(x.reshape(N * H * W, Cin).astype(jnp.bfloat16), w1f, b1)

    # Small bf16 spatial zero-pad (padding=1) for the 3x3 taps of kernel B.
    hp = jnp.pad(h1.reshape(N, H, W, Cmid), ((0, 0), (1, 1), (1, 1), (0, 0)))

    # Residual-branch input (strided rows of x).
    xs = x[:, ::stride, ::stride, :].reshape(N, Ho * Wo, Cin)
    if params.get("wd") is not None:
        sd, bd = bn_fold(*params["bnd"])
        wdf = (params["wd"].reshape(Cin, Cout) * sd[None, :]).astype(jnp.bfloat16)
        bd = bd.reshape(1, Cout).astype(jnp.float32)
        xr = xs.astype(jnp.bfloat16)
    else:
        assert stride == 1 and Cin == Cout, \
            "identity residual requires stride=1 and Cin == Cout*expansion"
        wdf, bd = None, None
        xr = xs  # keep f32 -> exact identity add

    # conv2(3x3)+BN2+ReLU + conv3(1x1)+BN3 + downsample + add + ReLU, one kernel.
    out = bottleneck_tail(hp, w2f, b2, w3f, b3, xr, wdf, bd,
                          Ho=Ho, Wo=Wo, stride=stride)      # (N, Ho*Wo, Cout)
    out = out.reshape(N, Ho, Wo, Cout)
    return jnp.transpose(out, (0, 3, 1, 2))                 # NCHW


# ----------------------------------------------------------------------------
# Pure-JAX f32 reference (correctness check)
# ----------------------------------------------------------------------------
def ref_forward(x_nchw, params, stride=1):
    x = jnp.transpose(x_nchw, (0, 2, 3, 1))

    def conv(h, w, s, pad):
        return jax.lax.conv_general_dilated(
            h, w, (s, s), pad, dimension_numbers=("NHWC", "HWIO", "NHWC"))

    def bn(h, bnp):
        sc, sh = bn_fold(*bnp)
        return h * sc + sh

    h = jax.nn.relu(bn(conv(x, params["w1"], 1, "VALID"), params["bn1"]))
    h = jax.nn.relu(bn(conv(h, params["w2"], stride, [(1, 1), (1, 1)]),
                       params["bn2"]))
    h = bn(conv(h, params["w3"], 1, "VALID"), params["bn3"])
    if params.get("wd") is not None:
        r = bn(conv(x, params["wd"], stride, "VALID"), params["bnd"])
    else:
        r = x[:, ::stride, ::stride, :]
    return jnp.transpose(jax.nn.relu(h + r), (0, 3, 1, 2))


# ----------------------------------------------------------------------------
def make_params(key, inplanes, outplanes, stride=1):
    cmid, cout = outplanes, outplanes * EXPANSION
    ks = jax.random.split(key, 8)

    def bn_init(k, c):
        k1, k2, k3, k4 = jax.random.split(k, 4)
        return (jax.random.uniform(k1, (c,), jnp.float32, 0.5, 1.5),
                0.1 * jax.random.normal(k2, (c,), jnp.float32),
                0.1 * jax.random.normal(k3, (c,), jnp.float32),
                jax.random.uniform(k4, (c,), jnp.float32, 0.5, 1.5))

    p = {
        "w1": 0.2 * jax.random.normal(ks[0], (1, 1, inplanes, cmid), jnp.float32),
        "w2": 0.2 * jax.random.normal(ks[1], (3, 3, cmid, cmid), jnp.float32),
        "w3": 0.2 * jax.random.normal(ks[2], (1, 1, cmid, cout), jnp.float32),
        "bn1": bn_init(ks[3], cmid),
        "bn2": bn_init(ks[4], cmid),
        "bn3": bn_init(ks[5], cout),
        "wd": None,
    }
    if stride != 1 or inplanes != cout:
        p["wd"] = 0.2 * jax.random.normal(ks[6], (1, 1, inplanes, cout), jnp.float32)
        p["bnd"] = bn_init(ks[7], cout)
    return p


if __name__ == "__main__":
    key = jax.random.PRNGKey(0)
    kx, kp = jax.random.split(key)

    N, inplanes, H, W = 2, 4, 16, 16
    outplanes, stride = 4, 1

    x = jax.random.normal(kx, (N, inplanes, H, W), jnp.float32)
    params = make_params(kp, inplanes, outplanes, stride)

    fwd = jax.jit(functools.partial(bottleneck_forward, stride=stride))
    out = jax.block_until_ready(fwd(x, params))

    ref = jax.block_until_ready(ref_forward(x, params, stride=stride))
    assert out.shape == (N, outplanes * EXPANSION, H, W), out.shape
    max_err = float(jnp.max(jnp.abs(out - ref)))
    # bf16 MXU operands with f32 accumulation -> loosened tolerance vs f32 ref.
    assert jnp.allclose(out, ref, atol=5e-2, rtol=5e-2), max_err

    print("KERNEL_OK")
</pallas_src>

<mosaic_0001>
module attributes {stable_mosaic.version = 11 : i64} {
  func.func @_matmul_bias_relu_kernel(%arg0: i32, %arg1: memref<512x4xbf16, #tpu.memory_space<vmem>>, %arg2: memref<4x4xbf16, #tpu.memory_space<vmem>>, %arg3: memref<1x4xf32, #tpu.memory_space<vmem>>, %arg4: memref<512x4xbf16, #tpu.memory_space<vmem>>) attributes {dimension_semantics = [#tpu.dimension_semantics<parallel>], iteration_bounds = array<i64: 1>, scalar_prefetch = 0 : i64, scratch_operands = 0 : i64, tpu.core_type = #tpu.core_type<tc>, window_params = [{transform_indices = @transform_0, window_bounds = array<i64: 512, 4>}, {pipeline_mode = #tpu.pipeline_mode<synchronous>, transform_indices = @transform_1, window_bounds = array<i64: 4, 4>}, {pipeline_mode = #tpu.pipeline_mode<synchronous>, transform_indices = @transform_2, window_bounds = array<i64: 1, 4>}, {transform_indices = @transform_3, window_bounds = array<i64: 512, 4>}]} {
    %c0 = arith.constant 0 : index
    %c0_0 = arith.constant 0 : index
    %0 = vector.load %arg1[%c0, %c0_0] : memref<512x4xbf16, #tpu.memory_space<vmem>>, vector<512x4xbf16>
    %c0_1 = arith.constant 0 : index
    %c0_2 = arith.constant 0 : index
    %1 = vector.load %arg2[%c0_1, %c0_2] : memref<4x4xbf16, #tpu.memory_space<vmem>>, vector<4x4xbf16>
    %cst = arith.constant dense<0.000000e+00> : vector<512x4xf32>
    %2 = tpu.matmul %0, %1, %cst {dimension_numbers = #tpu.dot_dimension_numbers<[1], [0], [0], [1], [0, 0, 1, 1], [], []>} : vector<512x4xbf16>, vector<4x4xbf16>, vector<512x4xf32> -> vector<512x4xf32>
    %c0_3 = arith.constant 0 : index
    %c0_4 = arith.constant 0 : index
    %3 = vector.load %arg3[%c0_3, %c0_4] : memref<1x4xf32, #tpu.memory_space<vmem>>, vector<1x4xf32>
    %4 = vector.broadcast %3 : vector<1x4xf32> to vector<512x4xf32>
    %5 = arith.addf %2, %4 : vector<512x4xf32>
    %cst_5 = arith.constant 0.000000e+00 : f32
    %6 = vector.broadcast %cst_5 : f32 to vector<512x4xf32>
    %7 = arith.maximumf %5, %6 : vector<512x4xf32>
    %8 = arith.truncf %7 : vector<512x4xf32> to vector<512x4xbf16>
    %c0_6 = arith.constant 0 : index
    %c0_7 = arith.constant 0 : index
    %9 = vector.load %arg4[%c0_6, %c0_7] : memref<512x4xbf16, #tpu.memory_space<vmem>>, vector<512x4xbf16>
    tpu.vector_store %arg4[%c0_6, %c0_7], %8 {strides = array<i32>} : memref<512x4xbf16, #tpu.memory_space<vmem>>, vector<512x4xbf16>,
    return
  }
  func.func @transform_0(%arg0: i32) -> (i32, i32) {
    %c0_i32 = arith.constant 0 : i32
    %c0_i32_0 = arith.constant 0 : i32
    return %arg0, %c0_i32 : i32, i32
  }
  func.func @transform_1(%arg0: i32) -> (i32, i32) {
    %c0_i32 = arith.constant 0 : i32
    %c0_i32_0 = arith.constant 0 : i32
    %c0_i32_1 = arith.constant 0 : i32
    return %c0_i32, %c0_i32_0 : i32, i32
  }
  func.func @transform_2(%arg0: i32) -> (i32, i32) {
    %c0_i32 = arith.constant 0 : i32
    %c0_i32_0 = arith.constant 0 : i32
    %c0_i32_1 = arith.constant 0 : i32
    return %c0_i32, %c0_i32_0 : i32, i32
  }
  func.func @transform_3(%arg0: i32) -> (i32, i32) {
    %c0_i32 = arith.constant 0 : i32
    %c0_i32_0 = arith.constant 0 : i32
    return %arg0, %c0_i32 : i32, i32
  }
}

module attributes {stable_mosaic.version = 11 : i64} {
  func.func @kernel(%arg0: i32, %arg1: memref<1x18x18x4xbf16, #tpu.memory_space<vmem>>, %arg2: memref<9x4x4xbf16, #tpu.memory_space<vmem>>, %arg3: memref<1x4xf32, #tpu.memory_space<vmem>>, %arg4: memref<4x16xbf16, #tpu.memory_space<vmem>>, %arg5: memref<1x16xf32, #tpu.memory_space<vmem>>, %arg6: memref<1x256x4xbf16, #tpu.memory_space<vmem>>, %arg7: memref<4x16xbf16, #tpu.memory_space<vmem>>, %arg8: memref<1x16xf32, #tpu.memory_space<vmem>>, %arg9: memref<1x256x16xf32, #tpu.memory_space<vmem>>) attributes {dimension_semantics = [#tpu.dimension_semantics<parallel>], iteration_bounds = array<i64: 2>, scalar_prefetch = 0 : i64, scratch_operands = 0 : i64, tpu.core_type = #tpu.core_type<tc>, window_params = [{transform_indices = @transform_0, window_bounds = array<i64: 1, 18, 18, 4>}, {pipeline_mode = #tpu.pipeline_mode<synchronous>, transform_indices = @transform_1, window_bounds = array<i64: 9, 4, 4>}, {pipeline_mode = #tpu.pipeline_mode<synchronous>, transform_indices = @transform_2, window_bounds = array<i64: 1, 4>}, {pipeline_mode = #tpu.pipeline_mode<synchronous>, transform_indices = @transform_3, window_bounds = array<i64: 4, 16>}, {pipeline_mode = #tpu.pipeline_mode<synchronous>, transform_indices = @transform_4, window_bounds = array<i64: 1, 16>}, {transform_indices = @transform_5, window_bounds = array<i64: 1, 256, 4>}, {pipeline_mode = #tpu.pipeline_mode<synchronous>, transform_indices = @transform_6, window_bounds = array<i64: 4, 16>}, {pipeline_mode = #tpu.pipeline_mode<synchronous>, transform_indices = @transform_7, window_bounds = array<i64: 1, 16>}, {transform_indices = @transform_8, window_bounds = array<i64: 1, 256, 16>}]} {
    %cst = arith.constant 0.000000e+00 : f32
    %0 = vector.broadcast %cst : f32 to vector<256x4xf32>
    %c0 = arith.constant 0 : index
    %c0_0 = arith.constant 0 : index
    %c0_1 = arith.constant 0 : index
    %c0_2 = arith.constant 0 : index
    %1 = vector.load %arg1[%c0, %c0_0, %c0_1, %c0_2] : memref<1x18x18x4xbf16, #tpu.memory_space<vmem>>, vector<1x16x16x4xbf16>
    %2 = vector.shape_cast %1 : vector<1x16x16x4xbf16> to vector<16x16x4xbf16>
    %3 = vector.shape_cast %2 : vector<16x16x4xbf16> to vector<256x4xbf16>
    %c0_3 = arith.constant 0 : index
    %c0_4 = arith.constant 0 : index
    %c0_5 = arith.constant 0 : index
    %4 = vector.load %arg2[%c0_3, %c0_4, %c0_5] : memref<9x4x4xbf16, #tpu.memory_space<vmem>>, vector<1x4x4xbf16>
    %5 = vector.shape_cast %4 : vector<1x4x4xbf16> to vector<4x4xbf16>
    %cst_6 = arith.constant dense<0.000000e+00> : vector<256x4xf32>
    %6 = tpu.matmul %3, %5, %cst_6 {dimension_numbers = #tpu.dot_dimension_numbers<[1], [0], [0], [1], [0, 0, 1, 1], [], []>} : vector<256x4xbf16>, vector<4x4xbf16>, vector<256x4xf32> -> vector<256x4xf32>
    %7 = arith.addf %0, %6 : vector<256x4xf32>
    %c0_7 = arith.constant 0 : index
    %c0_8 = arith.constant 0 : index
    %c1 = arith.constant 1 : index
    %c0_9 = arith.constant 0 : index
    %8 = vector.load %arg1[%c0_7, %c0_8, %c1, %c0_9] : memref<1x18x18x4xbf16, #tpu.memory_space<vmem>>, vector<1x16x16x4xbf16>
    %9 = vector.shape_cast %8 : vector<1x16x16x4xbf16> to vector<16x16x4xbf16>
    %10 = vector.shape_cast %9 : vector<16x16x4xbf16> to vector<256x4xbf16>
    %c1_10 = arith.constant 1 : index
    %c0_11 = arith.constant 0 : index
    %c0_12 = arith.constant 0 : index
    %11 = vector.load %arg2[%c1_10, %c0_11, %c0_12] : memref<9x4x4xbf16, #tpu.memory_space<vmem>>, vector<1x4x4xbf16>
    %12 = vector.shape_cast %11 : vector<1x4x4xbf16> to vector<4x4xbf16>
    %cst_13 = arith.constant dense<0.000000e+00> : vector<256x4xf32>
    %13 = tpu.matmul %10, %12, %cst_13 {dimension_numbers = #tpu.dot_dimension_numbers<[1], [0], [0], [1], [0, 0, 1, 1], [], []>} : vector<256x4xbf16>, vector<4x4xbf16>, vector<256x4xf32> -> vector<256x4xf32>
    %14 = arith.addf %7, %13 : vector<256x4xf32>
    %c0_14 = arith.constant 0 : index
    %c0_15 = arith.constant 0 : index
    %c2 = arith.constant 2 : index
    %c0_16 = arith.constant 0 : index
    %15 = vector.load %arg1[%c0_14, %c0_15, %c2, %c0_16] : memref<1x18x18x4xbf16, #tpu.memory_space<vmem>>, vector<1x16x16x4xbf16>
    %16 = vector.shape_cast %15 : vector<1x16x16x4xbf16> to vector<16x16x4xbf16>
    %17 = vector.shape_cast %16 : vector<16x16x4xbf16> to vector<256x4xbf16>
    %c2_17 = arith.constant 2 : index
    %c0_18 = arith.constant 0 : index
    %c0_19 = arith.constant 0 : index
    %18 = vector.load %arg2[%c2_17, %c0_18, %c0_19] : memref<9x4x4xbf16, #tpu.memory_space<vmem>>, vector<1x4x4xbf16>
    %19 = vector.shape_cast %18 : vector<1x4x4xbf16> to vector<4x4xbf16>
    %cst_20 = arith.constant dense<0.000000e+00> : vector<256x4xf32>
    %20 = tpu.matmul %17, %19, %cst_20 {dimension_numbers = #tpu.dot_dimension_numbers<[1], [0], [0], [1], [0, 0, 1, 1], [], []>} : vector<256x4xbf16>, vector<4x4xbf16>, vector<256x4xf32> -> vector<256x4xf32>
    %21 = arith.addf %14, %20 : vector<256x4xf32>
    %c0_21 = arith.constant 0 : index
    %c1_22 = arith.constant 1 : index
    %c0_23 = arith.constant 0 : index
    %c0_24 = arith.constant 0 : index
    %22 = vector.load %arg1[%c0_21, %c1_22, %c0_23, %c0_24] : memref<1x18x18x4xbf16, #tpu.memory_space<vmem>>, vector<1x16x16x4xbf16>
    %23 = vector.shape_cast %22 : vector<1x16x16x4xbf16> to vector<16x16x4xbf16>
    %24 = vector.shape_cast %23 : vector<16x16x4xbf16> to vector<256x4xbf16>
    %c3 = arith.constant 3 : index
    %c0_25 = arith.constant 0 : index
    %c0_26 = arith.constant 0 : index
    %25 = vector.load %arg2[%c3, %c0_25, %c0_26] : memref<9x4x4xbf16, #tpu.memory_space<vmem>>, vector<1x4x4xbf16>
    %26 = vector.shape_cast %25 : vector<1x4x4xbf16> to vector<4x4xbf16>
    %cst_27 = arith.constant dense<0.000000e+00> : vector<256x4xf32>
    %27 = tpu.matmul %24, %26, %cst_27 {dimension_numbers = #tpu.dot_dimension_numbers<[1], [0], [0], [1], [0, 0, 1, 1], [], []>} : vector<256x4xbf16>, vector<4x4xbf16>, vector<256x4xf32> -> vector<256x4xf32>
    %28 = arith.addf %21, %27 : vector<256x4xf32>
    %c0_28 = arith.constant 0 : index
    %c1_29 = arith.constant 1 : index
    %c1_30 = arith.constant 1 : index
    %c0_31 = arith.constant 0 : index
    %29 = vector.load %arg1[%c0_28, %c1_29, %c1_30, %c0_31] : memref<1x18x18x4xbf16, #tpu.memory_space<vmem>>, vector<1x16x16x4xbf16>
    %30 = vector.shape_cast %29 : vector<1x16x16x4xbf16> to vector<16x16x4xbf16>
    %31 = vector.shape_cast %30 : vector<16x16x4xbf16> to vector<256x4xbf16>
    %c4 = arith.constant 4 : index
    %c0_32 = arith.constant 0 : index
    %c0_33 = arith.constant 0 : index
    %32 = vector.load %arg2[%c4, %c0_32, %c0_33] : memref<9x4x4xbf16, #tpu.memory_space<vmem>>, vector<1x4x4xbf16>
    %33 = vector.shape_cast %32 : vector<1x4x4xbf16> to vector<4x4xbf16>
    %cst_34 = arith.constant dense<0.000000e+00> : vector<256x4xf32>
    %34 = tpu.matmul %31, %33, %cst_34 {dimension_numbers = #tpu.dot_dimension_numbers<[1], [0], [0], [1], [0, 0, 1, 1], [], []>} : vector<256x4xbf16>, vector<4x4xbf16>, vector<256x4xf32> -> vector<256x4xf32>
    %35 = arith.addf %28, %34 : vector<256x4xf32>
    %c0_35 = arith.constant 0 : index
    %c1_36 = arith.constant 1 : index
    %c2_37 = arith.constant 2 : index
    %c0_38 = arith.constant 0 : index
    %36 = vector.load %arg1[%c0_35, %c1_36, %c2_37, %c0_38] : memref<1x18x18x4xbf16, #tpu.memory_space<vmem>>, vector<1x16x16x4xbf16>
    %37 = vector.shape_cast %36 : vector<1x16x16x4xbf16> to vector<16x16x4xbf16>
    %38 = vector.shape_cast %37 : vector<16x16x4xbf16> to vector<256x4xbf16>
    %c5 = arith.constant 5 : index
    %c0_39 = arith.constant 0 : index
    %c0_40 = arith.constant 0 : index
    %39 = vector.load %arg2[%c5, %c0_39, %c0_40] : memref<9x4x4xbf16, #tpu.memory_space<vmem>>, vector<1x4x4xbf16>
    %40 = vector.shape_cast %39 : vector<1x4x4xbf16> to vector<4x4xbf16>
    %cst_41 = arith.constant dense<0.000000e+00> : vector<256x4xf32>
    %41 = tpu.matmul %38, %40, %cst_41 {dimension_numbers = #tpu.dot_dimension_numbers<[1], [0], [0], [1], [0, 0, 1, 1], [], []>} : vector<256x4xbf16>, vector<4x4xbf16>, vector<256x4xf32> -> vector<256x4xf32>
    %42 = arith.addf %35, %41 : vector<256x4xf32>
    %c0_42 = arith.constant 0 : index
    %c2_43 = arith.constant 2 : index
    %c0_44 = arith.constant 0 : index
    %c0_45 = arith.constant 0 : index
    %43 = vector.load %arg1[%c0_42, %c2_43, %c0_44, %c0_45] : memref<1x18x18x4xbf16, #tpu.memory_space<vmem>>, vector<1x16x16x4xbf16>
    %44 = vector.shape_cast %43 : vector<1x16x16x4xbf16> to vector<16x16x4xbf16>
    %45 = vector.shape_cast %44 : vector<16x16x4xbf16> to vector<256x4xbf16>
    %c6 = arith.constant 6 : index
    %c0_46 = arith.constant 0 : index
    %c0_47 = arith.constant 0 : index
    %46 = vector.load %arg2[%c6, %c0_46, %c0_47] : memref<9x4x4xbf16, #tpu.memory_space<vmem>>, vector<1x4x4xbf16>
    %47 = vector.shape_cast %46 : vector<1x4x4xbf16> to vector<4x4xbf16>
    %cst_48 = arith.constant dense<0.000000e+00> : vector<256x4xf32>
    %48 = tpu.matmul %45, %47, %cst_48 {dimension_numbers = #tpu.dot_dimension_numbers<[1], [0], [0], [1], [0, 0, 1, 1], [], []>} : vector<256x4xbf16>, vector<4x4xbf16>, vector<256x4xf32> -> vector<256x4xf32>
    %49 = arith.addf %42, %48 : vector<256x4xf32>
    %c0_49 = arith.constant 0 : index
    %c2_50 = arith.constant 2 : index
    %c1_51 = arith.constant 1 : index
    %c0_52 = arith.constant 0 : index
    %50 = vector.load %arg1[%c0_49, %c2_50, %c1_51, %c0_52] : memref<1x18x18x4xbf16, #tpu.memory_space<vmem>>, vector<1x16x16x4xbf16>
    %51 = vector.shape_cast %50 : vector<1x16x16x4xbf16> to vector<16x16x4xbf16>
    %52 = vector.shape_cast %51 : vector<16x16x4xbf16> to vector<256x4xbf16>
    %c7 = arith.constant 7 : index
    %c0_53 = arith.constant 0 : index
    %c0_54 = arith.constant 0 : index
    %53 = vector.load %arg2[%c7, %c0_53, %c0_54] : memref<9x4x4xbf16, #tpu.memory_space<vmem>>, vector<1x4x4xbf16>
    %54 = vector.shape_cast %53 : vector<1x4x4xbf16> to vector<4x4xbf16>
    %cst_55 = arith.constant dense<0.000000e+00> : vector<256x4xf32>
    %55 = tpu.matmul %52, %54, %cst_55 {dimension_numbers = #tpu.dot_dimension_numbers<[1], [0], [0], [1], [0, 0, 1, 1], [], []>} : vector<256x4xbf16>, vector<4x4xbf16>, vector<256x4xf32> -> vector<256x4xf32>
    %56 = arith.addf %49, %55 : vector<256x4xf32>
    %c0_56 = arith.constant 0 : index
    %c2_57 = arith.constant 2 : index
    %c2_58 = arith.constant 2 : index
    %c0_59 = arith.constant 0 : index
    %57 = vector.load %arg1[%c0_56, %c2_57, %c2_58, %c0_59] : memref<1x18x18x4xbf16, #tpu.memory_space<vmem>>, vector<1x16x16x4xbf16>
    %58 = vector.shape_cast %57 : vector<1x16x16x4xbf16> to vector<16x16x4xbf16>
    %59 = vector.shape_cast %58 : vector<16x16x4xbf16> to vector<256x4xbf16>
    %c8 = arith.constant 8 : index
    %c0_60 = arith.constant 0 : index
    %c0_61 = arith.constant 0 : index
    %60 = vector.load %arg2[%c8, %c0_60, %c0_61] : memref<9x4x4xbf16, #tpu.memory_space<vmem>>, vector<1x4x4xbf16>
    %61 = vector.shape_cast %60 : vector<1x4x4xbf16> to vector<4x4xbf16>
    %cst_62 = arith.constant dense<0.000000e+00> : vector<256x4xf32>
    %62 = tpu.matmul %59, %61, %cst_62 {dimension_numbers = #tpu.dot_dimension_numbers<[1], [0], [0], [1], [0, 0, 1, 1], [], []>} : vector<256x4xbf16>, vector<4x4xbf16>, vector<256x4xf32> -> vector<256x4xf32>
    %63 = arith.addf %56, %62 : vector<256x4xf32>
    %c0_63 = arith.constant 0 : index
    %c0_64 = arith.constant 0 : index
    %64 = vector.load %arg3[%c0_63, %c0_64] : memref<1x4xf32, #tpu.memory_space<vmem>>, vector<1x4xf32>
    %65 = vector.broadcast %64 : vector<1x4xf32> to vector<256x4xf32>
    %66 = arith.addf %63, %65 : vector<256x4xf32>
    %cst_65 = arith.constant 0.000000e+00 : f32
    %67 = vector.broadcast %cst_65 : f32 to vector<256x4xf32>
    %68 = arith.maximumf %66, %67 : vector<256x4xf32>
    %69 = arith.truncf %68 : vector<256x4xf32> to vector<256x4xbf16>
    %c0_66 = arith.constant 0 : index
    %c0_67 = arith.constant 0 : index
    %70 = vector.load %arg4[%c0_66, %c0_67] : memref<4x16xbf16, #tpu.memory_space<vmem>>, vector<4x16xbf16>
    %cst_68 = arith.constant dense<0.000000e+00> : vector<256x16xf32>
    %71 = tpu.matmul %69, %70, %cst_68 {dimension_numbers = #tpu.dot_dimension_numbers<[1], [0], [0], [1], [0, 0, 1, 1], [], []>} : vector<256x4xbf16>, vector<4x16xbf16>, vector<256x16xf32> -> vector<256x16xf32>
    %c0_69 = arith.constant 0 : index
    %c0_70 = arith.constant 0 : index
    %72 = vector.load %arg5[%c0_69, %c0_70] : memref<1x16xf32, #tpu.memory_space<vmem>>, vector<1x16xf32>
    %73 = vector.broadcast %72 : vector<1x16xf32> to vector<256x16xf32>
    %74 = arith.addf %71, %73 : vector<256x16xf32>
    %c0_71 = arith.constant 0 : index
    %c0_72 = arith.constant 0 : index
    %c0_73 = arith.constant 0 : index
    %75 = vector.load %arg6[%c0_71, %c0_72, %c0_73] : memref<1x256x4xbf16, #tpu.memory_space<vmem>>, vector<1x256x4xbf16>
    %76 = vector.shape_cast %75 : vector<1x256x4xbf16> to vector<256x4xbf16>
    %c0_74 = arith.constant 0 : index
    %c0_75 = arith.constant 0 : index
    %77 = vector.load %arg7[%c0_74, %c0_75] : memref<4x16xbf16, #tpu.memory_space<vmem>>, vector<4x16xbf16>
    %cst_76 = arith.constant dense<0.000000e+00> : vector<256x16xf32>
    %78 = tpu.matmul %76, %77, %cst_76 {dimension_numbers = #tpu.dot_dimension_numbers<[1], [0], [0], [1], [0, 0, 1, 1], [], []>} : vector<256x4xbf16>, vector<4x16xbf16>, vector<256x16xf32> -> vector<256x16xf32>
    %c0_77 = arith.constant 0 : index
    %c0_78 = arith.constant 0 : index
    %79 = vector.load %arg8[%c0_77, %c0_78] : memref<1x16xf32, #tpu.memory_space<vmem>>, vector<1x16xf32>
    %80 = vector.broadcast %79 : vector<1x16xf32> to vector<256x16xf32>
    %81 = arith.addf %78, %80 : vector<256x16xf32>
    %82 = arith.addf %74, %81 : vector<256x16xf32>
    %cst_79 = arith.constant 0.000000e+00 : f32
    %83 = vector.broadcast %cst_79 : f32 to vector<256x16xf32>
    %84 = arith.maximumf %82, %83 : vector<256x16xf32>
    %c0_80 = arith.constant 0 : index
    %c0_81 = arith.constant 0 : index
    %c0_82 = arith.constant 0 : index
    %85 = vector.load %arg9[%c0_80, %c0_81, %c0_82] : memref<1x256x16xf32, #tpu.memory_space<vmem>>, vector<1x256x16xf32>
    %86 = vector.shape_cast %85 : vector<1x256x16xf32> to vector<256x16xf32>
    %87 = vector.shape_cast %84 : vector<256x16xf32> to vector<1x256x16xf32>
    tpu.vector_store %arg9[%c0_80, %c0_81, %c0_82], %87 {strides = array<i32>} : memref<1x256x16xf32, #tpu.memory_space<vmem>>, vector<1x256x16xf32>,
    return
  }
  func.func @transform_0(%arg0: i32) -> (i32, i32, i32, i32) {
    %c0_i32 = arith.constant 0 : i32
    %c0_i32_0 = arith.constant 0 : i32
    %c0_i32_1 = arith.constant 0 : i32
    %c0_i32_2 = arith.constant 0 : i32
    return %arg0, %c0_i32, %c0_i32_0, %c0_i32_1 : i32, i32, i32, i32
  }
  func.func @transform_1(%arg0: i32) -> (i32, i32, i32) {
    %c0_i32 = arith.constant 0 : i32
    %c0_i32_0 = arith.constant 0 : i32
    %c0_i32_1 = arith.constant 0 : i32
    %c0_i32_2 = arith.constant 0 : i32
    return %c0_i32, %c0_i32_0, %c0_i32_1 : i32, i32, i32
  }
  func.func @transform_2(%arg0: i32) -> (i32, i32) {
    %c0_i32 = arith.constant 0 : i32
    %c0_i32_0 = arith.constant 0 : i32
    %c0_i32_1 = arith.constant 0 : i32
    return %c0_i32, %c0_i32_0 : i32, i32
  }
  func.func @transform_3(%arg0: i32) -> (i32, i32) {
    %c0_i32 = arith.constant 0 : i32
    %c0_i32_0 = arith.constant 0 : i32
    %c0_i32_1 = arith.constant 0 : i32
    return %c0_i32, %c0_i32_0 : i32, i32
  }
  func.func @transform_4(%arg0: i32) -> (i32, i32) {
    %c0_i32 = arith.constant 0 : i32
    %c0_i32_0 = arith.constant 0 : i32
    %c0_i32_1 = arith.constant 0 : i32
    return %c0_i32, %c0_i32_0 : i32, i32
  }
  func.func @transform_5(%arg0: i32) -> (i32, i32, i32) {
    %c0_i32 = arith.constant 0 : i32
    %c0_i32_0 = arith.constant 0 : i32
    %c0_i32_1 = arith.constant 0 : i32
    return %arg0, %c0_i32, %c0_i32_0 : i32, i32, i32
  }
  func.func @transform_6(%arg0: i32) -> (i32, i32) {
    %c0_i32 = arith.constant 0 : i32
    %c0_i32_0 = arith.constant 0 : i32
    %c0_i32_1 = arith.constant 0 : i32
    return %c0_i32, %c0_i32_0 : i32, i32
  }
  func.func @transform_7(%arg0: i32) -> (i32, i32) {
    %c0_i32 = arith.constant 0 : i32
    %c0_i32_0 = arith.constant 0 : i32
    %c0_i32_1 = arith.constant 0 : i32
    return %c0_i32, %c0_i32_0 : i32, i32
  }
  func.func @transform_8(%arg0: i32) -> (i32, i32, i32) {
    %c0_i32 = arith.constant 0 : i32
    %c0_i32_0 = arith.constant 0 : i32
    %c0_i32_1 = arith.constant 0 : i32
    return %arg0, %c0_i32, %c0_i32_0 : i32, i32, i32
  }
}

</mosaic_0001>

<llo_original>
// kernel: bottleneck_forward.2
$region0: #{bottleneck_forward.2}
  #allocation0 [shape = 'u32[]', space=smem, size = 0x4, offset = 0x4, fixed_abs, tag = 'smem constant byte address 0x4 - core index']
  #allocation1 [shape = 'u32[144,128]{1,0:T(1,128)}', space=vmem, size = 0x12000, scoped, tag = 'internal scratch']
  %s0 = inlined_call_operand.vmem [shape: bf16[512,4], index: 0, kind: input, shape index: {}]
  %s1 = inlined_call_operand.vmem [shape: bf16[4,4], index: 1, kind: input, shape index: {}]
  %s2 = inlined_call_operand.vmem [shape: f32[1,4], index: 2, kind: input, shape index: {}]
  %s3 = inlined_call_operand.vmem [shape: bf16[512,4], index: 3, kind: output, shape index: {}]
  %s4 = sld [smem:[#allocation0]]
  $region22: #{bottleneck_forward.2} parent=0
    _
  %s6 = ssub.s32 1, %s4
  %s7 = scalar_select 0, %s6, %s4
  // Predicated region
  $region2: #{bottleneck_forward.2} parent=0 // pred_check
    _
  $region3: #{bottleneck_forward.2} parent=0 // pred_check_branch
    %9 = sbr.rel (0) target = $region5
  $region4: #{bottleneck_forward.2} parent=0 // pred_region
    _
  $region5: #{bottleneck_forward.2} parent=0 // pred_fallthru
    _
  // Predicated region
  $region6: #{bottleneck_forward.2} parent=0 // pred_check
    _
  $region7: #{bottleneck_forward.2} parent=0 // pred_check_branch
    %11 = sbr.rel (0) target = $region9
  $region8: #{bottleneck_forward.2} parent=0 // pred_region
    _
  $region9: #{bottleneck_forward.2} parent=0 // pred_fallthru
    _
  // Predicated region
  $region10: #{bottleneck_forward.2} parent=0 // pred_check
    _
  $region11: #{bottleneck_forward.2} parent=0 // pred_check_branch
    %13 = sbr.rel (0) target = $region13
  $region12: #{bottleneck_forward.2} parent=0 // pred_region
    _
  $region13: #{bottleneck_forward.2} parent=0 // pred_fallthru
    _
  %v15 = vld [vmem:[%s0] sm:$0xf]
  %v16 = vld [vmem:[%s0 + $0x4] sm:$0xf]
  %v17 = vld [vmem:[%s0 + $0x8] sm:$0xf]
  %v18 = vld [vmem:[%s0 + $0xc] sm:$0xf]
  %v19 = vld [vmem:[%s0 + $0x10] sm:$0xf]
  %v20 = vld [vmem:[%s0 + $0x14] sm:$0xf]
  %v21 = vld [vmem:[%s0 + $0x18] sm:$0xf]
  %v22 = vld [vmem:[%s0 + $0x1c] sm:$0xf]
  %v23 = vld [vmem:[%s0 + $0x20] sm:$0xf]
  %v24 = vld [vmem:[%s0 + $0x24] sm:$0xf]
  %v25 = vld [vmem:[%s0 + $0x28] sm:$0xf]
  %v26 = vld [vmem:[%s0 + $0x2c] sm:$0xf]
  %v27 = vld [vmem:[%s0 + $0x30] sm:$0xf]
  %v28 = vld [vmem:[%s0 + $0x34] sm:$0xf]
  %v29 = vld [vmem:[%s0 + $0x38] sm:$0xf]
  %v30 = vld [vmem:[%s0 + $0x3c] sm:$0xf]
  %v31 = vld [vmem:[%s0 + $0x40] sm:$0xf]
  %v32 = vld [vmem:[%s0 + $0x44] sm:$0xf]
  %v33 = vld [vmem:[%s0 + $0x48] sm:$0xf]
  %v34 = vld [vmem:[%s0 + $0x4c] sm:$0xf]
  %v35 = vld [vmem:[%s0 + $0x50] sm:$0xf]
  %v36 = vld [vmem:[%s0 + $0x54] sm:$0xf]
  %v37 = vld [vmem:[%s0 + $0x58] sm:$0xf]
  %v38 = vld [vmem:[%s0 + $0x5c] sm:$0xf]
  %v39 = vld [vmem:[%s0 + $0x60] sm:$0xf]
  %v40 = vld [vmem:[%s0 + $0x64] sm:$0xf]
  %v41 = vld [vmem:[%s0 + $0x68] sm:$0xf]
  %v42 = vld [vmem:[%s0 + $0x6c] sm:$0xf]
  %v43 = vld [vmem:[%s0 + $0x70] sm:$0xf]
  %v44 = vld [vmem:[%s0 + $0x74] sm:$0xf]
  %v45 = vld [vmem:[%s0 + $0x78] sm:$0xf]
  %v46 = vld [vmem:[%s0 + $0x7c] sm:$0xf]
  %v47 = vld [vmem:[%s0 + $0x80] sm:$0xf]
  %v48 = vld [vmem:[%s0 + $0x84] sm:$0xf]
  %v49 = vld [vmem:[%s0 + $0x88] sm:$0xf]
  %v50 = vld [vmem:[%s0 + $0x8c] sm:$0xf]
  %v51 = vld [vmem:[%s0 + $0x90] sm:$0xf]
  %v52 = vld [vmem:[%s0 + $0x94] sm:$0xf]
  %v53 = vld [vmem:[%s0 + $0x98] sm:$0xf]
  %v54 = vld [vmem:[%s0 + $0x9c] sm:$0xf]
  %v55 = vld [vmem:[%s0 + $0xa0] sm:$0xf]
  %v56 = vld [vmem:[%s0 + $0xa4] sm:$0xf]
  %v57 = vld [vmem:[%s0 + $0xa8] sm:$0xf]
  %v58 = vld [vmem:[%s0 + $0xac] sm:$0xf]
  %v59 = vld [vmem:[%s0 + $0xb0] sm:$0xf]
  %v60 = vld [vmem:[%s0 + $0xb4] sm:$0xf]
  %v61 = vld [vmem:[%s0 + $0xb8] sm:$0xf]
  %v62 = vld [vmem:[%s0 + $0xbc] sm:$0xf]
  %v63 = vld [vmem:[%s0 + $0xc0] sm:$0xf]
  %v64 = vld [vmem:[%s0 + $0xc4] sm:$0xf]
  %v65 = vld [vmem:[%s0 + $0xc8] sm:$0xf]
  %v66 = vld [vmem:[%s0 + $0xcc] sm:$0xf]
  %v67 = vld [vmem:[%s0 + $0xd0] sm:$0xf]
  %v68 = vld [vmem:[%s0 + $0xd4] sm:$0xf]
  %v69 = vld [vmem:[%s0 + $0xd8] sm:$0xf]
  %v70 = vld [vmem:[%s0 + $0xdc] sm:$0xf]
  %v71 = vld [vmem:[%s0 + $0xe0] sm:$0xf]
  %v72 = vld [vmem:[%s0 + $0xe4] sm:$0xf]
  %v73 = vld [vmem:[%s0 + $0xe8] sm:$0xf]
  %v74 = vld [vmem:[%s0 + $0xec] sm:$0xf]
  %v75 = vld [vmem:[%s0 + $0xf0] sm:$0xf]
  %v76 = vld [vmem:[%s0 + $0xf4] sm:$0xf]
  %v77 = vld [vmem:[%s0 + $0xf8] sm:$0xf]
  %v78 = vld [vmem:[%s0 + $0xfc] sm:$0xf]
  %v79 = vld [vmem:[%s1] sm:$0x3]
  %v80 = vld [vmem:[%s2] sm:$0x1]
  %v82 = vlaneseq
  %v83 = vshrl.u32 %v82, 7
  %v84 = vsub.s32 0, %v83
  %v85 = vrot.slane %v80, %v84
  %v151 = vunpack.c.l.b16 %v15
  %v152 = vunpack.c.l.b16 %v16
  %v153 = vunpack.c.l.b16 %v17
  %v154 = vunpack.c.l.b16 %v18
  %v155 = vunpack.c.l.b16 %v19
  %v156 = vunpack.c.l.b16 %v20
  %v157 = vunpack.c.l.b16 %v21
  %v158 = vunpack.c.l.b16 %v22
  %v159 = vunpack.c.l.b16 %v23
  %v160 = vunpack.c.l.b16 %v24
  %v161 = vunpack.c.l.b16 %v25
  %v162 = vunpack.c.l.b16 %v26
  %v163 = vunpack.c.l.b16 %v27
  %v164 = vunpack.c.l.b16 %v28
  %v165 = vunpack.c.l.b16 %v29
  %v166 = vunpack.c.l.b16 %v30
  %v167 = vunpack.c.l.b16 %v31
  %v168 = vunpack.c.l.b16 %v32
  %v169 = vunpack.c.l.b16 %v33
  %v170 = vunpack.c.l.b16 %v34
  %v171 = vunpack.c.l.b16 %v35
  %v172 = vunpack.c.l.b16 %v36
  %v173 = vunpack.c.l.b16 %v37
  %v174 = vunpack.c.l.b16 %v38
  %v175 = vunpack.c.l.b16 %v39
  %v176 = vunpack.c.l.b16 %v40
  %v177 = vunpack.c.l.b16 %v41
  %v178 = vunpack.c.l.b16 %v42
  %v179 = vunpack.c.l.b16 %v43
  %v180 = vunpack.c.l.b16 %v44
  %v181 = vunpack.c.l.b16 %v45
  %v182 = vunpack.c.l.b16 %v46
  %v183 = vunpack.c.l.b16 %v47
  %v184 = vunpack.c.l.b16 %v48
  %v185 = vunpack.c.l.b16 %v49
  %v186 = vunpack.c.l.b16 %v50
  %v187 = vunpack.c.l.b16 %v51
  %v188 = vunpack.c.l.b16 %v52
  %v189 = vunpack.c.l.b16 %v53
  %v190 = vunpack.c.l.b16 %v54
  %v191 = vunpack.c.l.b16 %v55
  %v192 = vunpack.c.l.b16 %v56
  %v193 = vunpack.c.l.b16 %v57
  %v194 = vunpack.c.l.b16 %v58
  %v195 = vunpack.c.l.b16 %v59
  %v196 = vunpack.c.l.b16 %v60
  %v197 = vunpack.c.l.b16 %v61
  %v198 = vunpack.c.l.b16 %v62
  %v199 = vunpack.c.l.b16 %v63
  %v200 = vunpack.c.l.b16 %v64
  %v201 = vunpack.c.l.b16 %v65
  %v202 = vunpack.c.l.b16 %v66
  %v203 = vunpack.c.l.b16 %v67
  %v204 = vunpack.c.l.b16 %v68
  %v205 = vunpack.c.l.b16 %v69
  %v206 = vunpack.c.l.b16 %v70
  %v207 = vunpack.c.l.b16 %v71
  %v208 = vunpack.c.l.b16 %v72
  %v209 = vunpack.c.l.b16 %v73
  %v210 = vunpack.c.l.b16 %v74
  %v211 = vunpack.c.l.b16 %v75
  %v212 = vunpack.c.l.b16 %v76
  %v213 = vunpack.c.l.b16 %v77
  %v214 = vunpack.c.l.b16 %v78
  %v215 = vpack.c.b16 %v152, %v151
  %v216 = vpack.c.b16 %v154, %v153
  %v217 = vpack.c.b16 %v156, %v155
  %v218 = vpack.c.b16 %v158, %v157
  %v219 = vpack.c.b16 %v160, %v159
  %v220 = vpack.c.b16 %v162, %v161
  %v221 = vpack.c.b16 %v164, %v163
  %v222 = vpack.c.b16 %v166, %v165
  %v223 = vpack.c.b16 %v168, %v167
  %v224 = vpack.c.b16 %v170, %v169
  %v225 = vpack.c.b16 %v172, %v171
  %v226 = vpack.c.b16 %v174, %v173
  %v227 = vpack.c.b16 %v176, %v175
  %v228 = vpack.c.b16 %v178, %v177
  %v229 = vpack.c.b16 %v180, %v179
  %v230 = vpack.c.b16 %v182, %v181
  %v231 = vpack.c.b16 %v184, %v183
  %v232 = vpack.c.b16 %v186, %v185
  %v233 = vpack.c.b16 %v188, %v187
  %v234 = vpack.c.b16 %v190, %v189
  %v235 = vpack.c.b16 %v192, %v191
  %v236 = vpack.c.b16 %v194, %v193
  %v237 = vpack.c.b16 %v196, %v195
  %v238 = vpack.c.b16 %v198, %v197
  %v239 = vpack.c.b16 %v200, %v199
  %v240 = vpack.c.b16 %v202, %v201
  %v241 = vpack.c.b16 %v204, %v203
  %v242 = vpack.c.b16 %v206, %v205
  %v243 = vpack.c.b16 %v208, %v207
  %v244 = vpack.c.b16 %v210, %v209
  %v245 = vpack.c.b16 %v212, %v211
  %v246 = vpack.c.b16 %v214, %v213
  %vm247 = vcmask 31744
  %v249 = vsel %vm247, %v215, 0
  %v252 = vsel %vm247, %v216, 0
  %v255 = vsel %vm247, %v217, 0
  %v258 = vsel %vm247, %v218, 0
  %v261 = vsel %vm247, %v219, 0
  %v264 = vsel %vm247, %v220, 0
  %v267 = vsel %vm247, %v221, 0
  %v270 = vsel %vm247, %v222, 0
  %v273 = vsel %vm247, %v223, 0
  %v276 = vsel %vm247, %v224, 0
  %v279 = vsel %vm247, %v225, 0
  %v282 = vsel %vm247, %v226, 0
  %v285 = vsel %vm247, %v227, 0
  %v288 = vsel %vm247, %v228, 0
  %v291 = vsel %vm247, %v229, 0
  %v294 = vsel %vm247, %v230, 0
  %v297 = vsel %vm247, %v231, 0
  %v300 = vsel %vm247, %v232, 0
  %v303 = vsel %vm247, %v233, 0
  %v306 = vsel %vm247, %v234, 0
  %v309 = vsel %vm247, %v235, 0
  %v312 = vsel %vm247, %v236, 0
  %v315 = vsel %vm247, %v237, 0
  %v318 = vsel %vm247, %v238, 0
  %v321 = vsel %vm247, %v239, 0
  %v324 = vsel %vm247, %v240, 0
  %v327 = vsel %vm247, %v241, 0
  %v330 = vsel %vm247, %v242, 0
  %v333 = vsel %vm247, %v243, 0
  %v336 = vsel %vm247, %v244, 0
  %v339 = vsel %vm247, %v245, 0
  %v342 = vsel %vm247, %v246, 0
  %vm344 = vcmask 1041408
  %v346 = vsel %vm344, %v79, 0
  %348 = vmatprep.subr.bf16.mxu0 0
  %349 = vmatpush1.bf16.msra.mxu0 0
  %350 = vmatprep.subr.bf16.mxu0 0
  %351 = vmatpush1.bf16.msra.mxu0 0
  %352 = vmatprep.subr.bf16.mxu0 0
  %353 = vmatpush1.bf16.msra.mxu0 0
  %354 = vmatprep.subr.bf16.mxu0 0
  %355 = vmatpush1.bf16.msra.mxu0 0
  %356 = vmatprep.subr.bf16.mxu0 0
  %357 = vmatpush1.bf16.msra.mxu0 0
  %358 = vmatprep.subr.bf16.mxu0 0
  %359 = vmatpush1.bf16.msra.mxu0 0
  %360 = vmatprep.subr.bf16.mxu0 0
  %361 = vmatpush1.bf16.msra.mxu0 0
  %362 = vmatprep.subr.bf16.mxu0 0
  %363 = vmatpush1.bf16.msra.mxu0 %v346
  %364 = vmatprep.subr.bf16.mxu0 0
  %365 = vmatpush2.bf16.msra.mxu0 0
  %366 = vmatprep.subr.bf16.mxu0 0
  %367 = vmatpush2.bf16.msra.mxu0 0
  %368 = vmatprep.subr.bf16.mxu0 0
  %369 = vmatpush2.bf16.msra.mxu0 0
  %370 = vmatprep.subr.bf16.mxu0 0
  %371 = vmatpush2.bf16.msra.mxu0 0
  %372 = vmatprep.subr.bf16.mxu0 0
  %373 = vmatpush2.bf16.msra.mxu0 0
  %374 = vmatprep.subr.bf16.mxu0 0
  %375 = vmatpush2.bf16.msra.mxu0 0
  %376 = vmatprep.subr.bf16.mxu0 0
  %377 = vmatpush2.bf16.msra.mxu0 0
  %378 = vmatprep.subr.bf16.mxu0 0
  %379 = vmatpush2.bf16.msra.mxu0 0
  %380 = vmatprep.mubr.bf16.mxu0 0
  %381 = vmatmul.mubr.bf16.gmra.mxu0 %v249
  %v382 = vpop.f32.mrf.mxu0
  %v383 = vadd.f32 %v85, %v382
  %v384 = vpop.f32.mrf.mxu0
  %v385 = vpop.f32.mrf.mxu0
  %v386 = vadd.f32 %v85, %v385
  %v387 = vpop.f32.mrf.mxu0
  %388 = vmatprep.mubr.bf16.mxu0 0
  %389 = vmatmul.mubr.bf16.gmra.mxu0 %v252
  %v390 = vpop.f32.mrf.mxu0
  %v391 = vadd.f32 %v85, %v390
  %v392 = vpop.f32.mrf.mxu0
  %v393 = vpop.f32.mrf.mxu0
  %v394 = vadd.f32 %v85, %v393
  %v395 = vpop.f32.mrf.mxu0
  %396 = vmatprep.mubr.bf16.mxu0 0
  %397 = vmatmul.mubr.bf16.gmra.mxu0 %v255
  %v398 = vpop.f32.mrf.mxu0
  %v399 = vadd.f32 %v85, %v398
  %v400 = vpop.f32.mrf.mxu0
  %v401 = vpop.f32.mrf.mxu0
  %v402 = vadd.f32 %v85, %v401
  %v403 = vpop.f32.mrf.mxu0
  %404 = vmatprep.mubr.bf16.mxu0 0
  %405 = vmatmul.mubr.bf16.gmra.mxu0 %v258
  %v406 = vpop.f32.mrf.mxu0
  %v407 = vadd.f32 %v85, %v406
  %v408 = vpop.f32.mrf.mxu0
  %v409 = vpop.f32.mrf.mxu0
  %v410 = vadd.f32 %v85, %v409
  %v411 = vpop.f32.mrf.mxu0
  %412 = vmatprep.mubr.bf16.mxu0 0
  %413 = vmatmul.mubr.bf16.gmra.mxu0 %v261
  %v414 = vpop.f32.mrf.mxu0
  %v415 = vadd.f32 %v85, %v414
  %v416 = vpop.f32.mrf.mxu0
  %v417 = vpop.f32.mrf.mxu0
  %v418 = vadd.f32 %v85, %v417
  %v419 = vpop.f32.mrf.mxu0
  %420 = vmatprep.mubr.bf16.mxu0 0
  %421 = vmatmul.mubr.bf16.gmra.mxu0 %v264
  %v422 = vpop.f32.mrf.mxu0
  %v423 = vadd.f32 %v85, %v422
  %v424 = vpop.f32.mrf.mxu0
  %v425 = vpop.f32.mrf.mxu0
  %v426 = vadd.f32 %v85, %v425
  %v427 = vpop.f32.mrf.mxu0
  %428 = vmatprep.mubr.bf16.mxu0 0
  %429 = vmatmul.mubr.bf16.gmra.mxu0 %v267
  %v430 = vpop.f32.mrf.mxu0
  %v431 = vadd.f32 %v85, %v430
  %v432 = vpop.f32.mrf.mxu0
  %v433 = vpop.f32.mrf.mxu0
  %v434 = vadd.f32 %v85, %v433
  %v435 = vpop.f32.mrf.mxu0
  %436 = vmatprep.mubr.bf16.mxu0 0
  %437 = vmatmul.mubr.bf16.gmra.mxu0 %v270
  %v438 = vpop.f32.mrf.mxu0
  %v439 = vadd.f32 %v85, %v438
  %v440 = vpop.f32.mrf.mxu0
  %v441 = vpop.f32.mrf.mxu0
  %v442 = vadd.f32 %v85, %v441
  %v443 = vpop.f32.mrf.mxu0
  %444 = vmatprep.mubr.bf16.mxu0 0
  %445 = vmatmul.mubr.bf16.gmra.mxu0 %v273
  %v446 = vpop.f32.mrf.mxu0
  %v447 = vadd.f32 %v85, %v446
  %v448 = vpop.f32.mrf.mxu0
  %v449 = vpop.f32.mrf.mxu0
  %v450 = vadd.f32 %v85, %v449
  %v451 = vpop.f32.mrf.mxu0
  %452 = vmatprep.mubr.bf16.mxu0 0
  %453 = vmatmul.mubr.bf16.gmra.mxu0 %v276
  %v454 = vpop.f32.mrf.mxu0
  %v455 = vadd.f32 %v85, %v454
  %v456 = vpop.f32.mrf.mxu0
  %v457 = vpop.f32.mrf.mxu0
  %v458 = vadd.f32 %v85, %v457
  %v459 = vpop.f32.mrf.mxu0
  %460 = vmatprep.mubr.bf16.mxu0 0
  %461 = vmatmul.mubr.bf16.gmra.mxu0 %v279
  %v462 = vpop.f32.mrf.mxu0
  %v463 = vadd.f32 %v85, %v462
  %v464 = vpop.f32.mrf.mxu0
  %v465 = vpop.f32.mrf.mxu0
  %v466 = vadd.f32 %v85, %v465
  %v467 = vpop.f32.mrf.mxu0
  %468 = vmatprep.mubr.bf16.mxu0 0
  %469 = vmatmul.mubr.bf16.gmra.mxu0 %v282
  %v470 = vpop.f32.mrf.mxu0
  %v471 = vadd.f32 %v85, %v470
  %v472 = vpop.f32.mrf.mxu0
  %v473 = vpop.f32.mrf.mxu0
  %v474 = vadd.f32 %v85, %v473
  %v475 = vpop.f32.mrf.mxu0
  %476 = vmatprep.mubr.bf16.mxu0 0
  %477 = vmatmul.mubr.bf16.gmra.mxu0 %v285
  %v478 = vpop.f32.mrf.mxu0
  %v479 = vadd.f32 %v85, %v478
  %v480 = vpop.f32.mrf.mxu0
  %v481 = vpop.f32.mrf.mxu0
  %v482 = vadd.f32 %v85, %v481
  %v483 = vpop.f32.mrf.mxu0
  %484 = vmatprep.mubr.bf16.mxu0 0
  %485 = vmatmul.mubr.bf16.gmra.mxu0 %v288
  %v486 = vpop.f32.mrf.mxu0
  %v487 = vadd.f32 %v85, %v486
  %v488 = vpop.f32.mrf.mxu0
  %v489 = vpop.f32.mrf.mxu0
  %v490 = vadd.f32 %v85, %v489
  %v491 = vpop.f32.mrf.mxu0
  %492 = vmatprep.mubr.bf16.mxu0 0
  %493 = vmatmul.mubr.bf16.gmra.mxu0 %v291
  %v494 = vpop.f32.mrf.mxu0
  %v495 = vadd.f32 %v85, %v494
  %v496 = vpop.f32.mrf.mxu0
  %v497 = vpop.f32.mrf.mxu0
  %v498 = vadd.f32 %v85, %v497
  %v499 = vpop.f32.mrf.mxu0
  %500 = vmatprep.mubr.bf16.mxu0 0
  %501 = vmatmul.mubr.bf16.gmra.mxu0 %v294
  %v502 = vpop.f32.mrf.mxu0
  %v503 = vadd.f32 %v85, %v502
  %v504 = vpop.f32.mrf.mxu0
  %v505 = vpop.f32.mrf.mxu0
  %v506 = vadd.f32 %v85, %v505
  %v507 = vpop.f32.mrf.mxu0
  %508 = vmatprep.mubr.bf16.mxu0 0
  %509 = vmatmul.mubr.bf16.gmra.mxu0 %v297
  %v510 = vpop.f32.mrf.mxu0
  %v511 = vadd.f32 %v85, %v510
  %v512 = vpop.f32.mrf.mxu0
  %v513 = vpop.f32.mrf.mxu0
  %v514 = vadd.f32 %v85, %v513
  %v515 = vpop.f32.mrf.mxu0
  %516 = vmatprep.mubr.bf16.mxu0 0
  %517 = vmatmul.mubr.bf16.gmra.mxu0 %v300
  %v518 = vpop.f32.mrf.mxu0
  %v519 = vadd.f32 %v85, %v518
  %v520 = vpop.f32.mrf.mxu0
  %v521 = vpop.f32.mrf.mxu0
  %v522 = vadd.f32 %v85, %v521
  %v523 = vpop.f32.mrf.mxu0
  %524 = vmatprep.mubr.bf16.mxu0 0
  %525 = vmatmul.mubr.bf16.gmra.mxu0 %v303
  %v526 = vpop.f32.mrf.mxu0
  %v527 = vadd.f32 %v85, %v526
  %v528 = vpop.f32.mrf.mxu0
  %v529 = vpop.f32.mrf.mxu0
  %v530 = vadd.f32 %v85, %v529
  %v531 = vpop.f32.mrf.mxu0
  %532 = vmatprep.mubr.bf16.mxu0 0
  %533 = vmatmul.mubr.bf16.gmra.mxu0 %v306
  %v534 = vpop.f32.mrf.mxu0
  %v535 = vadd.f32 %v85, %v534
  %v536 = vpop.f32.mrf.mxu0
  %v537 = vpop.f32.mrf.mxu0
  %v538 = vadd.f32 %v85, %v537
  %v539 = vpop.f32.mrf.mxu0
  %540 = vmatprep.mubr.bf16.mxu0 0
  %541 = vmatmul.mubr.bf16.gmra.mxu0 %v309
  %v542 = vpop.f32.mrf.mxu0
  %v543 = vadd.f32 %v85, %v542
  %v544 = vpop.f32.mrf.mxu0
  %v545 = vpop.f32.mrf.mxu0
  %v546 = vadd.f32 %v85, %v545
  %v547 = vpop.f32.mrf.mxu0
  %548 = vmatprep.mubr.bf16.mxu0 0
  %549 = vmatmul.mubr.bf16.gmra.mxu0 %v312
  %v550 = vpop.f32.mrf.mxu0
  %v551 = vadd.f32 %v85, %v550
  %v552 = vpop.f32.mrf.mxu0
  %v553 = vpop.f32.mrf.mxu0
  %v554 = vadd.f32 %v85, %v553
  %v555 = vpop.f32.mrf.mxu0
  %556 = vmatprep.mubr.bf16.mxu0 0
  %557 = vmatmul.mubr.bf16.gmra.mxu0 %v315
  %v558 = vpop.f32.mrf.mxu0
  %v559 = vadd.f32 %v85, %v558
  %v560 = vpop.f32.mrf.mxu0
  %v561 = vpop.f32.mrf.mxu0
  %v562 = vadd.f32 %v85, %v561
  %v563 = vpop.f32.mrf.mxu0
  %564 = vmatprep.mubr.bf16.mxu0 0
  %565 = vmatmul.mubr.bf16.gmra.mxu0 %v318
  %v566 = vpop.f32.mrf.mxu0
  %v567 = vadd.f32 %v85, %v566
  %v568 = vpop.f32.mrf.mxu0
  %v569 = vpop.f32.mrf.mxu0
  %v570 = vadd.f32 %v85, %v569
  %v571 = vpop.f32.mrf.mxu0
  %572 = vmatprep.mubr.bf16.mxu0 0
  %573 = vmatmul.mubr.bf16.gmra.mxu0 %v321
  %v574 = vpop.f32.mrf.mxu0
  %v575 = vadd.f32 %v85, %v574
  %v576 = vpop.f32.mrf.mxu0
  %v577 = vpop.f32.mrf.mxu0
  %v578 = vadd.f32 %v85, %v577
  %v579 = vpop.f32.mrf.mxu0
  %580 = vmatprep.mubr.bf16.mxu0 0
  %581 = vmatmul.mubr.bf16.gmra.mxu0 %v324
  %v582 = vpop.f32.mrf.mxu0
  %v583 = vadd.f32 %v85, %v582
  %v584 = vpop.f32.mrf.mxu0
  %v585 = vpop.f32.mrf.mxu0
  %v586 = vadd.f32 %v85, %v585
  %v587 = vpop.f32.mrf.mxu0
  %588 = vmatprep.mubr.bf16.mxu0 0
  %589 = vmatmul.mubr.bf16.gmra.mxu0 %v327
  %v590 = vpop.f32.mrf.mxu0
  %v591 = vadd.f32 %v85, %v590
  %v592 = vpop.f32.mrf.mxu0
  %v593 = vpop.f32.mrf.mxu0
  %v594 = vadd.f32 %v85, %v593
  %v595 = vpop.f32.mrf.mxu0
  %596 = vmatprep.mubr.bf16.mxu0 0
  %597 = vmatmul.mubr.bf16.gmra.mxu0 %v330
  %v598 = vpop.f32.mrf.mxu0
  %v599 = vadd.f32 %v85, %v598
  %v600 = vpop.f32.mrf.mxu0
  %v601 = vpop.f32.mrf.mxu0
  %v602 = vadd.f32 %v85, %v601
  %v603 = vpop.f32.mrf.mxu0
  %604 = vmatprep.mubr.bf16.mxu0 0
  %605 = vmatmul.mubr.bf16.gmra.mxu0 %v333
  %v606 = vpop.f32.mrf.mxu0
  %v607 = vadd.f32 %v85, %v606
  %v608 = vpop.f32.mrf.mxu0
  %v609 = vpop.f32.mrf.mxu0
  %v610 = vadd.f32 %v85, %v609
  %v611 = vpop.f32.mrf.mxu0
  %612 = vmatprep.mubr.bf16.mxu0 0
  %613 = vmatmul.mubr.bf16.gmra.mxu0 %v336
  %v614 = vpop.f32.mrf.mxu0
  %v615 = vadd.f32 %v85, %v614
  %v616 = vpop.f32.mrf.mxu0
  %v617 = vpop.f32.mrf.mxu0
  %v618 = vadd.f32 %v85, %v617
  %v619 = vpop.f32.mrf.mxu0
  %620 = vmatprep.mubr.bf16.mxu0 0
  %621 = vmatmul.mubr.bf16.gmra.mxu0 %v339
  %v622 = vpop.f32.mrf.mxu0
  %v623 = vadd.f32 %v85, %v622
  %v624 = vpop.f32.mrf.mxu0
  %v625 = vpop.f32.mrf.mxu0
  %v626 = vadd.f32 %v85, %v625
  %v627 = vpop.f32.mrf.mxu0
  %628 = vmatprep.mubr.bf16.mxu0 0
  %629 = vmatmul.mubr.bf16.gmra.mxu0 %v342
  %v630 = vpop.f32.mrf.mxu0
  %v631 = vadd.f32 %v85, %v630
  %v632 = vpop.f32.mrf.mxu0
  %v633 = vpop.f32.mrf.mxu0
  %v634 = vadd.f32 %v85, %v633
  %v635 = vpop.f32.mrf.mxu0
  %636 = vdwg.mxu0
  %v637 = vmax.f32 %v383, 0.0
  %v638 = vmax.f32 %v386, 0.0
  %v639 = vmax.f32 %v391, 0.0
  %v640 = vmax.f32 %v394, 0.0
  %v641 = vmax.f32 %v399, 0.0
  %v642 = vmax.f32 %v402, 0.0
  %v643 = vmax.f32 %v407, 0.0
  %v644 = vmax.f32 %v410, 0.0
  %v645 = vmax.f32 %v415, 0.0
  %v646 = vmax.f32 %v418, 0.0
  %v647 = vmax.f32 %v423, 0.0
  %v648 = vmax.f32 %v426, 0.0
  %v649 = vmax.f32 %v431, 0.0
  %v650 = vmax.f32 %v434, 0.0
  %v651 = vmax.f32 %v439, 0.0
  %v652 = vmax.f32 %v442, 0.0
  %v653 = vmax.f32 %v447, 0.0
  %v654 = vmax.f32 %v450, 0.0
  %v655 = vmax.f32 %v455, 0.0
  %v656 = vmax.f32 %v458, 0.0
  %v657 = vmax.f32 %v463, 0.0
  %v658 = vmax.f32 %v466, 0.0
  %v659 = vmax.f32 %v471, 0.0
  %v660 = vmax.f32 %v474, 0.0
  %v661 = vmax.f32 %v479, 0.0
  %v662 = vmax.f32 %v482, 0.0
  %v663 = vmax.f32 %v487, 0.0
  %v664 = vmax.f32 %v490, 0.0
  %v665 = vmax.f32 %v495, 0.0
  %v666 = vmax.f32 %v498, 0.0
  %v667 = vmax.f32 %v503, 0.0
  %v668 = vmax.f32 %v506, 0.0
  %v669 = vmax.f32 %v511, 0.0
  %v670 = vmax.f32 %v514, 0.0
  %v671 = vmax.f32 %v519, 0.0
  %v672 = vmax.f32 %v522, 0.0
  %v673 = vmax.f32 %v527, 0.0
  %v674 = vmax.f32 %v530, 0.0
  %v675 = vmax.f32 %v535, 0.0
  %v676 = vmax.f32 %v538, 0.0
  %v677 = vmax.f32 %v543, 0.0
  %v678 = vmax.f32 %v546, 0.0
  %v679 = vmax.f32 %v551, 0.0
  %v680 = vmax.f32 %v554, 0.0
  %v681 = vmax.f32 %v559, 0.0
  %v682 = vmax.f32 %v562, 0.0
  %v683 = vmax.f32 %v567, 0.0
  %v684 = vmax.f32 %v570, 0.0
  %v685 = vmax.f32 %v575, 0.0
  %v686 = vmax.f32 %v578, 0.0
  %v687 = vmax.f32 %v583, 0.0
  %v688 = vmax.f32 %v586, 0.0
  %v689 = vmax.f32 %v591, 0.0
  %v690 = vmax.f32 %v594, 0.0
  %v691 = vmax.f32 %v599, 0.0
  %v692 = vmax.f32 %v602, 0.0
  %v693 = vmax.f32 %v607, 0.0
  %v694 = vmax.f32 %v610, 0.0
  %v695 = vmax.f32 %v615, 0.0
  %v696 = vmax.f32 %v618, 0.0
  %v697 = vmax.f32 %v623, 0.0
  %v698 = vmax.f32 %v626, 0.0
  %v699 = vmax.f32 %v631, 0.0
  %v700 = vmax.f32 %v634, 0.0
  %v701 = vpack.c.bf16 %v638, %v637
  %v702 = vpack.c.bf16 %v640, %v639
  %v703 = vpack.c.bf16 %v642, %v641
  %v704 = vpack.c.bf16 %v644, %v643
  %v705 = vpack.c.bf16 %v646, %v645
  %v706 = vpack.c.bf16 %v648, %v647
  %v707 = vpack.c.bf16 %v650, %v649
  %v708 = vpack.c.bf16 %v652, %v651
  %v709 = vpack.c.bf16 %v654, %v653
  %v710 = vpack.c.bf16 %v656, %v655
  %v711 = vpack.c.bf16 %v658, %v657
  %v712 = vpack.c.bf16 %v660, %v659
  %v713 = vpack.c.bf16 %v662, %v661
  %v714 = vpack.c.bf16 %v664, %v663
  %v715 = vpack.c.bf16 %v666, %v665
  %v716 = vpack.c.bf16 %v668, %v667
  %v717 = vpack.c.bf16 %v670, %v669
  %v718 = vpack.c.bf16 %v672, %v671
  %v719 = vpack.c.bf16 %v674, %v673
  %v720 = vpack.c.bf16 %v676, %v675
  %v721 = vpack.c.bf16 %v678, %v677
  %v722 = vpack.c.bf16 %v680, %v679
  %v723 = vpack.c.bf16 %v682, %v681
  %v724 = vpack.c.bf16 %v684, %v683
  %v725 = vpack.c.bf16 %v686, %v685
  %v726 = vpack.c.bf16 %v688, %v687
  %v727 = vpack.c.bf16 %v690, %v689
  %v728 = vpack.c.bf16 %v692, %v691
  %v729 = vpack.c.bf16 %v694, %v693
  %v730 = vpack.c.bf16 %v696, %v695
  %v731 = vpack.c.bf16 %v698, %v697
  %v732 = vpack.c.bf16 %v700, %v699
  %v765 = vunpack.c.l.b16 %v701
  %v766 = vunpack.c.h.b16 %v701
  %v767 = vunpack.c.l.b16 %v702
  %v768 = vunpack.c.h.b16 %v702
  %v769 = vunpack.c.l.b16 %v703
  %v770 = vunpack.c.h.b16 %v703
  %v771 = vunpack.c.l.b16 %v704
  %v772 = vunpack.c.h.b16 %v704
  %v773 = vunpack.c.l.b16 %v705
  %v774 = vunpack.c.h.b16 %v705
  %v775 = vunpack.c.l.b16 %v706
  %v776 = vunpack.c.h.b16 %v706
  %v777 = vunpack.c.l.b16 %v707
  %v778 = vunpack.c.h.b16 %v707
  %v779 = vunpack.c.l.b16 %v708
  %v780 = vunpack.c.h.b16 %v708
  %v781 = vunpack.c.l.b16 %v709
  %v782 = vunpack.c.h.b16 %v709
  %v783 = vunpack.c.l.b16 %v710
  %v784 = vunpack.c.h.b16 %v710
  %v785 = vunpack.c.l.b16 %v711
  %v786 = vunpack.c.h.b16 %v711
  %v787 = vunpack.c.l.b16 %v712
  %v788 = vunpack.c.h.b16 %v712
  %v789 = vunpack.c.l.b16 %v713
  %v790 = vunpack.c.h.b16 %v713
  %v791 = vunpack.c.l.b16 %v714
  %v792 = vunpack.c.h.b16 %v714
  %v793 = vunpack.c.l.b16 %v715
  %v794 = vunpack.c.h.b16 %v715
  %v795 = vunpack.c.l.b16 %v716
  %v796 = vunpack.c.h.b16 %v716
  %v797 = vunpack.c.l.b16 %v717
  %v798 = vunpack.c.h.b16 %v717
  %v799 = vunpack.c.l.b16 %v718
  %v800 = vunpack.c.h.b16 %v718
  %v801 = vunpack.c.l.b16 %v719
  %v802 = vunpack.c.h.b16 %v719
  %v803 = vunpack.c.l.b16 %v720
  %v804 = vunpack.c.h.b16 %v720
  %v805 = vunpack.c.l.b16 %v721
  %v806 = vunpack.c.h.b16 %v721
  %v807 = vunpack.c.l.b16 %v722
  %v808 = vunpack.c.h.b16 %v722
  %v809 = vunpack.c.l.b16 %v723
  %v810 = vunpack.c.h.b16 %v723
  %v811 = vunpack.c.l.b16 %v724
  %v812 = vunpack.c.h.b16 %v724
  %v813 = vunpack.c.l.b16 %v725
  %v814 = vunpack.c.h.b16 %v725
  %v815 = vunpack.c.l.b16 %v726
  %v816 = vunpack.c.h.b16 %v726
  %v817 = vunpack.c.l.b16 %v727
  %v818 = vunpack.c.h.b16 %v727
  %v819 = vunpack.c.l.b16 %v728
  %v820 = vunpack.c.h.b16 %v728
  %v821 = vunpack.c.l.b16 %v729
  %v822 = vunpack.c.h.b16 %v729
  %v823 = vunpack.c.l.b16 %v730
  %v824 = vunpack.c.h.b16 %v730
  %v825 = vunpack.c.l.b16 %v731
  %v826 = vunpack.c.h.b16 %v731
  %v827 = vunpack.c.l.b16 %v732
  %v828 = vunpack.c.h.b16 %v732
  %v829 = vpack.c.b16 %v765, %v765
  %v830 = vpack.c.b16 %v766, %v766
  %v831 = vpack.c.b16 %v767, %v767
  %v832 = vpack.c.b16 %v768, %v768
  %v833 = vpack.c.b16 %v769, %v769
  %v834 = vpack.c.b16 %v770, %v770
  %v835 = vpack.c.b16 %v771, %v771
  %v836 = vpack.c.b16 %v772, %v772
  %v837 = vpack.c.b16 %v773, %v773
  %v838 = vpack.c.b16 %v774, %v774
  %v839 = vpack.c.b16 %v775, %v775
  %v840 = vpack.c.b16 %v776, %v776
  %v841 = vpack.c.b16 %v777, %v777
  %v842 = vpack.c.b16 %v778, %v778
  %v843 = vpack.c.b16 %v779, %v779
  %v844 = vpack.c.b16 %v780, %v780
  %v845 = vpack.c.b16 %v781, %v781
  %v846 = vpack.c.b16 %v782, %v782
  %v847 = vpack.c.b16 %v783, %v783
  %v848 = vpack.c.b16 %v784, %v784
  %v849 = vpack.c.b16 %v785, %v785
  %v850 = vpack.c.b16 %v786, %v786
  %v851 = vpack.c.b16 %v787, %v787
  %v852 = vpack.c.b16 %v788, %v788
  %v853 = vpack.c.b16 %v789, %v789
  %v854 = vpack.c.b16 %v790, %v790
  %v855 = vpack.c.b16 %v791, %v791
  %v856 = vpack.c.b16 %v792, %v792
  %v857 = vpack.c.b16 %v793, %v793
  %v858 = vpack.c.b16 %v794, %v794
  %v859 = vpack.c.b16 %v795, %v795
  %v860 = vpack.c.b16 %v796, %v796
  %v861 = vpack.c.b16 %v797, %v797
  %v862 = vpack.c.b16 %v798, %v798
  %v863 = vpack.c.b16 %v799, %v799
  %v864 = vpack.c.b16 %v800, %v800
  %v865 = vpack.c.b16 %v801, %v801
  %v866 = vpack.c.b16 %v802, %v802
  %v867 = vpack.c.b16 %v803, %v803
  %v868 = vpack.c.b16 %v804, %v804
  %v869 = vpack.c.b16 %v805, %v805
  %v870 = vpack.c.b16 %v806, %v806
  %v871 = vpack.c.b16 %v807, %v807
  %v872 = vpack.c.b16 %v808, %v808
  %v873 = vpack.c.b16 %v809, %v809
  %v874 = vpack.c.b16 %v810, %v810
  %v875 = vpack.c.b16 %v811, %v811
  %v876 = vpack.c.b16 %v812, %v812
  %v877 = vpack.c.b16 %v813, %v813
  %v878 = vpack.c.b16 %v814, %v814
  %v879 = vpack.c.b16 %v815, %v815
  %v880 = vpack.c.b16 %v816, %v816
  %v881 = vpack.c.b16 %v817, %v817
  %v882 = vpack.c.b16 %v818, %v818
  %v883 = vpack.c.b16 %v819, %v819
  %v884 = vpack.c.b16 %v820, %v820
  %v885 = vpack.c.b16 %v821, %v821
  %v886 = vpack.c.b16 %v822, %v822
  %v887 = vpack.c.b16 %v823, %v823
  %v888 = vpack.c.b16 %v824, %v824
  %v889 = vpack.c.b16 %v825, %v825
  %v890 = vpack.c.b16 %v826, %v826
  %v891 = vpack.c.b16 %v827, %v827
  %v892 = vpack.c.b16 %v828, %v828
  %vm957 = vcmask 27648
  %958 = vst.msk [vmem:[%s3] sm:$0xf] %vm957, %v829
  %959 = vst.msk [vmem:[%s3 + $0x4] sm:$0xf] %vm957, %v830
  %960 = vst.msk [vmem:[%s3 + $0x8] sm:$0xf] %vm957, %v831
  %961 = vst.msk [vmem:[%s3 + $0xc] sm:$0xf] %vm957, %v832
  %962 = vst.msk [vmem:[%s3 + $0x10] sm:$0xf] %vm957, %v833
  %963 = vst.msk [vmem:[%s3 + $0x14] sm:$0xf] %vm957, %v834
  %964 = vst.msk [vmem:[%s3 + $0x18] sm:$0xf] %vm957, %v835
  %965 = vst.msk [vmem:[%s3 + $0x1c] sm:$0xf] %vm957, %v836
  %966 = vst.msk [vmem:[%s3 + $0x20] sm:$0xf] %vm957, %v837
  %967 = vst.msk [vmem:[%s3 + $0x24] sm:$0xf] %vm957, %v838
  %968 = vst.msk [vmem:[%s3 + $0x28] sm:$0xf] %vm957, %v839
  %969 = vst.msk [vmem:[%s3 + $0x2c] sm:$0xf] %vm957, %v840
  %970 = vst.msk [vmem:[%s3 + $0x30] sm:$0xf] %vm957, %v841
  %971 = vst.msk [vmem:[%s3 + $0x34] sm:$0xf] %vm957, %v842
  %972 = vst.msk [vmem:[%s3 + $0x38] sm:$0xf] %vm957, %v843
  %973 = vst.msk [vmem:[%s3 + $0x3c] sm:$0xf] %vm957, %v844
  %974 = vst.msk [vmem:[%s3 + $0x40] sm:$0xf] %vm957, %v845
  %975 = vst.msk [vmem:[%s3 + $0x44] sm:$0xf] %vm957, %v846
  %976 = vst.msk [vmem:[%s3 + $0x48] sm:$0xf] %vm957, %v847
  %977 = vst.msk [vmem:[%s3 + $0x4c] sm:$0xf] %vm957, %v848
  %978 = vst.msk [vmem:[%s3 + $0x50] sm:$0xf] %vm957, %v849
  %979 = vst.msk [vmem:[%s3 + $0x54] sm:$0xf] %vm957, %v850
  %980 = vst.msk [vmem:[%s3 + $0x58] sm:$0xf] %vm957, %v851
  %981 = vst.msk [vmem:[%s3 + $0x5c] sm:$0xf] %vm957, %v852
  %982 = vst.msk [vmem:[%s3 + $0x60] sm:$0xf] %vm957, %v853
  %983 = vst.msk [vmem:[%s3 + $0x64] sm:$0xf] %vm957, %v854
  %984 = vst.msk [vmem:[%s3 + $0x68] sm:$0xf] %vm957, %v855
  %985 = vst.msk [vmem:[%s3 + $0x6c] sm:$0xf] %vm957, %v856
  %986 = vst.msk [vmem:[%s3 + $0x70] sm:$0xf] %vm957, %v857
  %987 = vst.msk [vmem:[%s3 + $0x74] sm:$0xf] %vm957, %v858
  %988 = vst.msk [vmem:[%s3 + $0x78] sm:$0xf] %vm957, %v859
  %989 = vst.msk [vmem:[%s3 + $0x7c] sm:$0xf] %vm957, %v860
  %990 = vst.msk [vmem:[%s3 + $0x80] sm:$0xf] %vm957, %v861
  %991 = vst.msk [vmem:[%s3 + $0x84] sm:$0xf] %vm957, %v862
  %992 = vst.msk [vmem:[%s3 + $0x88] sm:$0xf] %vm957, %v863
  %993 = vst.msk [vmem:[%s3 + $0x8c] sm:$0xf] %vm957, %v864
  %994 = vst.msk [vmem:[%s3 + $0x90] sm:$0xf] %vm957, %v865
  %995 = vst.msk [vmem:[%s3 + $0x94] sm:$0xf] %vm957, %v866
  %996 = vst.msk [vmem:[%s3 + $0x98] sm:$0xf] %vm957, %v867
  %997 = vst.msk [vmem:[%s3 + $0x9c] sm:$0xf] %vm957, %v868
  %998 = vst.msk [vmem:[%s3 + $0xa0] sm:$0xf] %vm957, %v869
  %999 = vst.msk [vmem:[%s3 + $0xa4] sm:$0xf] %vm957, %v870
  %1000 = vst.msk [vmem:[%s3 + $0xa8] sm:$0xf] %vm957, %v871
  %1001 = vst.msk [vmem:[%s3 + $0xac] sm:$0xf] %vm957, %v872
  %1002 = vst.msk [vmem:[%s3 + $0xb0] sm:$0xf] %vm957, %v873
  %1003 = vst.msk [vmem:[%s3 + $0xb4] sm:$0xf] %vm957, %v874
  %1004 = vst.msk [vmem:[%s3 + $0xb8] sm:$0xf] %vm957, %v875
  %1005 = vst.msk [vmem:[%s3 + $0xbc] sm:$0xf] %vm957, %v876
  %1006 = vst.msk [vmem:[%s3 + $0xc0] sm:$0xf] %vm957, %v877
  %1007 = vst.msk [vmem:[%s3 + $0xc4] sm:$0xf] %vm957, %v878
  %1008 = vst.msk [vmem:[%s3 + $0xc8] sm:$0xf] %vm957, %v879
  %1009 = vst.msk [vmem:[%s3 + $0xcc] sm:$0xf] %vm957, %v880
  %1010 = vst.msk [vmem:[%s3 + $0xd0] sm:$0xf] %vm957, %v881
  %1011 = vst.msk [vmem:[%s3 + $0xd4] sm:$0xf] %vm957, %v882
  %1012 = vst.msk [vmem:[%s3 + $0xd8] sm:$0xf] %vm957, %v883
  %1013 = vst.msk [vmem:[%s3 + $0xdc] sm:$0xf] %vm957, %v884
  %1014 = vst.msk [vmem:[%s3 + $0xe0] sm:$0xf] %vm957, %v885
  %1015 = vst.msk [vmem:[%s3 + $0xe4] sm:$0xf] %vm957, %v886
  %1016 = vst.msk [vmem:[%s3 + $0xe8] sm:$0xf] %vm957, %v887
  %1017 = vst.msk [vmem:[%s3 + $0xec] sm:$0xf] %vm957, %v888
  %1018 = vst.msk [vmem:[%s3 + $0xf0] sm:$0xf] %vm957, %v889
  %1019 = vst.msk [vmem:[%s3 + $0xf4] sm:$0xf] %vm957, %v890
  %1020 = vst.msk [vmem:[%s3 + $0xf8] sm:$0xf] %vm957, %v891
  %1021 = vst.msk [vmem:[%s3 + $0xfc] sm:$0xf] %vm957, %v892
  // Predicated region
  $region14: #{bottleneck_forward.2} parent=0 // pred_check
    _
  $region15: #{bottleneck_forward.2} parent=0 // pred_check_branch
    %1023 = sbr.rel (0) target = $region17
  $region16: #{bottleneck_forward.2} parent=0 // pred_region
    _
  $region17: #{bottleneck_forward.2} parent=0 // pred_fallthru
    _
  // Predicated region
  $region18: #{bottleneck_forward.2} parent=0 // pred_check
    _
  $region19: #{bottleneck_forward.2} parent=0 // pred_check_branch
    %1025 = sbr.rel (0) target = $region21
  $region20: #{bottleneck_forward.2} parent=0 // pred_region
    _
  $region21: #{bottleneck_forward.2} parent=0 // pred_fallthru
    _

// kernel: bottleneck_forward.3
$region0: #{bottleneck_forward.3}
  #allocation0 [shape = 'u32[]', space=smem, size = 0x4, offset = 0x4, fixed_abs, tag = 'smem constant byte address 0x4 - core index']
  #allocation1 [shape = 'u32[144,128]{1,0:T(1,128)}', space=vmem, size = 0x12000, scoped, tag = 'internal scratch']
  %s0 = inlined_call_operand.vmem [shape: bf16[2,18,18,4], index: 0, kind: input, shape index: {}]
  %s1 = inlined_call_operand.vmem [shape: bf16[9,4,4], index: 1, kind: input, shape index: {}]
  %s2 = inlined_call_operand.vmem [shape: f32[1,4], index: 2, kind: input, shape index: {}]
  %s3 = inlined_call_operand.vmem [shape: bf16[4,16], index: 3, kind: input, shape index: {}]
  %s4 = inlined_call_operand.vmem [shape: f32[1,16], index: 4, kind: input, shape index: {}]
  %s5 = inlined_call_operand.vmem [shape: bf16[2,256,4], index: 5, kind: input, shape index: {}]
  %s6 = inlined_call_operand.vmem [shape: bf16[4,16], index: 6, kind: input, shape index: {}]
  %s7 = inlined_call_operand.vmem [shape: f32[1,16], index: 7, kind: input, shape index: {}]
  %s8 = inlined_call_operand.vmem [shape: f32[2,256,16], index: 8, kind: output, shape index: {}]
  %s9 = sld [smem:[#allocation0]]
  $region65: #{bottleneck_forward.3} parent=0
    _
  %s11 = ssub.s32 1, %s9
  %s12 = scalar_select 0, %s11, %s9
  loop: start=0, step=1, limit=4
  $region2: #{bottleneck_forward.3} parent=0 // loop_pre_header
    _
  $region3: #{bottleneck_forward.3} parent=0 // loop_header
    %s14 = sphi 0, %s18
    %p15 = scmp.ge.s32.totalorder %s14, 4
    %s24 = sphi 0, %s26
    %s27 = sphi 0, %s24
    %s28 = sphi 0, %s27
    %s44 = sphi 0, %s28
    %s48 = sphi 0, %s48
    %s50 = sphi 0, %s48
    %s51 = sphi 0, %s50
    %s65 = sphi 0, %s51
    %s69 = sphi 0, %s69
    %s71 = sphi 0, %s69
    %s72 = sphi 0, %s71
    %s86 = sphi 0, %s72
    %s90 = sphi 0, %s90
    %s92 = sphi 0, %s90
    %s93 = sphi 0, %s92
    %s107 = sphi 0, %s93
    %s111 = sphi 0, %s111
    %s113 = sphi 0, %s111
    %s114 = sphi 0, %s113
    %s128 = sphi 0, %s114
    %s134 = sphi 0, %s136
    %s137 = sphi 0, %s134
    %s138 = sphi 0, %s137
    %s154 = sphi 0, %s138
    %s158 = sphi 0, %s158
    %s160 = sphi 0, %s158
    %s161 = sphi 0, %s160
    %s175 = sphi 0, %s161
    %s179 = sphi 0, %s179
    %s181 = sphi 0, %s179
    %s182 = sphi 0, %s181
    %s196 = sphi 0, %s182
    %s202 = sphi 0, %s204
    %s205 = sphi 0, %s202
    %s206 = sphi 0, %s205
    %s222 = sphi 0, %s206
  $region4: #{bottleneck_forward.3} parent=0 // loop_header_branch
    %17 = sbr.rel (%p15) target = $region8
  $region5: #{bottleneck_forward.3} parent=0 // loop_body
    %s19 = ssub.s32 %s14, 1
    %s20 = ssub.s32 %s14, 2
    %s21 = sadd.s32 %s14, 1
    %s22 = ssub.s32 %s14, %s21
    %p23 = scmp.eq.s32.totalorder %s22, 0
    %s25 = sadd.s32 %s24, 1
    %s26 = scalar_select %p23, %s24, %s25
    %p29 = pneg %p23
    %p30 = scmp.eq.s32.totalorder %s14, 1
    %p31 = por %p29, %p30
    %p32 = scmp.ne.s32.totalorder %s24, %s27
    %p33 = scmp.eq.s32.totalorder %s14, 0
    %p34 = por %p32, %p33
    %p35 = scmp.ne.s32.totalorder %s24, %s27
    %p36 = scmp.eq.s32.totalorder %s19, 1
    %p37 = por %p35, %p36
    %p38 = scmp.ne.s32.totalorder %s27, %s28
    %p39 = scmp.eq.s32.totalorder %s19, 0
    %p40 = por %p38, %p39
    %p41 = scmp.ne.s32.totalorder %s27, %s28
    %p42 = scmp.eq.s32.totalorder %s20, 1
    %p43 = por %p41, %p42
    %p45 = scmp.ne.s32.totalorder %s28, %s44
    %p46 = scmp.eq.s32.totalorder %s20, 0
    %p47 = por %p45, %p46
    %s49 = sadd.s32 %s48, 1
    %p52 = scmp.eq.s32.totalorder %s14, 1
    %p53 = scmp.ne.s32.totalorder %s48, %s50
    %p54 = scmp.eq.s32.totalorder %s14, 0
    %p55 = por %p53, %p54
    %p56 = scmp.ne.s32.totalorder %s48, %s50
    %p57 = scmp.eq.s32.totalorder %s19, 1
    %p58 = por %p56, %p57
    %p59 = scmp.ne.s32.totalorder %s50, %s51
    %p60 = scmp.eq.s32.totalorder %s19, 0
    %p61 = por %p59, %p60
    %p62 = scmp.ne.s32.totalorder %s50, %s51
    %p63 = scmp.eq.s32.totalorder %s20, 1
    %p64 = por %p62, %p63
    %p66 = scmp.ne.s32.totalorder %s51, %s65
    %p67 = scmp.eq.s32.totalorder %s20, 0
    %p68 = por %p66, %p67
    %s70 = sadd.s32 %s69, 1
    %p73 = scmp.eq.s32.totalorder %s14, 1
    %p74 = scmp.ne.s32.totalorder %s69, %s71
    %p75 = scmp.eq.s32.totalorder %s14, 0
    %p76 = por %p74, %p75
    %p77 = scmp.ne.s32.totalorder %s69, %s71
    %p78 = scmp.eq.s32.totalorder %s19, 1
    %p79 = por %p77, %p78
    %p80 = scmp.ne.s32.totalorder %s71, %s72
    %p81 = scmp.eq.s32.totalorder %s19, 0
    %p82 = por %p80, %p81
    %p83 = scmp.ne.s32.totalorder %s71, %s72
    %p84 = scmp.eq.s32.totalorder %s20, 1
    %p85 = por %p83, %p84
    %p87 = scmp.ne.s32.totalorder %s72, %s86
    %p88 = scmp.eq.s32.totalorder %s20, 0
    %p89 = por %p87, %p88
    %s91 = sadd.s32 %s90, 1
    %p94 = scmp.eq.s32.totalorder %s14, 1
    %p95 = scmp.ne.s32.totalorder %s90, %s92
    %p96 = scmp.eq.s32.totalorder %s14, 0
    %p97 = por %p95, %p96
    %p98 = scmp.ne.s32.totalorder %s90, %s92
    %p99 = scmp.eq.s32.totalorder %s19, 1
    %p100 = por %p98, %p99
    %p101 = scmp.ne.s32.totalorder %s92, %s93
    %p102 = scmp.eq.s32.totalorder %s19, 0
    %p103 = por %p101, %p102
    %p104 = scmp.ne.s32.totalorder %s92, %s93
    %p105 = scmp.eq.s32.totalorder %s20, 1
    %p106 = por %p104, %p105
    %p108 = scmp.ne.s32.totalorder %s93, %s107
    %p109 = scmp.eq.s32.totalorder %s20, 0
    %p110 = por %p108, %p109
    %s112 = sadd.s32 %s111, 1
    %p115 = scmp.eq.s32.totalorder %s14, 1
    %p116 = scmp.ne.s32.totalorder %s111, %s113
    %p117 = scmp.eq.s32.totalorder %s14, 0
    %p118 = por %p116, %p117
    %p119 = scmp.ne.s32.totalorder %s111, %s113
    %p120 = scmp.eq.s32.totalorder %s19, 1
    %p121 = por %p119, %p120
    %p122 = scmp.ne.s32.totalorder %s113, %s114
    %p123 = scmp.eq.s32.totalorder %s19, 0
    %p124 = por %p122, %p123
    %p125 = scmp.ne.s32.totalorder %s113, %s114
    %p126 = scmp.eq.s32.totalorder %s20, 1
    %p127 = por %p125, %p126
    %p129 = scmp.ne.s32.totalorder %s114, %s128
    %p130 = scmp.eq.s32.totalorder %s20, 0
    %p131 = por %p129, %p130
    %s132 = ssub.s32 %s14, %s21
    %p133 = scmp.eq.s32.totalorder %s132, 0
    %s135 = sadd.s32 %s134, 1
    %s136 = scalar_select %p133, %s134, %s135
    %p139 = pneg %p133
    %p140 = scmp.eq.s32.totalorder %s14, 1
    %p141 = por %p139, %p140
    %p142 = scmp.ne.s32.totalorder %s134, %s137
    %p143 = scmp.eq.s32.totalorder %s14, 0
    %p144 = por %p142, %p143
    %p145 = scmp.ne.s32.totalorder %s134, %s137
    %p146 = scmp.eq.s32.totalorder %s19, 1
    %p147 = por %p145, %p146
    %p148 = scmp.ne.s32.totalorder %s137, %s138
    %p149 = scmp.eq.s32.totalorder %s19, 0
    %p150 = por %p148, %p149
    %p151 = scmp.ne.s32.totalorder %s137, %s138
    %p152 = scmp.eq.s32.totalorder %s20, 1
    %p153 = por %p151, %p152
    %p155 = scmp.ne.s32.totalorder %s138, %s154
    %p156 = scmp.eq.s32.totalorder %s20, 0
    %p157 = por %p155, %p156
    %s159 = sadd.s32 %s158, 1
    %p162 = scmp.eq.s32.totalorder %s14, 1
    %p163 = scmp.ne.s32.totalorder %s158, %s160
    %p164 = scmp.eq.s32.totalorder %s14, 0
    %p165 = por %p163, %p164
    %p166 = scmp.ne.s32.totalorder %s158, %s160
    %p167 = scmp.eq.s32.totalorder %s19, 1
    %p168 = por %p166, %p167
    %p169 = scmp.ne.s32.totalorder %s160, %s161
    %p170 = scmp.eq.s32.totalorder %s19, 0
    %p171 = por %p169, %p170
    %p172 = scmp.ne.s32.totalorder %s160, %s161
    %p173 = scmp.eq.s32.totalorder %s20, 1
    %p174 = por %p172, %p173
    %p176 = scmp.ne.s32.totalorder %s161, %s175
    %p177 = scmp.eq.s32.totalorder %s20, 0
    %p178 = por %p176, %p177
    %s180 = sadd.s32 %s179, 1
    %p183 = scmp.eq.s32.totalorder %s14, 1
    %p184 = scmp.ne.s32.totalorder %s179, %s181
    %p185 = scmp.eq.s32.totalorder %s14, 0
    %p186 = por %p184, %p185
    %p187 = scmp.ne.s32.totalorder %s179, %s181
    %p188 = scmp.eq.s32.totalorder %s19, 1
    %p189 = por %p187, %p188
    %p190 = scmp.ne.s32.totalorder %s181, %s182
    %p191 = scmp.eq.s32.totalorder %s19, 0
    %p192 = por %p190, %p191
    %p193 = scmp.ne.s32.totalorder %s181, %s182
    %p194 = scmp.eq.s32.totalorder %s20, 1
    %p195 = por %p193, %p194
    %p197 = scmp.ne.s32.totalorder %s182, %s196
    %p198 = scmp.eq.s32.totalorder %s20, 0
    %p199 = por %p197, %p198
    %s200 = ssub.s32 %s14, %s21
    %p201 = scmp.eq.s32.totalorder %s200, 0
    %s203 = sadd.s32 %s202, 1
    %s204 = scalar_select %p201, %s202, %s203
    %p207 = pneg %p201
    %p208 = scmp.eq.s32.totalorder %s14, 1
    %p209 = por %p207, %p208
    %p210 = scmp.ne.s32.totalorder %s202, %s205
    %p211 = scmp.eq.s32.totalorder %s14, 0
    %p212 = por %p210, %p211
    %p213 = scmp.ne.s32.totalorder %s202, %s205
    %p214 = scmp.eq.s32.totalorder %s19, 1
    %p215 = por %p213, %p214
    %p216 = scmp.ne.s32.totalorder %s205, %s206
    %p217 = scmp.eq.s32.totalorder %s19, 0
    %p218 = por %p216, %p217
    %p219 = scmp.ne.s32.totalorder %s205, %s206
    %p220 = scmp.eq.s32.totalorder %s20, 1
    %p221 = por %p219, %p220
    %p223 = scmp.ne.s32.totalorder %s206, %s222
    %p224 = scmp.eq.s32.totalorder %s20, 0
    %p225 = por %p223, %p224
    %p226 = scmp.le.s32.totalorder 1, %s14
    %p227 = scmp.lt.s32.totalorder %s14, 3
    %p228 = pnand %p226, %p227
    %p229 = pneg %p228
    // Predicated region
    $region9: #{bottleneck_forward.3} parent=5 // pred_check
      _
    $region10: #{bottleneck_forward.3} parent=5 // pred_check_branch
      %231 = sbr.rel (%p228) target = $region12
    $region11: #{bottleneck_forward.3} parent=5 // pred_region
      %s232 = ssub.s32 %s14, 1
      // Predicated region
      $region13: #{bottleneck_forward.3} parent=11 // pred_check
        %p233 = pneg %p61
      $region14: #{bottleneck_forward.3} parent=11 // pred_check_branch
        %235 = sbr.rel (%p233) target = $region16
      $region15: #{bottleneck_forward.3} parent=11 // pred_region
        _
      $region16: #{bottleneck_forward.3} parent=11 // pred_fallthru
        _
      // Predicated region
      $region17: #{bottleneck_forward.3} parent=11 // pred_check
        %p236 = pneg %p82
      $region18: #{bottleneck_forward.3} parent=11 // pred_check_branch
        %238 = sbr.rel (%p236) target = $region20
      $region19: #{bottleneck_forward.3} parent=11 // pred_region
        _
      $region20: #{bottleneck_forward.3} parent=11 // pred_fallthru
        _
      // Predicated region
      $region21: #{bottleneck_forward.3} parent=11 // pred_check
        %p239 = pneg %p103
      $region22: #{bottleneck_forward.3} parent=11 // pred_check_branch
        %241 = sbr.rel (%p239) target = $region24
      $region23: #{bottleneck_forward.3} parent=11 // pred_region
        _
      $region24: #{bottleneck_forward.3} parent=11 // pred_fallthru
        _
      // Predicated region
      $region25: #{bottleneck_forward.3} parent=11 // pred_check
        %p242 = pneg %p124
      $region26: #{bottleneck_forward.3} parent=11 // pred_check_branch
        %244 = sbr.rel (%p242) target = $region28
      $region27: #{bottleneck_forward.3} parent=11 // pred_region
        _
      $region28: #{bottleneck_forward.3} parent=11 // pred_fallthru
        _
      // Predicated region
      $region29: #{bottleneck_forward.3} parent=11 // pred_check
        %p245 = pneg %p171
      $region30: #{bottleneck_forward.3} parent=11 // pred_check_branch
        %247 = sbr.rel (%p245) target = $region32
      $region31: #{bottleneck_forward.3} parent=11 // pred_region
        _
      $region32: #{bottleneck_forward.3} parent=11 // pred_fallthru
        _
      // Predicated region
      $region33: #{bottleneck_forward.3} parent=11 // pred_check
        %p248 = pneg %p192
      $region34: #{bottleneck_forward.3} parent=11 // pred_check_branch
        %250 = sbr.rel (%p248) target = $region36
      $region35: #{bottleneck_forward.3} parent=11 // pred_region
        _
      $region36: #{bottleneck_forward.3} parent=11 // pred_fallthru
        _
    $region12: #{bottleneck_forward.3} parent=5 // pred_fallthru
      _
    %p251 = scmp.lt.s32.totalorder %s14, 2
    // Predicated region
    $region37: #{bottleneck_forward.3} parent=5 // pred_check
      %p252 = pneg %p251
    $region38: #{bottleneck_forward.3} parent=5 // pred_check_branch
      %254 = sbr.rel (%p252) target = $region40
    $region39: #{bottleneck_forward.3} parent=5 // pred_region
      // Predicated region
      $region41: #{bottleneck_forward.3} parent=39 // pred_check
        %p255 = pneg %p34
      $region42: #{bottleneck_forward.3} parent=39 // pred_check_branch
        %257 = sbr.rel (%p255) target = $region44
      $region43: #{bottleneck_forward.3} parent=39 // pred_region
        %p258 = scmp.lt.s32.totalorder %s14, 1
        %s259 = scalar_select %p258, %s14, 1
        %s260 = smul.addr %s259, 54
        %s261 = smul.addr %s260, 4
        %s262 = scalar_lea.vmem %s0, %s261
      $region44: #{bottleneck_forward.3} parent=39 // pred_fallthru
        _
      // Predicated region
      $region45: #{bottleneck_forward.3} parent=39 // pred_check
        %p263 = pneg %p144
      $region46: #{bottleneck_forward.3} parent=39 // pred_check_branch
        %265 = sbr.rel (%p263) target = $region48
      $region47: #{bottleneck_forward.3} parent=39 // pred_region
        %p266 = scmp.lt.s32.totalorder %s14, 1
        %s267 = scalar_select %p266, %s14, 1
        %s268 = smul.addr %s267, 32
        %s269 = smul.addr %s268, 4
        %s270 = scalar_lea.vmem %s5, %s269
      $region48: #{bottleneck_forward.3} parent=39 // pred_fallthru
        _
    $region40: #{bottleneck_forward.3} parent=5 // pred_fallthru
      _
    %p271 = scmp.le.s32.totalorder 1, %s14
    %p272 = scmp.lt.s32.totalorder %s14, 3
    %p273 = pnand %p271, %p272
    %p274 = pneg %p273
    // Predicated region
    $region49: #{bottleneck_forward.3} parent=5 // pred_check
      _
    $region50: #{bottleneck_forward.3} parent=5 // pred_check_branch
      %276 = sbr.rel (%p273) target = $region52
    $region51: #{bottleneck_forward.3} parent=5 // pred_region
      %s277 = ssub.s32 %s14, 1
      %p278 = scmp.lt.s32.totalorder %s19, 1
      %s279 = scalar_select %p278, %s19, 1
      %s280 = smul.addr %s279, 54
      %s281 = smul.addr %s280, 4
      %s282 = scalar_lea.vmem %s0, %s281
      %p283 = pneg %p40
      %p284 = pneg %p37
      %p285 = pneg %p61
      %p286 = pneg %p58
      %p287 = pneg %p82
      %p288 = pneg %p79
      %p289 = pneg %p103
      %p290 = pneg %p100
      %p291 = pneg %p124
      %p292 = pneg %p121
      %p293 = scmp.lt.s32.totalorder %s19, 1
      %s294 = scalar_select %p293, %s19, 1
      %s295 = smul.addr %s294, 32
      %s296 = smul.addr %s295, 4
      %s297 = scalar_lea.vmem %s5, %s296
      %p298 = pneg %p150
      %p299 = pneg %p147
      %p300 = pneg %p171
      %p301 = pneg %p168
      %p302 = pneg %p192
      %p303 = pneg %p189
      %p304 = pneg %p218
      %p305 = pneg %p215
      %p306 = scmp.lt.s32.totalorder %s19, 1
      %s307 = scalar_select %p306, %s19, 1
      %s308 = smul.addr %s307, 32
      %s309 = smul.addr %s308, 8
      %s310 = scalar_lea.vmem %s8, %s309
      %p311 = scmp.lt.s32.totalorder %s19, 1
      %s312 = scalar_select %p311, %s19, 1
      %s313 = smul.addr %s312, 54
      %s314 = smul.addr %s313, 4
      %s315 = scalar_lea.vmem %s0, %s314
      %p316 = scmp.lt.s32.totalorder %s19, 1
      %s317 = scalar_select %p316, %s19, 1
      %s318 = smul.addr %s317, 32
      %s319 = smul.addr %s318, 4
      %s320 = scalar_lea.vmem %s5, %s319
      %p321 = scmp.lt.s32.totalorder %s19, 1
      %s322 = scalar_select %p321, %s19, 1
      %s323 = smul.addr %s322, 32
      %s324 = smul.addr %s323, 8
      %s325 = scalar_lea.vmem %s8, %s324
      %v327 = vld [vmem:[%s315] sm:$0xf]
      %v328 = vld [vmem:[%s315 + $0x4] sm:$0xf]
      %v329 = vld [vmem:[%s315 + $0xc] sm:$0xf]
      %v330 = vld [vmem:[%s315 + $0x10] sm:$0xf]
      %v331 = vld [vmem:[%s315 + $0x18] sm:$0xf]
      %v332 = vld [vmem:[%s315 + $0x1c] sm:$0xf]
      %v333 = vld [vmem:[%s315 + $0x24] sm:$0xf]
      %v334 = vld [vmem:[%s315 + $0x28] sm:$0xf]
      %v335 = vld [vmem:[%s315 + $0x30] sm:$0xf]
      %v336 = vld [vmem:[%s315 + $0x34] sm:$0xf]
      %v337 = vld [vmem:[%s315 + $0x3c] sm:$0xf]
      %v338 = vld [vmem:[%s315 + $0x40] sm:$0xf]
      %v339 = vld [vmem:[%s315 + $0x48] sm:$0xf]
      %v340 = vld [vmem:[%s315 + $0x4c] sm:$0xf]
      %v341 = vld [vmem:[%s315 + $0x54] sm:$0xf]
      %v342 = vld [vmem:[%s315 + $0x58] sm:$0xf]
      %v343 = vld [vmem:[%s315 + $0x60] sm:$0xf]
      %v344 = vld [vmem:[%s315 + $0x64] sm:$0xf]
      %v345 = vld [vmem:[%s315 + $0x6c] sm:$0xf]
      %v346 = vld [vmem:[%s315 + $0x70] sm:$0xf]
      %v347 = vld [vmem:[%s315 + $0x78] sm:$0xf]
      %v348 = vld [vmem:[%s315 + $0x7c] sm:$0xf]
      %v349 = vld [vmem:[%s315 + $0x84] sm:$0xf]
      %v350 = vld [vmem:[%s315 + $0x88] sm:$0xf]
      %v351 = vld [vmem:[%s315 + $0x90] sm:$0xf]
      %v352 = vld [vmem:[%s315 + $0x94] sm:$0xf]
      %v353 = vld [vmem:[%s315 + $0x9c] sm:$0xf]
      %v354 = vld [vmem:[%s315 + $0xa0] sm:$0xf]
      %v355 = vld [vmem:[%s315 + $0xa8] sm:$0xf]
      %v356 = vld [vmem:[%s315 + $0xac] sm:$0xf]
      %v357 = vld [vmem:[%s315 + $0xb4] sm:$0xf]
      %v358 = vld [vmem:[%s315 + $0xb8] sm:$0xf]
      %v359 = vld [vmem:[%s1] sm:$0x3]
      %v360 = vld [vmem:[%s315 + $0x8] sm:$0x1]
      %v361 = vld [vmem:[%s315 + $0x14] sm:$0x1]
      %v362 = vld [vmem:[%s315 + $0x20] sm:$0x1]
      %v363 = vld [vmem:[%s315 + $0x2c] sm:$0x1]
      %v364 = vld [vmem:[%s315 + $0x38] sm:$0x1]
      %v365 = vld [vmem:[%s315 + $0x44] sm:$0x1]
      %v366 = vld [vmem:[%s315 + $0x50] sm:$0x1]
      %v367 = vld [vmem:[%s315 + $0x5c] sm:$0x1]
      %v368 = vld [vmem:[%s315 + $0x68] sm:$0x1]
      %v369 = vld [vmem:[%s315 + $0x74] sm:$0x1]
      %v370 = vld [vmem:[%s315 + $0x80] sm:$0x1]
      %v371 = vld [vmem:[%s315 + $0x8c] sm:$0x1]
      %v372 = vld [vmem:[%s315 + $0x98] sm:$0x1]
      %v373 = vld [vmem:[%s315 + $0xa4] sm:$0x1]
      %v374 = vld [vmem:[%s315 + $0xb0] sm:$0x1]
      %v375 = vld [vmem:[%s315 + $0xbc] sm:$0x1]
      %vm376 = vsmask.f32 3328
      %vm377 = vsmask.f32 7440
      %vm378 = vmor %vm376, %vm377
      %v380 = vshrl.u32 %v327, 16
      %v382 = vrot.slane %v380, 4
      %v383 = vshll.u32 %v327, 16
      %v385 = vrot.slane %v383, 5
      %v386 = vor.u32 %v382, %v385
      %v387 = vrot.slane %v386, 4
      %v389 = vshll.u32 %v328, 16
      %v391 = vrot.slane %v389, 5
      %v392 = vsel %vm378, %v387, %v391
      %v393 = vshrl.u32 %v328, 16
      %v395 = vrot.slane %v393, 4
      %v396 = vor.u32 %v395, %v391
      %v397 = vrot.slane %v396, 4
      %v399 = vshll.u32 %v360, 16
      %v401 = vrot.slane %v399, 5
      %v402 = vsel %vm378, %v397, %v401
      %v404 = vshrl.u32 %v329, 16
      %v406 = vrot.slane %v404, 4
      %v407 = vshll.u32 %v329, 16
      %v409 = vrot.slane %v407, 5
      %v410 = vor.u32 %v406, %v409
      %v411 = vrot.slane %v410, 4
      %v413 = vshll.u32 %v330, 16
      %v415 = vrot.slane %v413, 5
      %v416 = vsel %vm378, %v411, %v415
      %v417 = vshrl.u32 %v330, 16
      %v419 = vrot.slane %v417, 4
      %v420 = vor.u32 %v419, %v415
      %v421 = vrot.slane %v420, 4
      %v423 = vshll.u32 %v361, 16
      %v425 = vrot.slane %v423, 5
      %v426 = vsel %vm378, %v421, %v425
      %v428 = vshrl.u32 %v331, 16
      %v430 = vrot.slane %v428, 4
      %v431 = vshll.u32 %v331, 16
      %v433 = vrot.slane %v431, 5
      %v434 = vor.u32 %v430, %v433
      %v435 = vrot.slane %v434, 4
      %v437 = vshll.u32 %v332, 16
      %v439 = vrot.slane %v437, 5
      %v440 = vsel %vm378, %v435, %v439
      %v441 = vshrl.u32 %v332, 16
      %v443 = vrot.slane %v441, 4
      %v444 = vor.u32 %v443, %v439
      %v445 = vrot.slane %v444, 4
      %v447 = vshll.u32 %v362, 16
      %v449 = vrot.slane %v447, 5
      %v450 = vsel %vm378, %v445, %v449
      %v452 = vshrl.u32 %v333, 16
      %v454 = vrot.slane %v452, 4
      %v455 = vshll.u32 %v333, 16
      %v457 = vrot.slane %v455, 5
      %v458 = vor.u32 %v454, %v457
      %v459 = vrot.slane %v458, 4
      %v461 = vshll.u32 %v334, 16
      %v463 = vrot.slane %v461, 5
      %v464 = vsel %vm378, %v459, %v463
      %v465 = vshrl.u32 %v334, 16
      %v467 = vrot.slane %v465, 4
      %v468 = vor.u32 %v467, %v463
      %v469 = vrot.slane %v468, 4
      %v471 = vshll.u32 %v363, 16
      %v473 = vrot.slane %v471, 5
      %v474 = vsel %vm378, %v469, %v473
      %v476 = vshrl.u32 %v335, 16
      %v478 = vrot.slane %v476, 4
      %v479 = vshll.u32 %v335, 16
      %v481 = vrot.slane %v479, 5
      %v482 = vor.u32 %v478, %v481
      %v483 = vrot.slane %v482, 4
      %v485 = vshll.u32 %v336, 16
      %v487 = vrot.slane %v485, 5
      %v488 = vsel %vm378, %v483, %v487
      %v489 = vshrl.u32 %v336, 16
      %v491 = vrot.slane %v489, 4
      %v492 = vor.u32 %v491, %v487
      %v493 = vrot.slane %v492, 4
      %v495 = vshll.u32 %v364, 16
      %v497 = vrot.slane %v495, 5
      %v498 = vsel %vm378, %v493, %v497
      %v500 = vshrl.u32 %v337, 16
      %v502 = vrot.slane %v500, 4
      %v503 = vshll.u32 %v337, 16
      %v505 = vrot.slane %v503, 5
      %v506 = vor.u32 %v502, %v505
      %v507 = vrot.slane %v506, 4
      %v509 = vshll.u32 %v338, 16
      %v511 = vrot.slane %v509, 5
      %v512 = vsel %vm378, %v507, %v511
      %v513 = vshrl.u32 %v338, 16
      %v515 = vrot.slane %v513, 4
      %v516 = vor.u32 %v515, %v511
      %v517 = vrot.slane %v516, 4
      %v519 = vshll.u32 %v365, 16
      %v521 = vrot.slane %v519, 5
      %v522 = vsel %vm378, %v517, %v521
      %v524 = vshrl.u32 %v339, 16
      %v526 = vrot.slane %v524, 4
      %v527 = vshll.u32 %v339, 16
      %v529 = vrot.slane %v527, 5
      %v530 = vor.u32 %v526, %v529
      %v531 = vrot.slane %v530, 4
      %v533 = vshll.u32 %v340, 16
      %v535 = vrot.slane %v533, 5
      %v536 = vsel %vm378, %v531, %v535
      %v537 = vshrl.u32 %v340, 16
      %v539 = vrot.slane %v537, 4
      %v540 = vor.u32 %v539, %v535
      %v541 = vrot.slane %v540, 4
      %v543 = vshll.u32 %v366, 16
      %v545 = vrot.slane %v543, 5
      %v546 = vsel %vm378, %v541, %v545
      %v548 = vshrl.u32 %v341, 16
      %v550 = vrot.slane %v548, 4
      %v551 = vshll.u32 %v341, 16
      %v553 = vrot.slane %v551, 5
      %v554 = vor.u32 %v550, %v553
      %v555 = vrot.slane %v554, 4
      %v557 = vshll.u32 %v342, 16
      %v559 = vrot.slane %v557, 5
      %v560 = vsel %vm378, %v555, %v559
      %v561 = vshrl.u32 %v342, 16
      %v563 = vrot.slane %v561, 4
      %v564 = vor.u32 %v563, %v559
      %v565 = vrot.slane %v564, 4
      %v567 = vshll.u32 %v367, 16
      %v569 = vrot.slane %v567, 5
      %v570 = vsel %vm378, %v565, %v569
      %v572 = vshrl.u32 %v343, 16
      %v574 = vrot.slane %v572, 4
      %v575 = vshll.u32 %v343, 16
      %v577 = vrot.slane %v575, 5
      %v578 = vor.u32 %v574, %v577
      %v579 = vrot.slane %v578, 4
      %v581 = vshll.u32 %v344, 16
      %v583 = vrot.slane %v581, 5
      %v584 = vsel %vm378, %v579, %v583
      %v585 = vshrl.u32 %v344, 16
      %v587 = vrot.slane %v585, 4
      %v588 = vor.u32 %v587, %v583
      %v589 = vrot.slane %v588, 4
      %v591 = vshll.u32 %v368, 16
      %v593 = vrot.slane %v591, 5
      %v594 = vsel %vm378, %v589, %v593
      %v596 = vshrl.u32 %v345, 16
      %v598 = vrot.slane %v596, 4
      %v599 = vshll.u32 %v345, 16
      %v601 = vrot.slane %v599, 5
      %v602 = vor.u32 %v598, %v601
      %v603 = vrot.slane %v602, 4
      %v605 = vshll.u32 %v346, 16
      %v607 = vrot.slane %v605, 5
      %v608 = vsel %vm378, %v603, %v607
      %v609 = vshrl.u32 %v346, 16
      %v611 = vrot.slane %v609, 4
      %v612 = vor.u32 %v611, %v607
      %v613 = vrot.slane %v612, 4
      %v615 = vshll.u32 %v369, 16
      %v617 = vrot.slane %v615, 5
      %v618 = vsel %vm378, %v613, %v617
      %v620 = vshrl.u32 %v347, 16
      %v622 = vrot.slane %v620, 4
      %v623 = vshll.u32 %v347, 16
      %v625 = vrot.slane %v623, 5
      %v626 = vor.u32 %v622, %v625
      %v627 = vrot.slane %v626, 4
      %v629 = vshll.u32 %v348, 16
      %v631 = vrot.slane %v629, 5
      %v632 = vsel %vm378, %v627, %v631
      %v633 = vshrl.u32 %v348, 16
      %v635 = vrot.slane %v633, 4
      %v636 = vor.u32 %v635, %v631
      %v637 = vrot.slane %v636, 4
      %v639 = vshll.u32 %v370, 16
      %v641 = vrot.slane %v639, 5
      %v642 = vsel %vm378, %v637, %v641
      %v644 = vshrl.u32 %v349, 16
      %v646 = vrot.slane %v644, 4
      %v647 = vshll.u32 %v349, 16
      %v649 = vrot.slane %v647, 5
      %v650 = vor.u32 %v646, %v649
      %v651 = vrot.slane %v650, 4
      %v653 = vshll.u32 %v350, 16
      %v655 = vrot.slane %v653, 5
      %v656 = vsel %vm378, %v651, %v655
      %v657 = vshrl.u32 %v350, 16
      %v659 = vrot.slane %v657, 4
      %v660 = vor.u32 %v659, %v655
      %v661 = vrot.slane %v660, 4
      %v663 = vshll.u32 %v371, 16
      %v665 = vrot.slane %v663, 5
      %v666 = vsel %vm378, %v661, %v665
      %v668 = vshrl.u32 %v351, 16
      %v670 = vrot.slane %v668, 4
      %v671 = vshll.u32 %v351, 16
      %v673 = vrot.slane %v671, 5
      %v674 = vor.u32 %v670, %v673
      %v675 = vrot.slane %v674, 4
      %v677 = vshll.u32 %v352, 16
      %v679 = vrot.slane %v677, 5
      %v680 = vsel %vm378, %v675, %v679
      %v681 = vshrl.u32 %v352, 16
      %v683 = vrot.slane %v681, 4
      %v684 = vor.u32 %v683, %v679
      %v685 = vrot.slane %v684, 4
      %v687 = vshll.u32 %v372, 16
      %v689 = vrot.slane %v687, 5
      %v690 = vsel %vm378, %v685, %v689
      %v692 = vshrl.u32 %v353, 16
      %v694 = vrot.slane %v692, 4
      %v695 = vshll.u32 %v353, 16
      %v697 = vrot.slane %v695, 5
      %v698 = vor.u32 %v694, %v697
      %v699 = vrot.slane %v698, 4
      %v701 = vshll.u32 %v354, 16
      %v703 = vrot.slane %v701, 5
      %v704 = vsel %vm378, %v699, %v703
      %v705 = vshrl.u32 %v354, 16
      %v707 = vrot.slane %v705, 4
      %v708 = vor.u32 %v707, %v703
      %v709 = vrot.slane %v708, 4
      %v711 = vshll.u32 %v373, 16
      %v713 = vrot.slane %v711, 5
      %v714 = vsel %vm378, %v709, %v713
      %v716 = vshrl.u32 %v355, 16
      %v718 = vrot.slane %v716, 4
      %v719 = vshll.u32 %v355, 16
      %v721 = vrot.slane %v719, 5
      %v722 = vor.u32 %v718, %v721
      %v723 = vrot.slane %v722, 4
      %v725 = vshll.u32 %v356, 16
      %v727 = vrot.slane %v725, 5
      %v728 = vsel %vm378, %v723, %v727
      %v729 = vshrl.u32 %v356, 16
      %v731 = vrot.slane %v729, 4
      %v732 = vor.u32 %v731, %v727
      %v733 = vrot.slane %v732, 4
      %v735 = vshll.u32 %v374, 16
      %v737 = vrot.slane %v735, 5
      %v738 = vsel %vm378, %v733, %v737
      %v740 = vshrl.u32 %v357, 16
      %v742 = vrot.slane %v740, 4
      %v743 = vshll.u32 %v357, 16
      %v745 = vrot.slane %v743, 5
      %v746 = vor.u32 %v742, %v745
      %v747 = vrot.slane %v746, 4
      %v749 = vshll.u32 %v358, 16
      %v751 = vrot.slane %v749, 5
      %v752 = vsel %vm378, %v747, %v751
      %v753 = vshrl.u32 %v358, 16
      %v755 = vrot.slane %v753, 4
      %v756 = vor.u32 %v755, %v751
      %v757 = vrot.slane %v756, 4
      %v759 = vshll.u32 %v375, 16
      %v761 = vrot.slane %v759, 5
      %v762 = vsel %vm378, %v757, %v761
      %s763 = scalar_lea.vmem %s1, 2
      %v764 = vld [vmem:[%s763] sm:$0x3]
      %v765 = vunpack.c.l.b16 %v392
      %v766 = vunpack.c.l.b16 %v402
      %v767 = vunpack.c.l.b16 %v416
      %v768 = vunpack.c.l.b16 %v426
      %v769 = vunpack.c.l.b16 %v440
      %v770 = vunpack.c.l.b16 %v450
      %v771 = vunpack.c.l.b16 %v464
      %v772 = vunpack.c.l.b16 %v474
      %v773 = vunpack.c.l.b16 %v488
      %v774 = vunpack.c.l.b16 %v498
      %v775 = vunpack.c.l.b16 %v512
      %v776 = vunpack.c.l.b16 %v522
      %v777 = vunpack.c.l.b16 %v536
      %v778 = vunpack.c.l.b16 %v546
      %v779 = vunpack.c.l.b16 %v560
      %v780 = vunpack.c.l.b16 %v570
      %v781 = vunpack.c.l.b16 %v584
      %v782 = vunpack.c.l.b16 %v594
      %v783 = vunpack.c.l.b16 %v608
      %v784 = vunpack.c.l.b16 %v618
      %v785 = vunpack.c.l.b16 %v632
      %v786 = vunpack.c.l.b16 %v642
      %v787 = vunpack.c.l.b16 %v656
      %v788 = vunpack.c.l.b16 %v666
      %v789 = vunpack.c.l.b16 %v680
      %v790 = vunpack.c.l.b16 %v690
      %v791 = vunpack.c.l.b16 %v704
      %v792 = vunpack.c.l.b16 %v714
      %v793 = vunpack.c.l.b16 %v728
      %v794 = vunpack.c.l.b16 %v738
      %v795 = vunpack.c.l.b16 %v752
      %v796 = vunpack.c.l.b16 %v762
      %v797 = vpack.c.b16 %v766, %v765
      %v798 = vpack.c.b16 %v768, %v767
      %v799 = vpack.c.b16 %v770, %v769
      %v800 = vpack.c.b16 %v772, %v771
      %v801 = vpack.c.b16 %v774, %v773
      %v802 = vpack.c.b16 %v776, %v775
      %v803 = vpack.c.b16 %v778, %v777
      %v804 = vpack.c.b16 %v780, %v779
      %v805 = vpack.c.b16 %v782, %v781
      %v806 = vpack.c.b16 %v784, %v783
      %v807 = vpack.c.b16 %v786, %v785
      %v808 = vpack.c.b16 %v788, %v787
      %v809 = vpack.c.b16 %v790, %v789
      %v810 = vpack.c.b16 %v792, %v791
      %v811 = vpack.c.b16 %v794, %v793
      %v812 = vpack.c.b16 %v796, %v795
      %vm813 = vcmask 31744
      %v815 = vsel %vm813, %v797, 0
      %v818 = vsel %vm813, %v798, 0
      %v821 = vsel %vm813, %v799, 0
      %v824 = vsel %vm813, %v800, 0
      %v827 = vsel %vm813, %v801, 0
      %v830 = vsel %vm813, %v802, 0
      %v833 = vsel %vm813, %v803, 0
      %v836 = vsel %vm813, %v804, 0
      %v839 = vsel %vm813, %v805, 0
      %v842 = vsel %vm813, %v806, 0
      %v845 = vsel %vm813, %v807, 0
      %v848 = vsel %vm813, %v808, 0
      %v851 = vsel %vm813, %v809, 0
      %v854 = vsel %vm813, %v810, 0
      %v857 = vsel %vm813, %v811, 0
      %v860 = vsel %vm813, %v812, 0
      %vm862 = vcmask 1041408
      %v864 = vsel %vm862, %v764, 0
      %866 = vmatprep.subr.bf16.mxu0 0
      %867 = vmatpush1.bf16.msra.mxu0 0
      %868 = vmatprep.subr.bf16.mxu0 0
      %869 = vmatpush1.bf16.msra.mxu0 0
      %870 = vmatprep.subr.bf16.mxu0 0
      %871 = vmatpush1.bf16.msra.mxu0 0
      %872 = vmatprep.subr.bf16.mxu0 0
      %873 = vmatpush1.bf16.msra.mxu0 0
      %874 = vmatprep.subr.bf16.mxu0 0
      %875 = vmatpush1.bf16.msra.mxu0 0
      %876 = vmatprep.subr.bf16.mxu0 0
      %877 = vmatpush1.bf16.msra.mxu0 0
      %878 = vmatprep.subr.bf16.mxu0 0
      %879 = vmatpush1.bf16.msra.mxu0 0
      %880 = vmatprep.subr.bf16.mxu0 0
      %881 = vmatpush1.bf16.msra.mxu0 %v864
      %882 = vmatprep.subr.bf16.mxu0 0
      %883 = vmatpush2.bf16.msra.mxu0 0
      %884 = vmatprep.subr.bf16.mxu0 0
      %885 = vmatpush2.bf16.msra.mxu0 0
      %886 = vmatprep.subr.bf16.mxu0 0
      %887 = vmatpush2.bf16.msra.mxu0 0
      %888 = vmatprep.subr.bf16.mxu0 0
      %889 = vmatpush2.bf16.msra.mxu0 0
      %890 = vmatprep.subr.bf16.mxu0 0
      %891 = vmatpush2.bf16.msra.mxu0 0
      %892 = vmatprep.subr.bf16.mxu0 0
      %893 = vmatpush2.bf16.msra.mxu0 0
      %894 = vmatprep.subr.bf16.mxu0 0
      %895 = vmatpush2.bf16.msra.mxu0 0
      %896 = vmatprep.subr.bf16.mxu0 0
      %897 = vmatpush2.bf16.msra.mxu0 0
      %898 = vmatprep.mubr.bf16.mxu0 0
      %899 = vmatmul.mubr.bf16.gmra.mxu0 %v815
      %v900 = vpop.f32.mrf.mxu0
      %v901 = vadd.f32 0.0, %v900
      %v902 = vpop.f32.mrf.mxu0
      %v903 = vpop.f32.mrf.mxu0
      %v904 = vadd.f32 0.0, %v903
      %v905 = vpop.f32.mrf.mxu0
      %906 = vmatprep.mubr.bf16.mxu0 0
      %907 = vmatmul.mubr.bf16.gmra.mxu0 %v818
      %v908 = vpop.f32.mrf.mxu0
      %v909 = vadd.f32 0.0, %v908
      %v910 = vpop.f32.mrf.mxu0
      %v911 = vpop.f32.mrf.mxu0
      %v912 = vadd.f32 0.0, %v911
      %v913 = vpop.f32.mrf.mxu0
      %914 = vmatprep.mubr.bf16.mxu0 0
      %915 = vmatmul.mubr.bf16.gmra.mxu0 %v821
      %v916 = vpop.f32.mrf.mxu0
      %v917 = vadd.f32 0.0, %v916
      %v918 = vpop.f32.mrf.mxu0
      %v919 = vpop.f32.mrf.mxu0
      %v920 = vadd.f32 0.0, %v919
      %v921 = vpop.f32.mrf.mxu0
      %922 = vmatprep.mubr.bf16.mxu0 0
      %923 = vmatmul.mubr.bf16.gmra.mxu0 %v824
      %v924 = vpop.f32.mrf.mxu0
      %v925 = vadd.f32 0.0, %v924
      %v926 = vpop.f32.mrf.mxu0
      %v927 = vpop.f32.mrf.mxu0
      %v928 = vadd.f32 0.0, %v927
      %v929 = vpop.f32.mrf.mxu0
      %930 = vmatprep.mubr.bf16.mxu0 0
      %931 = vmatmul.mubr.bf16.gmra.mxu0 %v827
      %v932 = vpop.f32.mrf.mxu0
      %v933 = vadd.f32 0.0, %v932
      %v934 = vpop.f32.mrf.mxu0
      %v935 = vpop.f32.mrf.mxu0
      %v936 = vadd.f32 0.0, %v935
      %v937 = vpop.f32.mrf.mxu0
      %938 = vmatprep.mubr.bf16.mxu0 0
      %939 = vmatmul.mubr.bf16.gmra.mxu0 %v830
      %v940 = vpop.f32.mrf.mxu0
      %v941 = vadd.f32 0.0, %v940
      %v942 = vpop.f32.mrf.mxu0
      %v943 = vpop.f32.mrf.mxu0
      %v944 = vadd.f32 0.0, %v943
      %v945 = vpop.f32.mrf.mxu0
      %946 = vmatprep.mubr.bf16.mxu0 0
      %947 = vmatmul.mubr.bf16.gmra.mxu0 %v833
      %v948 = vpop.f32.mrf.mxu0
      %v949 = vadd.f32 0.0, %v948
      %v950 = vpop.f32.mrf.mxu0
      %v951 = vpop.f32.mrf.mxu0
      %v952 = vadd.f32 0.0, %v951
      %v953 = vpop.f32.mrf.mxu0
      %954 = vmatprep.mubr.bf16.mxu0 0
      %955 = vmatmul.mubr.bf16.gmra.mxu0 %v836
      %v956 = vpop.f32.mrf.mxu0
      %v957 = vadd.f32 0.0, %v956
      %v958 = vpop.f32.mrf.mxu0
      %v959 = vpop.f32.mrf.mxu0
      %v960 = vadd.f32 0.0, %v959
      %v961 = vpop.f32.mrf.mxu0
      %962 = vmatprep.mubr.bf16.mxu0 0
      %963 = vmatmul.mubr.bf16.gmra.mxu0 %v839
      %v964 = vpop.f32.mrf.mxu0
      %v965 = vadd.f32 0.0, %v964
      %v966 = vpop.f32.mrf.mxu0
      %v967 = vpop.f32.mrf.mxu0
      %v968 = vadd.f32 0.0, %v967
      %v969 = vpop.f32.mrf.mxu0
      %970 = vmatprep.mubr.bf16.mxu0 0
      %971 = vmatmul.mubr.bf16.gmra.mxu0 %v842
      %v972 = vpop.f32.mrf.mxu0
      %v973 = vadd.f32 0.0, %v972
      %v974 = vpop.f32.mrf.mxu0
      %v975 = vpop.f32.mrf.mxu0
      %v976 = vadd.f32 0.0, %v975
      %v977 = vpop.f32.mrf.mxu0
      %978 = vmatprep.mubr.bf16.mxu0 0
      %979 = vmatmul.mubr.bf16.gmra.mxu0 %v845
      %v980 = vpop.f32.mrf.mxu0
      %v981 = vadd.f32 0.0, %v980
      %v982 = vpop.f32.mrf.mxu0
      %v983 = vpop.f32.mrf.mxu0
      %v984 = vadd.f32 0.0, %v983
      %v985 = vpop.f32.mrf.mxu0
      %986 = vmatprep.mubr.bf16.mxu0 0
      %987 = vmatmul.mubr.bf16.gmra.mxu0 %v848
      %v988 = vpop.f32.mrf.mxu0
      %v989 = vadd.f32 0.0, %v988
      %v990 = vpop.f32.mrf.mxu0
      %v991 = vpop.f32.mrf.mxu0
      %v992 = vadd.f32 0.0, %v991
      %v993 = vpop.f32.mrf.mxu0
      %994 = vmatprep.mubr.bf16.mxu0 0
      %995 = vmatmul.mubr.bf16.gmra.mxu0 %v851
      %v996 = vpop.f32.mrf.mxu0
      %v997 = vadd.f32 0.0, %v996
      %v998 = vpop.f32.mrf.mxu0
      %v999 = vpop.f32.mrf.mxu0
      %v1000 = vadd.f32 0.0, %v999
      %v1001 = vpop.f32.mrf.mxu0
      %1002 = vmatprep.mubr.bf16.mxu0 0
      %1003 = vmatmul.mubr.bf16.gmra.mxu0 %v854
      %v1004 = vpop.f32.mrf.mxu0
      %v1005 = vadd.f32 0.0, %v1004
      %v1006 = vpop.f32.mrf.mxu0
      %v1007 = vpop.f32.mrf.mxu0
      %v1008 = vadd.f32 0.0, %v1007
      %v1009 = vpop.f32.mrf.mxu0
      %1010 = vmatprep.mubr.bf16.mxu0 0
      %1011 = vmatmul.mubr.bf16.gmra.mxu0 %v857
      %v1012 = vpop.f32.mrf.mxu0
      %v1013 = vadd.f32 0.0, %v1012
      %v1014 = vpop.f32.mrf.mxu0
      %v1015 = vpop.f32.mrf.mxu0
      %v1016 = vadd.f32 0.0, %v1015
      %v1017 = vpop.f32.mrf.mxu0
      %1018 = vmatprep.mubr.bf16.mxu0 0
      %1019 = vmatmul.mubr.bf16.gmra.mxu0 %v860
      %v1020 = vpop.f32.mrf.mxu0
      %v1021 = vadd.f32 0.0, %v1020
      %v1022 = vpop.f32.mrf.mxu0
      %v1023 = vpop.f32.mrf.mxu0
      %v1024 = vadd.f32 0.0, %v1023
      %v1025 = vpop.f32.mrf.mxu0
      %1026 = vdwg.mxu0
      %v1059 = vunpack.c.l.b16 %v327
      %v1060 = vunpack.c.l.b16 %v328
      %v1061 = vunpack.c.l.b16 %v329
      %v1062 = vunpack.c.l.b16 %v330
      %v1063 = vunpack.c.l.b16 %v331
      %v1064 = vunpack.c.l.b16 %v332
      %v1065 = vunpack.c.l.b16 %v333
      %v1066 = vunpack.c.l.b16 %v334
      %v1067 = vunpack.c.l.b16 %v335
      %v1068 = vunpack.c.l.b16 %v336
      %v1069 = vunpack.c.l.b16 %v337
      %v1070 = vunpack.c.l.b16 %v338
      %v1071 = vunpack.c.l.b16 %v339
      %v1072 = vunpack.c.l.b16 %v340
      %v1073 = vunpack.c.l.b16 %v341
      %v1074 = vunpack.c.l.b16 %v342
      %v1075 = vunpack.c.l.b16 %v343
      %v1076 = vunpack.c.l.b16 %v344
      %v1077 = vunpack.c.l.b16 %v345
      %v1078 = vunpack.c.l.b16 %v346
      %v1079 = vunpack.c.l.b16 %v347
      %v1080 = vunpack.c.l.b16 %v348
      %v1081 = vunpack.c.l.b16 %v349
      %v1082 = vunpack.c.l.b16 %v350
      %v1083 = vunpack.c.l.b16 %v351
      %v1084 = vunpack.c.l.b16 %v352
      %v1085 = vunpack.c.l.b16 %v353
      %v1086 = vunpack.c.l.b16 %v354
      %v1087 = vunpack.c.l.b16 %v355
      %v1088 = vunpack.c.l.b16 %v356
      %v1089 = vunpack.c.l.b16 %v357
      %v1090 = vunpack.c.l.b16 %v358
      %v1091 = vpack.c.b16 %v1060, %v1059
      %v1092 = vpack.c.b16 %v1062, %v1061
      %v1093 = vpack.c.b16 %v1064, %v1063
      %v1094 = vpack.c.b16 %v1066, %v1065
      %v1095 = vpack.c.b16 %v1068, %v1067
      %v1096 = vpack.c.b16 %v1070, %v1069
      %v1097 = vpack.c.b16 %v1072, %v1071
      %v1098 = vpack.c.b16 %v1074, %v1073
      %v1099 = vpack.c.b16 %v1076, %v1075
      %v1100 = vpack.c.b16 %v1078, %v1077
      %v1101 = vpack.c.b16 %v1080, %v1079
      %v1102 = vpack.c.b16 %v1082, %v1081
      %v1103 = vpack.c.b16 %v1084, %v1083
      %v1104 = vpack.c.b16 %v1086, %v1085
      %v1105 = vpack.c.b16 %v1088, %v1087
      %v1106 = vpack.c.b16 %v1090, %v1089
      %v1108 = vsel %vm813, %v1091, 0
      %v1111 = vsel %vm813, %v1092, 0
      %v1114 = vsel %vm813, %v1093, 0
      %v1117 = vsel %vm813, %v1094, 0
      %v1120 = vsel %vm813, %v1095, 0
      %v1123 = vsel %vm813, %v1096, 0
      %v1126 = vsel %vm813, %v1097, 0
      %v1129 = vsel %vm813, %v1098, 0
      %v1132 = vsel %vm813, %v1099, 0
      %v1135 = vsel %vm813, %v1100, 0
      %v1138 = vsel %vm813, %v1101, 0
      %v1141 = vsel %vm813, %v1102, 0
      %v1144 = vsel %vm813, %v1103, 0
      %v1147 = vsel %vm813, %v1104, 0
      %v1150 = vsel %vm813, %v1105, 0
      %v1153 = vsel %vm813, %v1106, 0
      %v1156 = vsel %vm862, %v359, 0
      %1158 = vmatprep.subr.bf16.mxu0 0
      %1159 = vmatpush1.bf16.msra.mxu0 0
      %1160 = vmatprep.subr.bf16.mxu0 0
      %1161 = vmatpush1.bf16.msra.mxu0 0
      %1162 = vmatprep.subr.bf16.mxu0 0
      %1163 = vmatpush1.bf16.msra.mxu0 0
      %1164 = vmatprep.subr.bf16.mxu0 0
      %1165 = vmatpush1.bf16.msra.mxu0 0
      %1166 = vmatprep.subr.bf16.mxu0 0
      %1167 = vmatpush1.bf16.msra.mxu0 0
      %1168 = vmatprep.subr.bf16.mxu0 0
      %1169 = vmatpush1.bf16.msra.mxu0 0
      %1170 = vmatprep.subr.bf16.mxu0 0
      %1171 = vmatpush1.bf16.msra.mxu0 0
      %1172 = vmatprep.subr.bf16.mxu0 0
      %1173 = vmatpush1.bf16.msra.mxu0 %v1156
      %1174 = vmatprep.subr.bf16.mxu0 0
      %1175 = vmatpush2.bf16.msra.mxu0 0
      %1176 = vmatprep.subr.bf16.mxu0 0
      %1177 = vmatpush2.bf16.msra.mxu0 0
      %1178 = vmatprep.subr.bf16.mxu0 0
      %1179 = vmatpush2.bf16.msra.mxu0 0
      %1180 = vmatprep.subr.bf16.mxu0 0
      %1181 = vmatpush2.bf16.msra.mxu0 0
      %1182 = vmatprep.subr.bf16.mxu0 0
      %1183 = vmatpush2.bf16.msra.mxu0 0
      %1184 = vmatprep.subr.bf16.mxu0 0
      %1185 = vmatpush2.bf16.msra.mxu0 0
      %1186 = vmatprep.subr.bf16.mxu0 0
      %1187 = vmatpush2.bf16.msra.mxu0 0
      %1188 = vmatprep.subr.bf16.mxu0 0
      %1189 = vmatpush2.bf16.msra.mxu0 0
      %1190 = vmatprep.mubr.bf16.mxu0 0
      %1191 = vmatmul.mubr.bf16.gmra.mxu0 %v1108
      %v1192 = vpop.f32.mrf.mxu0
      %v1193 = vadd.f32 %v901, %v1192
      %v1194 = vpop.f32.mrf.mxu0
      %v1195 = vpop.f32.mrf.mxu0
      %v1196 = vadd.f32 %v904, %v1195
      %v1197 = vpop.f32.mrf.mxu0
      %1198 = vmatprep.mubr.bf16.mxu0 0
      %1199 = vmatmul.mubr.bf16.gmra.mxu0 %v1111
      %v1200 = vpop.f32.mrf.mxu0
      %v1201 = vadd.f32 %v909, %v1200
      %v1202 = vpop.f32.mrf.mxu0
      %v1203 = vpop.f32.mrf.mxu0
      %v1204 = vadd.f32 %v912, %v1203
      %v1205 = vpop.f32.mrf.mxu0
      %1206 = vmatprep.mubr.bf16.mxu0 0
      %1207 = vmatmul.mubr.bf16.gmra.mxu0 %v1114
      %v1208 = vpop.f32.mrf.mxu0
      %v1209 = vadd.f32 %v917, %v1208
      %v1210 = vpop.f32.mrf.mxu0
      %v1211 = vpop.f32.mrf.mxu0
      %v1212 = vadd.f32 %v920, %v1211
      %v1213 = vpop.f32.mrf.mxu0
      %1214 = vmatprep.mubr.bf16.mxu0 0
      %1215 = vmatmul.mubr.bf16.gmra.mxu0 %v1117
      %v1216 = vpop.f32.mrf.mxu0
      %v1217 = vadd.f32 %v925, %v1216
      %v1218 = vpop.f32.mrf.mxu0
      %v1219 = vpop.f32.mrf.mxu0
      %v1220 = vadd.f32 %v928, %v1219
      %v1221 = vpop.f32.mrf.mxu0
      %1222 = vmatprep.mubr.bf16.mxu0 0
      %1223 = vmatmul.mubr.bf16.gmra.mxu0 %v1120
      %v1224 = vpop.f32.mrf.mxu0
      %v1225 = vadd.f32 %v933, %v1224
      %v1226 = vpop.f32.mrf.mxu0
      %v1227 = vpop.f32.mrf.mxu0
      %v1228 = vadd.f32 %v936, %v1227
      %v1229 = vpop.f32.mrf.mxu0
      %1230 = vmatprep.mubr.bf16.mxu0 0
      %1231 = vmatmul.mubr.bf16.gmra.mxu0 %v1123
      %v1232 = vpop.f32.mrf.mxu0
      %v1233 = vadd.f32 %v941, %v1232
      %v1234 = vpop.f32.mrf.mxu0
      %v1235 = vpop.f32.mrf.mxu0
      %v1236 = vadd.f32 %v944, %v1235
      %v1237 = vpop.f32.mrf.mxu0
      %1238 = vmatprep.mubr.bf16.mxu0 0
      %1239 = vmatmul.mubr.bf16.gmra.mxu0 %v1126
      %v1240 = vpop.f32.mrf.mxu0
      %v1241 = vadd.f32 %v949, %v1240
      %v1242 = vpop.f32.mrf.mxu0
      %v1243 = vpop.f32.mrf.mxu0
      %v1244 = vadd.f32 %v952, %v1243
      %v1245 = vpop.f32.mrf.mxu0
      %1246 = vmatprep.mubr.bf16.mxu0 0
      %1247 = vmatmul.mubr.bf16.gmra.mxu0 %v1129
      %v1248 = vpop.f32.mrf.mxu0
      %v1249 = vadd.f32 %v957, %v1248
      %v1250 = vpop.f32.mrf.mxu0
      %v1251 = vpop.f32.mrf.mxu0
      %v1252 = vadd.f32 %v960, %v1251
      %v1253 = vpop.f32.mrf.mxu0
      %1254 = vmatprep.mubr.bf16.mxu0 0
      %1255 = vmatmul.mubr.bf16.gmra.mxu0 %v1132
      %v1256 = vpop.f32.mrf.mxu0
      %v1257 = vadd.f32 %v965, %v1256
      %v1258 = vpop.f32.mrf.mxu0
      %v1259 = vpop.f32.mrf.mxu0
      %v1260 = vadd.f32 %v968, %v1259
      %v1261 = vpop.f32.mrf.mxu0
      %1262 = vmatprep.mubr.bf16.mxu0 0
      %1263 = vmatmul.mubr.bf16.gmra.mxu0 %v1135
      %v1264 = vpop.f32.mrf.mxu0
      %v1265 = vadd.f32 %v973, %v1264
      %v1266 = vpop.f32.mrf.mxu0
      %v1267 = vpop.f32.mrf.mxu0
      %v1268 = vadd.f32 %v976, %v1267
      %v1269 = vpop.f32.mrf.mxu0
      %1270 = vmatprep.mubr.bf16.mxu0 0
      %1271 = vmatmul.mubr.bf16.gmra.mxu0 %v1138
      %v1272 = vpop.f32.mrf.mxu0
      %v1273 = vadd.f32 %v981, %v1272
      %v1274 = vpop.f32.mrf.mxu0
      %v1275 = vpop.f32.mrf.mxu0
      %v1276 = vadd.f32 %v984, %v1275
      %v1277 = vpop.f32.mrf.mxu0
      %1278 = vmatprep.mubr.bf16.mxu0 0
      %1279 = vmatmul.mubr.bf16.gmra.mxu0 %v1141
      %v1280 = vpop.f32.mrf.mxu0
      %v1281 = vadd.f32 %v989, %v1280
      %v1282 = vpop.f32.mrf.mxu0
      %v1283 = vpop.f32.mrf.mxu0
      %v1284 = vadd.f32 %v992, %v1283
      %v1285 = vpop.f32.mrf.mxu0
      %1286 = vmatprep.mubr.bf16.mxu0 0
      %1287 = vmatmul.mubr.bf16.gmra.mxu0 %v1144
      %v1288 = vpop.f32.mrf.mxu0
      %v1289 = vadd.f32 %v997, %v1288
      %v1290 = vpop.f32.mrf.mxu0
      %v1291 = vpop.f32.mrf.mxu0
      %v1292 = vadd.f32 %v1000, %v1291
      %v1293 = vpop.f32.mrf.mxu0
      %1294 = vmatprep.mubr.bf16.mxu0 0
      %1295 = vmatmul.mubr.bf16.gmra.mxu0 %v1147
      %v1296 = vpop.f32.mrf.mxu0
      %v1297 = vadd.f32 %v1005, %v1296
      %v1298 = vpop.f32.mrf.mxu0
      %v1299 = vpop.f32.mrf.mxu0
      %v1300 = vadd.f32 %v1008, %v1299
      %v1301 = vpop.f32.mrf.mxu0
      %1302 = vmatprep.mubr.bf16.mxu0 0
      %1303 = vmatmul.mubr.bf16.gmra.mxu0 %v1150
      %v1304 = vpop.f32.mrf.mxu0
      %v1305 = vadd.f32 %v1013, %v1304
      %v1306 = vpop.f32.mrf.mxu0
      %v1307 = vpop.f32.mrf.mxu0
      %v1308 = vadd.f32 %v1016, %v1307
      %v1309 = vpop.f32.mrf.mxu0
      %1310 = vmatprep.mubr.bf16.mxu0 0
      %1311 = vmatmul.mubr.bf16.gmra.mxu0 %v1153
      %v1312 = vpop.f32.mrf.mxu0
      %v1313 = vadd.f32 %v1021, %v1312
      %v1314 = vpop.f32.mrf.mxu0
      %v1315 = vpop.f32.mrf.mxu0
      %v1316 = vadd.f32 %v1024, %v1315
      %v1317 = vpop.f32.mrf.mxu0
      %1318 = vdwg.mxu0
      %v1319 = vld [vmem:[%s315] sm:$0xe]
      %v1320 = vld [vmem:[%s315 + $0xc] sm:$0xe]
      %v1321 = vld [vmem:[%s315 + $0x18] sm:$0xe]
      %v1322 = vld [vmem:[%s315 + $0x24] sm:$0xe]
      %v1323 = vld [vmem:[%s315 + $0x30] sm:$0xe]
      %v1324 = vld [vmem:[%s315 + $0x3c] sm:$0xe]
      %v1325 = vld [vmem:[%s315 + $0x48] sm:$0xe]
      %v1326 = vld [vmem:[%s315 + $0x54] sm:$0xe]
      %v1327 = vld [vmem:[%s315 + $0x60] sm:$0xe]
      %v1328 = vld [vmem:[%s315 + $0x6c] sm:$0xe]
      %v1329 = vld [vmem:[%s315 + $0x78] sm:$0xe]
      %v1330 = vld [vmem:[%s315 + $0x84] sm:$0xe]
      %v1331 = vld [vmem:[%s315 + $0x90] sm:$0xe]
      %v1332 = vld [vmem:[%s315 + $0x9c] sm:$0xe]
      %v1333 = vld [vmem:[%s315 + $0xa8] sm:$0xe]
      %v1334 = vld [vmem:[%s315 + $0xb4] sm:$0xe]
      %vm1367 = vcmask 1042432
      %vm1368 = vcmask 1046532
      %vm1369 = vmor %vm1367, %vm1368
      %v1370 = vrot.slane %v1319, 5
      %v1371 = vrot.slane %v1370, 4
      %v1372 = vrot.slane %v328, 5
      %v1373 = vsel %vm1369, %v1371, %v1372
      %v1374 = vrot.slane %v1372, 4
      %v1375 = vrot.slane %v360, 5
      %v1376 = vsel %vm1369, %v1374, %v1375
      %v1377 = vrot.slane %v1320, 5
      %v1378 = vrot.slane %v1377, 4
      %v1379 = vrot.slane %v330, 5
      %v1380 = vsel %vm1369, %v1378, %v1379
      %v1381 = vrot.slane %v1379, 4
      %v1382 = vrot.slane %v361, 5
      %v1383 = vsel %vm1369, %v1381, %v1382
      %v1384 = vrot.slane %v1321, 5
      %v1385 = vrot.slane %v1384, 4
      %v1386 = vrot.slane %v332, 5
      %v1387 = vsel %vm1369, %v1385, %v1386
      %v1388 = vrot.slane %v1386, 4
      %v1389 = vrot.slane %v362, 5
      %v1390 = vsel %vm1369, %v1388, %v1389
      %v1391 = vrot.slane %v1322, 5
      %v1392 = vrot.slane %v1391, 4
      %v1393 = vrot.slane %v334, 5
      %v1394 = vsel %vm1369, %v1392, %v1393
      %v1395 = vrot.slane %v1393, 4
      %v1396 = vrot.slane %v363, 5
      %v1397 = vsel %vm1369, %v1395, %v1396
      %v1398 = vrot.slane %v1323, 5
      %v1399 = vrot.slane %v1398, 4
      %v1400 = vrot.slane %v336, 5
      %v1401 = vsel %vm1369, %v1399, %v1400
      %v1402 = vrot.slane %v1400, 4
      %v1403 = vrot.slane %v364, 5
      %v1404 = vsel %vm1369, %v1402, %v1403
      %v1405 = vrot.slane %v1324, 5
      %v1406 = vrot.slane %v1405, 4
      %v1407 = vrot.slane %v338, 5
      %v1408 = vsel %vm1369, %v1406, %v1407
      %v1409 = vrot.slane %v1407, 4
      %v1410 = vrot.slane %v365, 5
      %v1411 = vsel %vm1369, %v1409, %v1410
      %v1412 = vrot.slane %v1325, 5
      %v1413 = vrot.slane %v1412, 4
      %v1414 = vrot.slane %v340, 5
      %v1415 = vsel %vm1369, %v1413, %v1414
      %v1416 = vrot.slane %v1414, 4
      %v1417 = vrot.slane %v366, 5
      %v1418 = vsel %vm1369, %v1416, %v1417
      %v1419 = vrot.slane %v1326, 5
      %v1420 = vrot.slane %v1419, 4
      %v1421 = vrot.slane %v342, 5
      %v1422 = vsel %vm1369, %v1420, %v1421
      %v1423 = vrot.slane %v1421, 4
      %v1424 = vrot.slane %v367, 5
      %v1425 = vsel %vm1369, %v1423, %v1424
      %v1426 = vrot.slane %v1327, 5
      %v1427 = vrot.slane %v1426, 4
      %v1428 = vrot.slane %v344, 5
      %v1429 = vsel %vm1369, %v1427, %v1428
      %v1430 = vrot.slane %v1428, 4
      %v1431 = vrot.slane %v368, 5
      %v1432 = vsel %vm1369, %v1430, %v1431
      %v1433 = vrot.slane %v1328, 5
      %v1434 = vrot.slane %v1433, 4
      %v1435 = vrot.slane %v346, 5
      %v1436 = vsel %vm1369, %v1434, %v1435
      %v1437 = vrot.slane %v1435, 4
      %v1438 = vrot.slane %v369, 5
      %v1439 = vsel %vm1369, %v1437, %v1438
      %v1440 = vrot.slane %v1329, 5
      %v1441 = vrot.slane %v1440, 4
      %v1442 = vrot.slane %v348, 5
      %v1443 = vsel %vm1369, %v1441, %v1442
      %v1444 = vrot.slane %v1442, 4
      %v1445 = vrot.slane %v370, 5
      %v1446 = vsel %vm1369, %v1444, %v1445
      %v1447 = vrot.slane %v1330, 5
      %v1448 = vrot.slane %v1447, 4
      %v1449 = vrot.slane %v350, 5
      %v1450 = vsel %vm1369, %v1448, %v1449
      %v1451 = vrot.slane %v1449, 4
      %v1452 = vrot.slane %v371, 5
      %v1453 = vsel %vm1369, %v1451, %v1452
      %v1454 = vrot.slane %v1331, 5
      %v1455 = vrot.slane %v1454, 4
      %v1456 = vrot.slane %v352, 5
      %v1457 = vsel %vm1369, %v1455, %v1456
      %v1458 = vrot.slane %v1456, 4
      %v1459 = vrot.slane %v372, 5
      %v1460 = vsel %vm1369, %v1458, %v1459
      %v1461 = vrot.slane %v1332, 5
      %v1462 = vrot.slane %v1461, 4
      %v1463 = vrot.slane %v354, 5
      %v1464 = vsel %vm1369, %v1462, %v1463
      %v1465 = vrot.slane %v1463, 4
      %v1466 = vrot.slane %v373, 5
      %v1467 = vsel %vm1369, %v1465, %v1466
      %v1468 = vrot.slane %v1333, 5
      %v1469 = vrot.slane %v1468, 4
      %v1470 = vrot.slane %v356, 5
      %v1471 = vsel %vm1369, %v1469, %v1470
      %v1472 = vrot.slane %v1470, 4
      %v1473 = vrot.slane %v374, 5
      %v1474 = vsel %vm1369, %v1472, %v1473
      %v1475 = vrot.slane %v1334, 5
      %v1476 = vrot.slane %v1475, 4
      %v1477 = vrot.slane %v358, 5
      %v1478 = vsel %vm1369, %v1476, %v1477
      %v1479 = vrot.slane %v1477, 4
      %v1480 = vrot.slane %v375, 5
      %v1481 = vsel %vm1369, %v1479, %v1480
      %s1482 = scalar_lea.vmem %s1, 4
      %v1483 = vld [vmem:[%s1482] sm:$0x3]
      %v1484 = vunpack.c.l.b16 %v1373
      %v1485 = vunpack.c.l.b16 %v1376
      %v1486 = vunpack.c.l.b16 %v1380
      %v1487 = vunpack.c.l.b16 %v1383
      %v1488 = vunpack.c.l.b16 %v1387
      %v1489 = vunpack.c.l.b16 %v1390
      %v1490 = vunpack.c.l.b16 %v1394
      %v1491 = vunpack.c.l.b16 %v1397
      %v1492 = vunpack.c.l.b16 %v1401
      %v1493 = vunpack.c.l.b16 %v1404
      %v1494 = vunpack.c.l.b16 %v1408
      %v1495 = vunpack.c.l.b16 %v1411
      %v1496 = vunpack.c.l.b16 %v1415
      %v1497 = vunpack.c.l.b16 %v1418
      %v1498 = vunpack.c.l.b16 %v1422
      %v1499 = vunpack.c.l.b16 %v1425
      %v1500 = vunpack.c.l.b16 %v1429
      %v1501 = vunpack.c.l.b16 %v1432
      %v1502 = vunpack.c.l.b16 %v1436
      %v1503 = vunpack.c.l.b16 %v1439
      %v1504 = vunpack.c.l.b16 %v1443
      %v1505 = vunpack.c.l.b16 %v1446
      %v1506 = vunpack.c.l.b16 %v1450
      %v1507 = vunpack.c.l.b16 %v1453
      %v1508 = vunpack.c.l.b16 %v1457
      %v1509 = vunpack.c.l.b16 %v1460
      %v1510 = vunpack.c.l.b16 %v1464
      %v1511 = vunpack.c.l.b16 %v1467
      %v1512 = vunpack.c.l.b16 %v1471
      %v1513 = vunpack.c.l.b16 %v1474
      %v1514 = vunpack.c.l.b16 %v1478
      %v1515 = vunpack.c.l.b16 %v1481
      %v1516 = vpack.c.b16 %v1485, %v1484
      %v1517 = vpack.c.b16 %v1487, %v1486
      %v1518 = vpack.c.b16 %v1489, %v1488
      %v1519 = vpack.c.b16 %v1491, %v1490
      %v1520 = vpack.c.b16 %v1493, %v1492
      %v1521 = vpack.c.b16 %v1495, %v1494
      %v1522 = vpack.c.b16 %v1497, %v1496
      %v1523 = vpack.c.b16 %v1499, %v1498
      %v1524 = vpack.c.b16 %v1501, %v1500
      %v1525 = vpack.c.b16 %v1503, %v1502
      %v1526 = vpack.c.b16 %v1505, %v1504
      %v1527 = vpack.c.b16 %v1507, %v1506
      %v1528 = vpack.c.b16 %v1509, %v1508
      %v1529 = vpack.c.b16 %v1511, %v1510
      %v1530 = vpack.c.b16 %v1513, %v1512
      %v1531 = vpack.c.b16 %v1515, %v1514
      %v1533 = vsel %vm813, %v1516, 0
      %v1536 = vsel %vm813, %v1517, 0
      %v1539 = vsel %vm813, %v1518, 0
      %v1542 = vsel %vm813, %v1519, 0
      %v1545 = vsel %vm813, %v1520, 0
      %v1548 = vsel %vm813, %v1521, 0
      %v1551 = vsel %vm813, %v1522, 0
      %v1554 = vsel %vm813, %v1523, 0
      %v1557 = vsel %vm813, %v1524, 0
      %v1560 = vsel %vm813, %v1525, 0
      %v1563 = vsel %vm813, %v1526, 0
      %v1566 = vsel %vm813, %v1527, 0
      %v1569 = vsel %vm813, %v1528, 0
      %v1572 = vsel %vm813, %v1529, 0
      %v1575 = vsel %vm813, %v1530, 0
      %v1578 = vsel %vm813, %v1531, 0
      %v1581 = vsel %vm862, %v1483, 0
      %1583 = vmatprep.subr.bf16.mxu0 0
      %1584 = vmatpush1.bf16.msra.mxu0 0
      %1585 = vmatprep.subr.bf16.mxu0 0
      %1586 = vmatpush1.bf16.msra.mxu0 0
      %1587 = vmatprep.subr.bf16.mxu0 0
      %1588 = vmatpush1.bf16.msra.mxu0 0
      %1589 = vmatprep.subr.bf16.mxu0 0
      %1590 = vmatpush1.bf16.msra.mxu0 0
      %1591 = vmatprep.subr.bf16.mxu0 0
      %1592 = vmatpush1.bf16.msra.mxu0 0
      %1593 = vmatprep.subr.bf16.mxu0 0
      %1594 = vmatpush1.bf16.msra.mxu0 0
      %1595 = vmatprep.subr.bf16.mxu0 0
      %1596 = vmatpush1.bf16.msra.mxu0 0
      %1597 = vmatprep.subr.bf16.mxu0 0
      %1598 = vmatpush1.bf16.msra.mxu0 %v1581
      %1599 = vmatprep.subr.bf16.mxu0 0
      %1600 = vmatpush2.bf16.msra.mxu0 0
      %1601 = vmatprep.subr.bf16.mxu0 0
      %1602 = vmatpush2.bf16.msra.mxu0 0
      %1603 = vmatprep.subr.bf16.mxu0 0
      %1604 = vmatpush2.bf16.msra.mxu0 0
      %1605 = vmatprep.subr.bf16.mxu0 0
      %1606 = vmatpush2.bf16.msra.mxu0 0
      %1607 = vmatprep.subr.bf16.mxu0 0
      %1608 = vmatpush2.bf16.msra.mxu0 0
      %1609 = vmatprep.subr.bf16.mxu0 0
      %1610 = vmatpush2.bf16.msra.mxu0 0
      %1611 = vmatprep.subr.bf16.mxu0 0
      %1612 = vmatpush2.bf16.msra.mxu0 0
      %1613 = vmatprep.subr.bf16.mxu0 0
      %1614 = vmatpush2.bf16.msra.mxu0 0
      %1615 = vmatprep.mubr.bf16.mxu0 0
      %1616 = vmatmul.mubr.bf16.gmra.mxu0 %v1533
      %v1617 = vpop.f32.mrf.mxu0
      %v1618 = vadd.f32 0.0, %v1617
      %v1619 = vpop.f32.mrf.mxu0
      %v1620 = vpop.f32.mrf.mxu0
      %v1621 = vadd.f32 0.0, %v1620
      %v1622 = vpop.f32.mrf.mxu0
      %1623 = vmatprep.mubr.bf16.mxu0 0
      %1624 = vmatmul.mubr.bf16.gmra.mxu0 %v1536
      %v1625 = vpop.f32.mrf.mxu0
      %v1626 = vadd.f32 0.0, %v1625
      %v1627 = vpop.f32.mrf.mxu0
      %v1628 = vpop.f32.mrf.mxu0
      %v1629 = vadd.f32 0.0, %v1628
      %v1630 = vpop.f32.mrf.mxu0
      %1631 = vmatprep.mubr.bf16.mxu0 0
      %1632 = vmatmul.mubr.bf16.gmra.mxu0 %v1539
      %v1633 = vpop.f32.mrf.mxu0
      %v1634 = vadd.f32 0.0, %v1633
      %v1635 = vpop.f32.mrf.mxu0
      %v1636 = vpop.f32.mrf.mxu0
      %v1637 = vadd.f32 0.0, %v1636
      %v1638 = vpop.f32.mrf.mxu0
      %1639 = vmatprep.mubr.bf16.mxu0 0
      %1640 = vmatmul.mubr.bf16.gmra.mxu0 %v1542
      %v1641 = vpop.f32.mrf.mxu0
      %v1642 = vadd.f32 0.0, %v1641
      %v1643 = vpop.f32.mrf.mxu0
      %v1644 = vpop.f32.mrf.mxu0
      %v1645 = vadd.f32 0.0, %v1644
      %v1646 = vpop.f32.mrf.mxu0
      %1647 = vmatprep.mubr.bf16.mxu0 0
      %1648 = vmatmul.mubr.bf16.gmra.mxu0 %v1545
      %v1649 = vpop.f32.mrf.mxu0
      %v1650 = vadd.f32 0.0, %v1649
      %v1651 = vpop.f32.mrf.mxu0
      %v1652 = vpop.f32.mrf.mxu0
      %v1653 = vadd.f32 0.0, %v1652
      %v1654 = vpop.f32.mrf.mxu0
      %1655 = vmatprep.mubr.bf16.mxu0 0
      %1656 = vmatmul.mubr.bf16.gmra.mxu0 %v1548
      %v1657 = vpop.f32.mrf.mxu0
      %v1658 = vadd.f32 0.0, %v1657
      %v1659 = vpop.f32.mrf.mxu0
      %v1660 = vpop.f32.mrf.mxu0
      %v1661 = vadd.f32 0.0, %v1660
      %v1662 = vpop.f32.mrf.mxu0
      %1663 = vmatprep.mubr.bf16.mxu0 0
      %1664 = vmatmul.mubr.bf16.gmra.mxu0 %v1551
      %v1665 = vpop.f32.mrf.mxu0
      %v1666 = vadd.f32 0.0, %v1665
      %v1667 = vpop.f32.mrf.mxu0
      %v1668 = vpop.f32.mrf.mxu0
      %v1669 = vadd.f32 0.0, %v1668
      %v1670 = vpop.f32.mrf.mxu0
      %1671 = vmatprep.mubr.bf16.mxu0 0
      %1672 = vmatmul.mubr.bf16.gmra.mxu0 %v1554
      %v1673 = vpop.f32.mrf.mxu0
      %v1674 = vadd.f32 0.0, %v1673
      %v1675 = vpop.f32.mrf.mxu0
      %v1676 = vpop.f32.mrf.mxu0
      %v1677 = vadd.f32 0.0, %v1676
      %v1678 = vpop.f32.mrf.mxu0
      %1679 = vmatprep.mubr.bf16.mxu0 0
      %1680 = vmatmul.mubr.bf16.gmra.mxu0 %v1557
      %v1681 = vpop.f32.mrf.mxu0
      %v1682 = vadd.f32 0.0, %v1681
      %v1683 = vpop.f32.mrf.mxu0
      %v1684 = vpop.f32.mrf.mxu0
      %v1685 = vadd.f32 0.0, %v1684
      %v1686 = vpop.f32.mrf.mxu0
      %1687 = vmatprep.mubr.bf16.mxu0 0
      %1688 = vmatmul.mubr.bf16.gmra.mxu0 %v1560
      %v1689 = vpop.f32.mrf.mxu0
      %v1690 = vadd.f32 0.0, %v1689
      %v1691 = vpop.f32.mrf.mxu0
      %v1692 = vpop.f32.mrf.mxu0
      %v1693 = vadd.f32 0.0, %v1692
      %v1694 = vpop.f32.mrf.mxu0
      %1695 = vmatprep.mubr.bf16.mxu0 0
      %1696 = vmatmul.mubr.bf16.gmra.mxu0 %v1563
      %v1697 = vpop.f32.mrf.mxu0
      %v1698 = vadd.f32 0.0, %v1697
      %v1699 = vpop.f32.mrf.mxu0
      %v1700 = vpop.f32.mrf.mxu0
      %v1701 = vadd.f32 0.0, %v1700
      %v1702 = vpop.f32.mrf.mxu0
      %1703 = vmatprep.mubr.bf16.mxu0 0
      %1704 = vmatmul.mubr.bf16.gmra.mxu0 %v1566
      %v1705 = vpop.f32.mrf.mxu0
      %v1706 = vadd.f32 0.0, %v1705
      %v1707 = vpop.f32.mrf.mxu0
      %v1708 = vpop.f32.mrf.mxu0
      %v1709 = vadd.f32 0.0, %v1708
      %v1710 = vpop.f32.mrf.mxu0
      %1711 = vmatprep.mubr.bf16.mxu0 0
      %1712 = vmatmul.mubr.bf16.gmra.mxu0 %v1569
      %v1713 = vpop.f32.mrf.mxu0
      %v1714 = vadd.f32 0.0, %v1713
      %v1715 = vpop.f32.mrf.mxu0
      %v1716 = vpop.f32.mrf.mxu0
      %v1717 = vadd.f32 0.0, %v1716
      %v1718 = vpop.f32.mrf.mxu0
      %1719 = vmatprep.mubr.bf16.mxu0 0
      %1720 = vmatmul.mubr.bf16.gmra.mxu0 %v1572
      %v1721 = vpop.f32.mrf.mxu0
      %v1722 = vadd.f32 0.0, %v1721
      %v1723 = vpop.f32.mrf.mxu0
      %v1724 = vpop.f32.mrf.mxu0
      %v1725 = vadd.f32 0.0, %v1724
      %v1726 = vpop.f32.mrf.mxu0
      %1727 = vmatprep.mubr.bf16.mxu0 0
      %1728 = vmatmul.mubr.bf16.gmra.mxu0 %v1575
      %v1729 = vpop.f32.mrf.mxu0
      %v1730 = vadd.f32 0.0, %v1729
      %v1731 = vpop.f32.mrf.mxu0
      %v1732 = vpop.f32.mrf.mxu0
      %v1733 = vadd.f32 0.0, %v1732
      %v1734 = vpop.f32.mrf.mxu0
      %1735 = vmatprep.mubr.bf16.mxu0 0
      %1736 = vmatmul.mubr.bf16.gmra.mxu0 %v1578
      %v1737 = vpop.f32.mrf.mxu0
      %v1738 = vadd.f32 0.0, %v1737
      %v1739 = vpop.f32.mrf.mxu0
      %v1740 = vpop.f32.mrf.mxu0
      %v1741 = vadd.f32 0.0, %v1740
      %v1742 = vpop.f32.mrf.mxu0
      %1743 = vdwg.mxu0
      %v1744 = vadd.f32 %v1193, %v1618
      %v1745 = vadd.f32 %v1196, %v1621
      %v1746 = vadd.f32 %v1201, %v1626
      %v1747 = vadd.f32 %v1204, %v1629
      %v1748 = vadd.f32 %v1209, %v1634
      %v1749 = vadd.f32 %v1212, %v1637
      %v1750 = vadd.f32 %v1217, %v1642
      %v1751 = vadd.f32 %v1220, %v1645
      %v1752 = vadd.f32 %v1225, %v1650
      %v1753 = vadd.f32 %v1228, %v1653
      %v1754 = vadd.f32 %v1233, %v1658
      %v1755 = vadd.f32 %v1236, %v1661
      %v1756 = vadd.f32 %v1241, %v1666
      %v1757 = vadd.f32 %v1244, %v1669
      %v1758 = vadd.f32 %v1249, %v1674
      %v1759 = vadd.f32 %v1252, %v1677
      %v1760 = vadd.f32 %v1257, %v1682
      %v1761 = vadd.f32 %v1260, %v1685
      %v1762 = vadd.f32 %v1265, %v1690
      %v1763 = vadd.f32 %v1268, %v1693
      %v1764 = vadd.f32 %v1273, %v1698
      %v1765 = vadd.f32 %v1276, %v1701
      %v1766 = vadd.f32 %v1281, %v1706
      %v1767 = vadd.f32 %v1284, %v1709
      %v1768 = vadd.f32 %v1289, %v1714
      %v1769 = vadd.f32 %v1292, %v1717
      %v1770 = vadd.f32 %v1297, %v1722
      %v1771 = vadd.f32 %v1300, %v1725
      %v1772 = vadd.f32 %v1305, %v1730
      %v1773 = vadd.f32 %v1308, %v1733
      %v1774 = vadd.f32 %v1313, %v1738
      %v1775 = vadd.f32 %v1316, %v1741
      %s1776 = scalar_lea.vmem %s315, 12
      %v1777 = vld [vmem:[%s1776] sm:$0xf]
      %v1778 = vld [vmem:[%s1776 + $0x4] sm:$0xf]
      %v1779 = vld [vmem:[%s1776 + $0xc] sm:$0xf]
      %v1780 = vld [vmem:[%s1776 + $0x10] sm:$0xf]
      %v1781 = vld [vmem:[%s1776 + $0x18] sm:$0xf]
      %v1782 = vld [vmem:[%s1776 + $0x1c] sm:$0xf]
      %v1783 = vld [vmem:[%s1776 + $0x24] sm:$0xf]
      %v1784 = vld [vmem:[%s1776 + $0x28] sm:$0xf]
      %v1785 = vld [vmem:[%s1776 + $0x30] sm:$0xf]
      %v1786 = vld [vmem:[%s1776 + $0x34] sm:$0xf]
      %v1787 = vld [vmem:[%s1776 + $0x3c] sm:$0xf]
      %v1788 = vld [vmem:[%s1776 + $0x40] sm:$0xf]
      %v1789 = vld [vmem:[%s1776 + $0x48] sm:$0xf]
      %v1790 = vld [vmem:[%s1776 + $0x4c] sm:$0xf]
      %v1791 = vld [vmem:[%s1776 + $0x54] sm:$0xf]
      %v1792 = vld [vmem:[%s1776 + $0x58] sm:$0xf]
      %v1793 = vld [vmem:[%s1776 + $0x60] sm:$0xf]
      %v1794 = vld [vmem:[%s1776 + $0x64] sm:$0xf]
      %v1795 = vld [vmem:[%s1776 + $0x6c] sm:$0xf]
      %v1796 = vld [vmem:[%s1776 + $0x70] sm:$0xf]
      %v1797 = vld [vmem:[%s1776 + $0x78] sm:$0xf]
      %v1798 = vld [vmem:[%s1776 + $0x7c] sm:$0xf]
      %v1799 = vld [vmem:[%s1776 + $0x84] sm:$0xf]
      %v1800 = vld [vmem:[%s1776 + $0x88] sm:$0xf]
      %v1801 = vld [vmem:[%s1776 + $0x90] sm:$0xf]
      %v1802 = vld [vmem:[%s1776 + $0x94] sm:$0xf]
      %v1803 = vld [vmem:[%s1776 + $0x9c] sm:$0xf]
      %v1804 = vld [vmem:[%s1776 + $0xa0] sm:$0xf]
      %v1805 = vld [vmem:[%s1776 + $0xa8] sm:$0xf]
      %v1806 = vld [vmem:[%s1776 + $0xac] sm:$0xf]
      %v1807 = vld [vmem:[%s1776 + $0xb4] sm:$0xf]
      %v1808 = vld [vmem:[%s1776 + $0xb8] sm:$0xf]
      %s1809 = scalar_lea.vmem %s1, 6
      %v1810 = vld [vmem:[%s1809] sm:$0x3]
      %v1843 = vunpack.c.l.b16 %v1777
      %v1844 = vunpack.c.l.b16 %v1778
      %v1845 = vunpack.c.l.b16 %v1779
      %v1846 = vunpack.c.l.b16 %v1780
      %v1847 = vunpack.c.l.b16 %v1781
      %v1848 = vunpack.c.l.b16 %v1782
      %v1849 = vunpack.c.l.b16 %v1783
      %v1850 = vunpack.c.l.b16 %v1784
      %v1851 = vunpack.c.l.b16 %v1785
      %v1852 = vunpack.c.l.b16 %v1786
      %v1853 = vunpack.c.l.b16 %v1787
      %v1854 = vunpack.c.l.b16 %v1788
      %v1855 = vunpack.c.l.b16 %v1789
      %v1856 = vunpack.c.l.b16 %v1790
      %v1857 = vunpack.c.l.b16 %v1791
      %v1858 = vunpack.c.l.b16 %v1792
      %v1859 = vunpack.c.l.b16 %v1793
      %v1860 = vunpack.c.l.b16 %v1794
      %v1861 = vunpack.c.l.b16 %v1795
      %v1862 = vunpack.c.l.b16 %v1796
      %v1863 = vunpack.c.l.b16 %v1797
      %v1864 = vunpack.c.l.b16 %v1798
      %v1865 = vunpack.c.l.b16 %v1799
      %v1866 = vunpack.c.l.b16 %v1800
      %v1867 = vunpack.c.l.b16 %v1801
      %v1868 = vunpack.c.l.b16 %v1802
      %v1869 = vunpack.c.l.b16 %v1803
      %v1870 = vunpack.c.l.b16 %v1804
      %v1871 = vunpack.c.l.b16 %v1805
      %v1872 = vunpack.c.l.b16 %v1806
      %v1873 = vunpack.c.l.b16 %v1807
      %v1874 = vunpack.c.l.b16 %v1808
      %v1875 = vpack.c.b16 %v1844, %v1843
      %v1876 = vpack.c.b16 %v1846, %v1845
      %v1877 = vpack.c.b16 %v1848, %v1847
      %v1878 = vpack.c.b16 %v1850, %v1849
      %v1879 = vpack.c.b16 %v1852, %v1851
      %v1880 = vpack.c.b16 %v1854, %v1853
      %v1881 = vpack.c.b16 %v1856, %v1855
      %v1882 = vpack.c.b16 %v1858, %v1857
      %v1883 = vpack.c.b16 %v1860, %v1859
      %v1884 = vpack.c.b16 %v1862, %v1861
      %v1885 = vpack.c.b16 %v1864, %v1863
      %v1886 = vpack.c.b16 %v1866, %v1865
      %v1887 = vpack.c.b16 %v1868, %v1867
      %v1888 = vpack.c.b16 %v1870, %v1869
      %v1889 = vpack.c.b16 %v1872, %v1871
      %v1890 = vpack.c.b16 %v1874, %v1873
      %v1892 = vsel %vm813, %v1875, 0
      %v1895 = vsel %vm813, %v1876, 0
      %v1898 = vsel %vm813, %v1877, 0
      %v1901 = vsel %vm813, %v1878, 0
      %v1904 = vsel %vm813, %v1879, 0
      %v1907 = vsel %vm813, %v1880, 0
      %v1910 = vsel %vm813, %v1881, 0
      %v1913 = vsel %vm813, %v1882, 0
      %v1916 = vsel %vm813, %v1883, 0
      %v1919 = vsel %vm813, %v1884, 0
      %v1922 = vsel %vm813, %v1885, 0
      %v1925 = vsel %vm813, %v1886, 0
      %v1928 = vsel %vm813, %v1887, 0
      %v1931 = vsel %vm813, %v1888, 0
      %v1934 = vsel %vm813, %v1889, 0
      %v1937 = vsel %vm813, %v1890, 0
      %v1940 = vsel %vm862, %v1810, 0
      %1942 = vmatprep.subr.bf16.mxu0 0
      %1943 = vmatpush1.bf16.msra.mxu0 0
      %1944 = vmatprep.subr.bf16.mxu0 0
      %1945 = vmatpush1.bf16.msra.mxu0 0
      %1946 = vmatprep.subr.bf16.mxu0 0
      %1947 = vmatpush1.bf16.msra.mxu0 0
      %1948 = vmatprep.subr.bf16.mxu0 0
      %1949 = vmatpush1.bf16.msra.mxu0 0
      %1950 = vmatprep.subr.bf16.mxu0 0
      %1951 = vmatpush1.bf16.msra.mxu0 0
      %1952 = vmatprep.subr.bf16.mxu0 0
      %1953 = vmatpush1.bf16.msra.mxu0 0
      %1954 = vmatprep.subr.bf16.mxu0 0
      %1955 = vmatpush1.bf16.msra.mxu0 0
      %1956 = vmatprep.subr.bf16.mxu0 0
      %1957 = vmatpush1.bf16.msra.mxu0 %v1940
      %1958 = vmatprep.subr.bf16.mxu0 0
      %1959 = vmatpush2.bf16.msra.mxu0 0
      %1960 = vmatprep.subr.bf16.mxu0 0
      %1961 = vmatpush2.bf16.msra.mxu0 0
      %1962 = vmatprep.subr.bf16.mxu0 0
      %1963 = vmatpush2.bf16.msra.mxu0 0
      %1964 = vmatprep.subr.bf16.mxu0 0
      %1965 = vmatpush2.bf16.msra.mxu0 0
      %1966 = vmatprep.subr.bf16.mxu0 0
      %1967 = vmatpush2.bf16.msra.mxu0 0
      %1968 = vmatprep.subr.bf16.mxu0 0
      %1969 = vmatpush2.bf16.msra.mxu0 0
      %1970 = vmatprep.subr.bf16.mxu0 0
      %1971 = vmatpush2.bf16.msra.mxu0 0
      %1972 = vmatprep.subr.bf16.mxu0 0
      %1973 = vmatpush2.bf16.msra.mxu0 0
      %1974 = vmatprep.mubr.bf16.mxu0 0
      %1975 = vmatmul.mubr.bf16.gmra.mxu0 %v1892
      %v1976 = vpop.f32.mrf.mxu0
      %v1977 = vadd.f32 0.0, %v1976
      %v1978 = vpop.f32.mrf.mxu0
      %v1979 = vpop.f32.mrf.mxu0
      %v1980 = vadd.f32 0.0, %v1979
      %v1981 = vpop.f32.mrf.mxu0
      %1982 = vmatprep.mubr.bf16.mxu0 0
      %1983 = vmatmul.mubr.bf16.gmra.mxu0 %v1895
      %v1984 = vpop.f32.mrf.mxu0
      %v1985 = vadd.f32 0.0, %v1984
      %v1986 = vpop.f32.mrf.mxu0
      %v1987 = vpop.f32.mrf.mxu0
      %v1988 = vadd.f32 0.0, %v1987
      %v1989 = vpop.f32.mrf.mxu0
      %1990 = vmatprep.mubr.bf16.mxu0 0
      %1991 = vmatmul.mubr.bf16.gmra.mxu0 %v1898
      %v1992 = vpop.f32.mrf.mxu0
      %v1993 = vadd.f32 0.0, %v1992
      %v1994 = vpop.f32.mrf.mxu0
      %v1995 = vpop.f32.mrf.mxu0
      %v1996 = vadd.f32 0.0, %v1995
      %v1997 = vpop.f32.mrf.mxu0
      %1998 = vmatprep.mubr.bf16.mxu0 0
      %1999 = vmatmul.mubr.bf16.gmra.mxu0 %v1901
      %v2000 = vpop.f32.mrf.mxu0
      %v2001 = vadd.f32 0.0, %v2000
      %v2002 = vpop.f32.mrf.mxu0
      %v2003 = vpop.f32.mrf.mxu0
      %v2004 = vadd.f32 0.0, %v2003
      %v2005 = vpop.f32.mrf.mxu0
      %2006 = vmatprep.mubr.bf16.mxu0 0
      %2007 = vmatmul.mubr.bf16.gmra.mxu0 %v1904
      %v2008 = vpop.f32.mrf.mxu0
      %v2009 = vadd.f32 0.0, %v2008
      %v2010 = vpop.f32.mrf.mxu0
      %v2011 = vpop.f32.mrf.mxu0
      %v2012 = vadd.f32 0.0, %v2011
      %v2013 = vpop.f32.mrf.mxu0
      %2014 = vmatprep.mubr.bf16.mxu0 0
      %2015 = vmatmul.mubr.bf16.gmra.mxu0 %v1907
      %v2016 = vpop.f32.mrf.mxu0
      %v2017 = vadd.f32 0.0, %v2016
      %v2018 = vpop.f32.mrf.mxu0
      %v2019 = vpop.f32.mrf.mxu0
      %v2020 = vadd.f32 0.0, %v2019
      %v2021 = vpop.f32.mrf.mxu0
      %2022 = vmatprep.mubr.bf16.mxu0 0
      %2023 = vmatmul.mubr.bf16.gmra.mxu0 %v1910
      %v2024 = vpop.f32.mrf.mxu0
      %v2025 = vadd.f32 0.0, %v2024
      %v2026 = vpop.f32.mrf.mxu0
      %v2027 = vpop.f32.mrf.mxu0
      %v2028 = vadd.f32 0.0, %v2027
      %v2029 = vpop.f32.mrf.mxu0
      %2030 = vmatprep.mubr.bf16.mxu0 0
      %2031 = vmatmul.mubr.bf16.gmra.mxu0 %v1913
      %v2032 = vpop.f32.mrf.mxu0
      %v2033 = vadd.f32 0.0, %v2032
      %v2034 = vpop.f32.mrf.mxu0
      %v2035 = vpop.f32.mrf.mxu0
      %v2036 = vadd.f32 0.0, %v2035
      %v2037 = vpop.f32.mrf.mxu0
      %2038 = vmatprep.mubr.bf16.mxu0 0
      %2039 = vmatmul.mubr.bf16.gmra.mxu0 %v1916
      %v2040 = vpop.f32.mrf.mxu0
      %v2041 = vadd.f32 0.0, %v2040
      %v2042 = vpop.f32.mrf.mxu0
      %v2043 = vpop.f32.mrf.mxu0
      %v2044 = vadd.f32 0.0, %v2043
      %v2045 = vpop.f32.mrf.mxu0
      %2046 = vmatprep.mubr.bf16.mxu0 0
      %2047 = vmatmul.mubr.bf16.gmra.mxu0 %v1919
      %v2048 = vpop.f32.mrf.mxu0
      %v2049 = vadd.f32 0.0, %v2048
      %v2050 = vpop.f32.mrf.mxu0
      %v2051 = vpop.f32.mrf.mxu0
      %v2052 = vadd.f32 0.0, %v2051
      %v2053 = vpop.f32.mrf.mxu0
      %2054 = vmatprep.mubr.bf16.mxu0 0
      %2055 = vmatmul.mubr.bf16.gmra.mxu0 %v1922
      %v2056 = vpop.f32.mrf.mxu0
      %v2057 = vadd.f32 0.0, %v2056
      %v2058 = vpop.f32.mrf.mxu0
      %v2059 = vpop.f32.mrf.mxu0
      %v2060 = vadd.f32 0.0, %v2059
      %v2061 = vpop.f32.mrf.mxu0
      %2062 = vmatprep.mubr.bf16.mxu0 0
      %2063 = vmatmul.mubr.bf16.gmra.mxu0 %v1925
      %v2064 = vpop.f32.mrf.mxu0
      %v2065 = vadd.f32 0.0, %v2064
      %v2066 = vpop.f32.mrf.mxu0
      %v2067 = vpop.f32.mrf.mxu0
      %v2068 = vadd.f32 0.0, %v2067
      %v2069 = vpop.f32.mrf.mxu0
      %2070 = vmatprep.mubr.bf16.mxu0 0
      %2071 = vmatmul.mubr.bf16.gmra.mxu0 %v1928
      %v2072 = vpop.f32.mrf.mxu0
      %v2073 = vadd.f32 0.0, %v2072
      %v2074 = vpop.f32.mrf.mxu0
      %v2075 = vpop.f32.mrf.mxu0
      %v2076 = vadd.f32 0.0, %v2075
      %v2077 = vpop.f32.mrf.mxu0
      %2078 = vmatprep.mubr.bf16.mxu0 0
      %2079 = vmatmul.mubr.bf16.gmra.mxu0 %v1931
      %v2080 = vpop.f32.mrf.mxu0
      %v2081 = vadd.f32 0.0, %v2080
      %v2082 = vpop.f32.mrf.mxu0
      %v2083 = vpop.f32.mrf.mxu0
      %v2084 = vadd.f32 0.0, %v2083
      %v2085 = vpop.f32.mrf.mxu0
      %2086 = vmatprep.mubr.bf16.mxu0 0
      %2087 = vmatmul.mubr.bf16.gmra.mxu0 %v1934
      %v2088 = vpop.f32.mrf.mxu0
      %v2089 = vadd.f32 0.0, %v2088
      %v2090 = vpop.f32.mrf.mxu0
      %v2091 = vpop.f32.mrf.mxu0
      %v2092 = vadd.f32 0.0, %v2091
      %v2093 = vpop.f32.mrf.mxu0
      %2094 = vmatprep.mubr.bf16.mxu0 0
      %2095 = vmatmul.mubr.bf16.gmra.mxu0 %v1937
      %v2096 = vpop.f32.mrf.mxu0
      %v2097 = vadd.f32 0.0, %v2096
      %v2098 = vpop.f32.mrf.mxu0
      %v2099 = vpop.f32.mrf.mxu0
      %v2100 = vadd.f32 0.0, %v2099
      %v2101 = vpop.f32.mrf.mxu0
      %2102 = vdwg.mxu0
      %v2103 = vadd.f32 %v1744, %v1977
      %v2104 = vadd.f32 %v1745, %v1980
      %v2105 = vadd.f32 %v1746, %v1985
      %v2106 = vadd.f32 %v1747, %v1988
      %v2107 = vadd.f32 %v1748, %v1993
      %v2108 = vadd.f32 %v1749, %v1996
      %v2109 = vadd.f32 %v1750, %v2001
      %v2110 = vadd.f32 %v1751, %v2004
      %v2111 = vadd.f32 %v1752, %v2009
      %v2112 = vadd.f32 %v1753, %v2012
      %v2113 = vadd.f32 %v1754, %v2017
      %v2114 = vadd.f32 %v1755, %v2020
      %v2115 = vadd.f32 %v1756, %v2025
      %v2116 = vadd.f32 %v1757, %v2028
      %v2117 = vadd.f32 %v1758, %v2033
      %v2118 = vadd.f32 %v1759, %v2036
      %v2119 = vadd.f32 %v1760, %v2041
      %v2120 = vadd.f32 %v1761, %v2044
      %v2121 = vadd.f32 %v1762, %v2049
      %v2122 = vadd.f32 %v1763, %v2052
      %v2123 = vadd.f32 %v1764, %v2057
      %v2124 = vadd.f32 %v1765, %v2060
      %v2125 = vadd.f32 %v1766, %v2065
      %v2126 = vadd.f32 %v1767, %v2068
      %v2127 = vadd.f32 %v1768, %v2073
      %v2128 = vadd.f32 %v1769, %v2076
      %v2129 = vadd.f32 %v1770, %v2081
      %v2130 = vadd.f32 %v1771, %v2084
      %v2131 = vadd.f32 %v1772, %v2089
      %v2132 = vadd.f32 %v1773, %v2092
      %v2133 = vadd.f32 %v1774, %v2097
      %v2134 = vadd.f32 %v1775, %v2100
      %v2135 = vld [vmem:[%s1776] sm:$0xf]
      %v2136 = vld [vmem:[%s1776 + $0x4] sm:$0xf]
      %v2137 = vld [vmem:[%s1776 + $0x8] sm:$0x1]
      %v2138 = vld [vmem:[%s1776 + $0xc] sm:$0xf]
      %v2139 = vld [vmem:[%s1776 + $0x10] sm:$0xf]
      %v2140 = vld [vmem:[%s1776 + $0x14] sm:$0x1]
      %v2141 = vld [vmem:[%s1776 + $0x18] sm:$0xf]
      %v2142 = vld [vmem:[%s1776 + $0x1c] sm:$0xf]
      %v2143 = vld [vmem:[%s1776 + $0x20] sm:$0x1]
      %v2144 = vld [vmem:[%s1776 + $0x24] sm:$0xf]
      %v2145 = vld [vmem:[%s1776 + $0x28] sm:$0xf]
      %v2146 = vld [vmem:[%s1776 + $0x2c] sm:$0x1]
      %v2147 = vld [vmem:[%s1776 + $0x30] sm:$0xf]
      %v2148 = vld [vmem:[%s1776 + $0x34] sm:$0xf]
      %v2149 = vld [vmem:[%s1776 + $0x38] sm:$0x1]
      %v2150 = vld [vmem:[%s1776 + $0x3c] sm:$0xf]
      %v2151 = vld [vmem:[%s1776 + $0x40] sm:$0xf]
      %v2152 = vld [vmem:[%s1776 + $0x44] sm:$0x1]
      %v2153 = vld [vmem:[%s1776 + $0x48] sm:$0xf]
      %v2154 = vld [vmem:[%s1776 + $0x4c] sm:$0xf]
      %v2155 = vld [vmem:[%s1776 + $0x50] sm:$0x1]
      %v2156 = vld [vmem:[%s1776 + $0x54] sm:$0xf]
      %v2157 = vld [vmem:[%s1776 + $0x58] sm:$0xf]
      %v2158 = vld [vmem:[%s1776 + $0x5c] sm:$0x1]
      %v2159 = vld [vmem:[%s1776 + $0x60] sm:$0xf]
      %v2160 = vld [vmem:[%s1776 + $0x64] sm:$0xf]
      %v2161 = vld [vmem:[%s1776 + $0x68] sm:$0x1]
      %v2162 = vld [vmem:[%s1776 + $0x6c] sm:$0xf]
      %v2163 = vld [vmem:[%s1776 + $0x70] sm:$0xf]
      %v2164 = vld [vmem:[%s1776 + $0x74] sm:$0x1]
      %v2165 = vld [vmem:[%s1776 + $0x78] sm:$0xf]
      %v2166 = vld [vmem:[%s1776 + $0x7c] sm:$0xf]
      %v2167 = vld [vmem:[%s1776 + $0x80] sm:$0x1]
      %v2168 = vld [vmem:[%s1776 + $0x84] sm:$0xf]
      %v2169 = vld [vmem:[%s1776 + $0x88] sm:$0xf]
      %v2170 = vld [vmem:[%s1776 + $0x8c] sm:$0x1]
      %v2171 = vld [vmem:[%s1776 + $0x90] sm:$0xf]
      %v2172 = vld [vmem:[%s1776 + $0x94] sm:$0xf]
      %v2173 = vld [vmem:[%s1776 + $0x98] sm:$0x1]
      %v2174 = vld [vmem:[%s1776 + $0x9c] sm:$0xf]
      %v2175 = vld [vmem:[%s1776 + $0xa0] sm:$0xf]
      %v2176 = vld [vmem:[%s1776 + $0xa4] sm:$0x1]
      %v2177 = vld [vmem:[%s1776 + $0xa8] sm:$0xf]
      %v2178 = vld [vmem:[%s1776 + $0xac] sm:$0xf]
      %v2179 = vld [vmem:[%s1776 + $0xb0] sm:$0x1]
      %v2180 = vld [vmem:[%s1776 + $0xb4] sm:$0xf]
      %v2181 = vld [vmem:[%s1776 + $0xb8] sm:$0xf]
      %v2182 = vld [vmem:[%s1776 + $0xbc] sm:$0x1]
      %v2184 = vshrl.u32 %v2135, 16
      %v2186 = vrot.slane %v2184, 4
      %v2187 = vshll.u32 %v2135, 16
      %v2189 = vrot.slane %v2187, 5
      %v2190 = vor.u32 %v2186, %v2189
      %v2191 = vrot.slane %v2190, 4
      %v2193 = vshll.u32 %v2136, 16
      %v2195 = vrot.slane %v2193, 5
      %v2196 = vsel %vm378, %v2191, %v2195
      %v2197 = vshrl.u32 %v2136, 16
      %v2199 = vrot.slane %v2197, 4
      %v2200 = vor.u32 %v2199, %v2195
      %v2201 = vrot.slane %v2200, 4
      %v2203 = vshll.u32 %v2137, 16
      %v2205 = vrot.slane %v2203, 5
      %v2206 = vsel %vm378, %v2201, %v2205
      %v2208 = vshrl.u32 %v2138, 16
      %v2210 = vrot.slane %v2208, 4
      %v2211 = vshll.u32 %v2138, 16
      %v2213 = vrot.slane %v2211, 5
      %v2214 = vor.u32 %v2210, %v2213
      %v2215 = vrot.slane %v2214, 4
      %v2217 = vshll.u32 %v2139, 16
      %v2219 = vrot.slane %v2217, 5
      %v2220 = vsel %vm378, %v2215, %v2219
      %v2221 = vshrl.u32 %v2139, 16
      %v2223 = vrot.slane %v2221, 4
      %v2224 = vor.u32 %v2223, %v2219
      %v2225 = vrot.slane %v2224, 4
      %v2227 = vshll.u32 %v2140, 16
      %v2229 = vrot.slane %v2227, 5
      %v2230 = vsel %vm378, %v2225, %v2229
      %v2232 = vshrl.u32 %v2141, 16
      %v2234 = vrot.slane %v2232, 4
      %v2235 = vshll.u32 %v2141, 16
      %v2237 = vrot.slane %v2235, 5
      %v2238 = vor.u32 %v2234, %v2237
      %v2239 = vrot.slane %v2238, 4
      %v2241 = vshll.u32 %v2142, 16
      %v2243 = vrot.slane %v2241, 5
      %v2244 = vsel %vm378, %v2239, %v2243
      %v2245 = vshrl.u32 %v2142, 16
      %v2247 = vrot.slane %v2245, 4
      %v2248 = vor.u32 %v2247, %v2243
      %v2249 = vrot.slane %v2248, 4
      %v2251 = vshll.u32 %v2143, 16
      %v2253 = vrot.slane %v2251, 5
      %v2254 = vsel %vm378, %v2249, %v2253
      %v2256 = vshrl.u32 %v2144, 16
      %v2258 = vrot.slane %v2256, 4
      %v2259 = vshll.u32 %v2144, 16
      %v2261 = vrot.slane %v2259, 5
      %v2262 = vor.u32 %v2258, %v2261
      %v2263 = vrot.slane %v2262, 4
      %v2265 = vshll.u32 %v2145, 16
      %v2267 = vrot.slane %v2265, 5
      %v2268 = vsel %vm378, %v2263, %v2267
      %v2269 = vshrl.u32 %v2145, 16
      %v2271 = vrot.slane %v2269, 4
      %v2272 = vor.u32 %v2271, %v2267
      %v2273 = vrot.slane %v2272, 4
      %v2275 = vshll.u32 %v2146, 16
      %v2277 = vrot.slane %v2275, 5
      %v2278 = vsel %vm378, %v2273, %v2277
      %v2280 = vshrl.u32 %v2147, 16
      %v2282 = vrot.slane %v2280, 4
      %v2283 = vshll.u32 %v2147, 16
      %v2285 = vrot.slane %v2283, 5
      %v2286 = vor.u32 %v2282, %v2285
      %v2287 = vrot.slane %v2286, 4
      %v2289 = vshll.u32 %v2148, 16
      %v2291 = vrot.slane %v2289, 5
      %v2292 = vsel %vm378, %v2287, %v2291
      %v2293 = vshrl.u32 %v2148, 16
      %v2295 = vrot.slane %v2293, 4
      %v2296 = vor.u32 %v2295, %v2291
      %v2297 = vrot.slane %v2296, 4
      %v2299 = vshll.u32 %v2149, 16
      %v2301 = vrot.slane %v2299, 5
      %v2302 = vsel %vm378, %v2297, %v2301
      %v2304 = vshrl.u32 %v2150, 16
      %v2306 = vrot.slane %v2304, 4
      %v2307 = vshll.u32 %v2150, 16
      %v2309 = vrot.slane %v2307, 5
      %v2310 = vor.u32 %v2306, %v2309
      %v2311 = vrot.slane %v2310, 4
      %v2313 = vshll.u32 %v2151, 16
      %v2315 = vrot.slane %v2313, 5
      %v2316 = vsel %vm378, %v2311, %v2315
      %v2317 = vshrl.u32 %v2151, 16
      %v2319 = vrot.slane %v2317, 4
      %v2320 = vor.u32 %v2319, %v2315
      %v2321 = vrot.slane %v2320, 4
      %v2323 = vshll.u32 %v2152, 16
      %v2325 = vrot.slane %v2323, 5
      %v2326 = vsel %vm378, %v2321, %v2325
      %v2328 = vshrl.u32 %v2153, 16
      %v2330 = vrot.slane %v2328, 4
      %v2331 = vshll.u32 %v2153, 16
      %v2333 = vrot.slane %v2331, 5
      %v2334 = vor.u32 %v2330, %v2333
      %v2335 = vrot.slane %v2334, 4
      %v2337 = vshll.u32 %v2154, 16
      %v2339 = vrot.slane %v2337, 5
      %v2340 = vsel %vm378, %v2335, %v2339
      %v2341 = vshrl.u32 %v2154, 16
      %v2343 = vrot.slane %v2341, 4
      %v2344 = vor.u32 %v2343, %v2339
      %v2345 = vrot.slane %v2344, 4
      %v2347 = vshll.u32 %v2155, 16
      %v2349 = vrot.slane %v2347, 5
      %v2350 = vsel %vm378, %v2345, %v2349
      %v2352 = vshrl.u32 %v2156, 16
      %v2354 = vrot.slane %v2352, 4
      %v2355 = vshll.u32 %v2156, 16
      %v2357 = vrot.slane %v2355, 5
      %v2358 = vor.u32 %v2354, %v2357
      %v2359 = vrot.slane %v2358, 4
      %v2361 = vshll.u32 %v2157, 16
      %v2363 = vrot.slane %v2361, 5
      %v2364 = vsel %vm378, %v2359, %v2363
      %v2365 = vshrl.u32 %v2157, 16
      %v2367 = vrot.slane %v2365, 4
      %v2368 = vor.u32 %v2367, %v2363
      %v2369 = vrot.slane %v2368, 4
      %v2371 = vshll.u32 %v2158, 16
      %v2373 = vrot.slane %v2371, 5
      %v2374 = vsel %vm378, %v2369, %v2373
      %v2376 = vshrl.u32 %v2159, 16
      %v2378 = vrot.slane %v2376, 4
      %v2379 = vshll.u32 %v2159, 16
      %v2381 = vrot.slane %v2379, 5
      %v2382 = vor.u32 %v2378, %v2381
      %v2383 = vrot.slane %v2382, 4
      %v2385 = vshll.u32 %v2160, 16
      %v2387 = vrot.slane %v2385, 5
      %v2388 = vsel %vm378, %v2383, %v2387
      %v2389 = vshrl.u32 %v2160, 16
      %v2391 = vrot.slane %v2389, 4
      %v2392 = vor.u32 %v2391, %v2387
      %v2393 = vrot.slane %v2392, 4
      %v2395 = vshll.u32 %v2161, 16
      %v2397 = vrot.slane %v2395, 5
      %v2398 = vsel %vm378, %v2393, %v2397
      %v2400 = vshrl.u32 %v2162, 16
      %v2402 = vrot.slane %v2400, 4
      %v2403 = vshll.u32 %v2162, 16
      %v2405 = vrot.slane %v2403, 5
      %v2406 = vor.u32 %v2402, %v2405
      %v2407 = vrot.slane %v2406, 4
      %v2409 = vshll.u32 %v2163, 16
      %v2411 = vrot.slane %v2409, 5
      %v2412 = vsel %vm378, %v2407, %v2411
      %v2413 = vshrl.u32 %v2163, 16
      %v2415 = vrot.slane %v2413, 4
      %v2416 = vor.u32 %v2415, %v2411
      %v2417 = vrot.slane %v2416, 4
      %v2419 = vshll.u32 %v2164, 16
      %v2421 = vrot.slane %v2419, 5
      %v2422 = vsel %vm378, %v2417, %v2421
      %v2424 = vshrl.u32 %v2165, 16
      %v2426 = vrot.slane %v2424, 4
      %v2427 = vshll.u32 %v2165, 16
      %v2429 = vrot.slane %v2427, 5
      %v2430 = vor.u32 %v2426, %v2429
      %v2431 = vrot.slane %v2430, 4
      %v2433 = vshll.u32 %v2166, 16
      %v2435 = vrot.slane %v2433, 5
      %v2436 = vsel %vm378, %v2431, %v2435
      %v2437 = vshrl.u32 %v2166, 16
      %v2439 = vrot.slane %v2437, 4
      %v2440 = vor.u32 %v2439, %v2435
      %v2441 = vrot.slane %v2440, 4
      %v2443 = vshll.u32 %v2167, 16
      %v2445 = vrot.slane %v2443, 5
      %v2446 = vsel %vm378, %v2441, %v2445
      %v2448 = vshrl.u32 %v2168, 16
      %v2450 = vrot.slane %v2448, 4
      %v2451 = vshll.u32 %v2168, 16
      %v2453 = vrot.slane %v2451, 5
      %v2454 = vor.u32 %v2450, %v2453
      %v2455 = vrot.slane %v2454, 4
      %v2457 = vshll.u32 %v2169, 16
      %v2459 = vrot.slane %v2457, 5
      %v2460 = vsel %vm378, %v2455, %v2459
      %v2461 = vshrl.u32 %v2169, 16
      %v2463 = vrot.slane %v2461, 4
      %v2464 = vor.u32 %v2463, %v2459
      %v2465 = vrot.slane %v2464, 4
      %v2467 = vshll.u32 %v2170, 16
      %v2469 = vrot.slane %v2467, 5
      %v2470 = vsel %vm378, %v2465, %v2469
      %v2472 = vshrl.u32 %v2171, 16
      %v2474 = vrot.slane %v2472, 4
      %v2475 = vshll.u32 %v2171, 16
      %v2477 = vrot.slane %v2475, 5
      %v2478 = vor.u32 %v2474, %v2477
      %v2479 = vrot.slane %v2478, 4
      %v2481 = vshll.u32 %v2172, 16
      %v2483 = vrot.slane %v2481, 5
      %v2484 = vsel %vm378, %v2479, %v2483
      %v2485 = vshrl.u32 %v2172, 16
      %v2487 = vrot.slane %v2485, 4
      %v2488 = vor.u32 %v2487, %v2483
      %v2489 = vrot.slane %v2488, 4
      %v2491 = vshll.u32 %v2173, 16
      %v2493 = vrot.slane %v2491, 5
      %v2494 = vsel %vm378, %v2489, %v2493
      %v2496 = vshrl.u32 %v2174, 16
      %v2498 = vrot.slane %v2496, 4
      %v2499 = vshll.u32 %v2174, 16
      %v2501 = vrot.slane %v2499, 5
      %v2502 = vor.u32 %v2498, %v2501
      %v2503 = vrot.slane %v2502, 4
      %v2505 = vshll.u32 %v2175, 16
      %v2507 = vrot.slane %v2505, 5
      %v2508 = vsel %vm378, %v2503, %v2507
      %v2509 = vshrl.u32 %v2175, 16
      %v2511 = vrot.slane %v2509, 4
      %v2512 = vor.u32 %v2511, %v2507
      %v2513 = vrot.slane %v2512, 4
      %v2515 = vshll.u32 %v2176, 16
      %v2517 = vrot.slane %v2515, 5
      %v2518 = vsel %vm378, %v2513, %v2517
      %v2520 = vshrl.u32 %v2177, 16
      %v2522 = vrot.slane %v2520, 4
      %v2523 = vshll.u32 %v2177, 16
      %v2525 = vrot.slane %v2523, 5
      %v2526 = vor.u32 %v2522, %v2525
      %v2527 = vrot.slane %v2526, 4
      %v2529 = vshll.u32 %v2178, 16
      %v2531 = vrot.slane %v2529, 5
      %v2532 = vsel %vm378, %v2527, %v2531
      %v2533 = vshrl.u32 %v2178, 16
      %v2535 = vrot.slane %v2533, 4
      %v2536 = vor.u32 %v2535, %v2531
      %v2537 = vrot.slane %v2536, 4
      %v2539 = vshll.u32 %v2179, 16
      %v2541 = vrot.slane %v2539, 5
      %v2542 = vsel %vm378, %v2537, %v2541
      %v2544 = vshrl.u32 %v2180, 16
      %v2546 = vrot.slane %v2544, 4
      %v2547 = vshll.u32 %v2180, 16
      %v2549 = vrot.slane %v2547, 5
      %v2550 = vor.u32 %v2546, %v2549
      %v2551 = vrot.slane %v2550, 4
      %v2553 = vshll.u32 %v2181, 16
      %v2555 = vrot.slane %v2553, 5
      %v2556 = vsel %vm378, %v2551, %v2555
      %v2557 = vshrl.u32 %v2181, 16
      %v2559 = vrot.slane %v2557, 4
      %v2560 = vor.u32 %v2559, %v2555
      %v2561 = vrot.slane %v2560, 4
      %v2563 = vshll.u32 %v2182, 16
      %v2565 = vrot.slane %v2563, 5
      %v2566 = vsel %vm378, %v2561, %v2565
      %s2567 = scalar_lea.vmem %s1, 8
      %v2568 = vld [vmem:[%s2567] sm:$0x3]
      %v2569 = vunpack.c.l.b16 %v2196
      %v2570 = vunpack.c.l.b16 %v2206
      %v2571 = vunpack.c.l.b16 %v2220
      %v2572 = vunpack.c.l.b16 %v2230
      %v2573 = vunpack.c.l.b16 %v2244
      %v2574 = vunpack.c.l.b16 %v2254
      %v2575 = vunpack.c.l.b16 %v2268
      %v2576 = vunpack.c.l.b16 %v2278
      %v2577 = vunpack.c.l.b16 %v2292
      %v2578 = vunpack.c.l.b16 %v2302
      %v2579 = vunpack.c.l.b16 %v2316
      %v2580 = vunpack.c.l.b16 %v2326
      %v2581 = vunpack.c.l.b16 %v2340
      %v2582 = vunpack.c.l.b16 %v2350
      %v2583 = vunpack.c.l.b16 %v2364
      %v2584 = vunpack.c.l.b16 %v2374
      %v2585 = vunpack.c.l.b16 %v2388
      %v2586 = vunpack.c.l.b16 %v2398
      %v2587 = vunpack.c.l.b16 %v2412
      %v2588 = vunpack.c.l.b16 %v2422
      %v2589 = vunpack.c.l.b16 %v2436
      %v2590 = vunpack.c.l.b16 %v2446
      %v2591 = vunpack.c.l.b16 %v2460
      %v2592 = vunpack.c.l.b16 %v2470
      %v2593 = vunpack.c.l.b16 %v2484
      %v2594 = vunpack.c.l.b16 %v2494
      %v2595 = vunpack.c.l.b16 %v2508
      %v2596 = vunpack.c.l.b16 %v2518
      %v2597 = vunpack.c.l.b16 %v2532
      %v2598 = vunpack.c.l.b16 %v2542
      %v2599 = vunpack.c.l.b16 %v2556
      %v2600 = vunpack.c.l.b16 %v2566
      %v2601 = vpack.c.b16 %v2570, %v2569
      %v2602 = vpack.c.b16 %v2572, %v2571
      %v2603 = vpack.c.b16 %v2574, %v2573
      %v2604 = vpack.c.b16 %v2576, %v2575
      %v2605 = vpack.c.b16 %v2578, %v2577
      %v2606 = vpack.c.b16 %v2580, %v2579
      %v2607 = vpack.c.b16 %v2582, %v2581
      %v2608 = vpack.c.b16 %v2584, %v2583
      %v2609 = vpack.c.b16 %v2586, %v2585
      %v2610 = vpack.c.b16 %v2588, %v2587
      %v2611 = vpack.c.b16 %v2590, %v2589
      %v2612 = vpack.c.b16 %v2592, %v2591
      %v2613 = vpack.c.b16 %v2594, %v2593
      %v2614 = vpack.c.b16 %v2596, %v2595
      %v2615 = vpack.c.b16 %v2598, %v2597
      %v2616 = vpack.c.b16 %v2600, %v2599
      %v2618 = vsel %vm813, %v2601, 0
      %v2621 = vsel %vm813, %v2602, 0
      %v2624 = vsel %vm813, %v2603, 0
      %v2627 = vsel %vm813, %v2604, 0
      %v2630 = vsel %vm813, %v2605, 0
      %v2633 = vsel %vm813, %v2606, 0
      %v2636 = vsel %vm813, %v2607, 0
      %v2639 = vsel %vm813, %v2608, 0
      %v2642 = vsel %vm813, %v2609, 0
      %v2645 = vsel %vm813, %v2610, 0
      %v2648 = vsel %vm813, %v2611, 0
      %v2651 = vsel %vm813, %v2612, 0
      %v2654 = vsel %vm813, %v2613, 0
      %v2657 = vsel %vm813, %v2614, 0
      %v2660 = vsel %vm813, %v2615, 0
      %v2663 = vsel %vm813, %v2616, 0
      %v2666 = vsel %vm862, %v2568, 0
      %2668 = vmatprep.subr.bf16.mxu0 0
      %2669 = vmatpush1.bf16.msra.mxu0 0
      %2670 = vmatprep.subr.bf16.mxu0 0
      %2671 = vmatpush1.bf16.msra.mxu0 0
      %2672 = vmatprep.subr.bf16.mxu0 0
      %2673 = vmatpush1.bf16.msra.mxu0 0
      %2674 = vmatprep.subr.bf16.mxu0 0
      %2675 = vmatpush1.bf16.msra.mxu0 0
      %2676 = vmatprep.subr.bf16.mxu0 0
      %2677 = vmatpush1.bf16.msra.mxu0 0
      %2678 = vmatprep.subr.bf16.mxu0 0
      %2679 = vmatpush1.bf16.msra.mxu0 0
      %2680 = vmatprep.subr.bf16.mxu0 0
      %2681 = vmatpush1.bf16.msra.mxu0 0
      %2682 = vmatprep.subr.bf16.mxu0 0
      %2683 = vmatpush1.bf16.msra.mxu0 %v2666
      %2684 = vmatprep.subr.bf16.mxu0 0
      %2685 = vmatpush2.bf16.msra.mxu0 0
      %2686 = vmatprep.subr.bf16.mxu0 0
      %2687 = vmatpush2.bf16.msra.mxu0 0
      %2688 = vmatprep.subr.bf16.mxu0 0
      %2689 = vmatpush2.bf16.msra.mxu0 0
      %2690 = vmatprep.subr.bf16.mxu0 0
      %2691 = vmatpush2.bf16.msra.mxu0 0
      %2692 = vmatprep.subr.bf16.mxu0 0
      %2693 = vmatpush2.bf16.msra.mxu0 0
      %2694 = vmatprep.subr.bf16.mxu0 0
      %2695 = vmatpush2.bf16.msra.mxu0 0
      %2696 = vmatprep.subr.bf16.mxu0 0
      %2697 = vmatpush2.bf16.msra.mxu0 0
      %2698 = vmatprep.subr.bf16.mxu0 0
      %2699 = vmatpush2.bf16.msra.mxu0 0
      %2700 = vmatprep.mubr.bf16.mxu0 0
      %2701 = vmatmul.mubr.bf16.gmra.mxu0 %v2618
      %v2702 = vpop.f32.mrf.mxu0
      %v2703 = vadd.f32 0.0, %v2702
      %v2704 = vpop.f32.mrf.mxu0
      %v2705 = vpop.f32.mrf.mxu0
      %v2706 = vadd.f32 0.0, %v2705
      %v2707 = vpop.f32.mrf.mxu0
      %2708 = vmatprep.mubr.bf16.mxu0 0
      %2709 = vmatmul.mubr.bf16.gmra.mxu0 %v2621
      %v2710 = vpop.f32.mrf.mxu0
      %v2711 = vadd.f32 0.0, %v2710
      %v2712 = vpop.f32.mrf.mxu0
      %v2713 = vpop.f32.mrf.mxu0
      %v2714 = vadd.f32 0.0, %v2713
      %v2715 = vpop.f32.mrf.mxu0
      %2716 = vmatprep.mubr.bf16.mxu0 0
      %2717 = vmatmul.mubr.bf16.gmra.mxu0 %v2624
      %v2718 = vpop.f32.mrf.mxu0
      %v2719 = vadd.f32 0.0, %v2718
      %v2720 = vpop.f32.mrf.mxu0
      %v2721 = vpop.f32.mrf.mxu0
      %v2722 = vadd.f32 0.0, %v2721
      %v2723 = vpop.f32.mrf.mxu0
      %2724 = vmatprep.mubr.bf16.mxu0 0
      %2725 = vmatmul.mubr.bf16.gmra.mxu0 %v2627
      %v2726 = vpop.f32.mrf.mxu0
      %v2727 = vadd.f32 0.0, %v2726
      %v2728 = vpop.f32.mrf.mxu0
      %v2729 = vpop.f32.mrf.mxu0
      %v2730 = vadd.f32 0.0, %v2729
      %v2731 = vpop.f32.mrf.mxu0
      %2732 = vmatprep.mubr.bf16.mxu0 0
      %2733 = vmatmul.mubr.bf16.gmra.mxu0 %v2630
      %v2734 = vpop.f32.mrf.mxu0
      %v2735 = vadd.f32 0.0, %v2734
      %v2736 = vpop.f32.mrf.mxu0
      %v2737 = vpop.f32.mrf.mxu0
      %v2738 = vadd.f32 0.0, %v2737
      %v2739 = vpop.f32.mrf.mxu0
      %2740 = vmatprep.mubr.bf16.mxu0 0
      %2741 = vmatmul.mubr.bf16.gmra.mxu0 %v2633
      %v2742 = vpop.f32.mrf.mxu0
      %v2743 = vadd.f32 0.0, %v2742
      %v2744 = vpop.f32.mrf.mxu0
      %v2745 = vpop.f32.mrf.mxu0
      %v2746 = vadd.f32 0.0, %v2745
      %v2747 = vpop.f32.mrf.mxu0
      %2748 = vmatprep.mubr.bf16.mxu0 0
      %2749 = vmatmul.mubr.bf16.gmra.mxu0 %v2636
      %v2750 = vpop.f32.mrf.mxu0
      %v2751 = vadd.f32 0.0, %v2750
      %v2752 = vpop.f32.mrf.mxu0
      %v2753 = vpop.f32.mrf.mxu0
      %v2754 = vadd.f32 0.0, %v2753
      %v2755 = vpop.f32.mrf.mxu0
      %2756 = vmatprep.mubr.bf16.mxu0 0
      %2757 = vmatmul.mubr.bf16.gmra.mxu0 %v2639
      %v2758 = vpop.f32.mrf.mxu0
      %v2759 = vadd.f32 0.0, %v2758
      %v2760 = vpop.f32.mrf.mxu0
      %v2761 = vpop.f32.mrf.mxu0
      %v2762 = vadd.f32 0.0, %v2761
      %v2763 = vpop.f32.mrf.mxu0
      %2764 = vmatprep.mubr.bf16.mxu0 0
      %2765 = vmatmul.mubr.bf16.gmra.mxu0 %v2642
      %v2766 = vpop.f32.mrf.mxu0
      %v2767 = vadd.f32 0.0, %v2766
      %v2768 = vpop.f32.mrf.mxu0
      %v2769 = vpop.f32.mrf.mxu0
      %v2770 = vadd.f32 0.0, %v2769
      %v2771 = vpop.f32.mrf.mxu0
      %2772 = vmatprep.mubr.bf16.mxu0 0
      %2773 = vmatmul.mubr.bf16.gmra.mxu0 %v2645
      %v2774 = vpop.f32.mrf.mxu0
      %v2775 = vadd.f32 0.0, %v2774
      %v2776 = vpop.f32.mrf.mxu0
      %v2777 = vpop.f32.mrf.mxu0
      %v2778 = vadd.f32 0.0, %v2777
      %v2779 = vpop.f32.mrf.mxu0
      %2780 = vmatprep.mubr.bf16.mxu0 0
      %2781 = vmatmul.mubr.bf16.gmra.mxu0 %v2648
      %v2782 = vpop.f32.mrf.mxu0
      %v2783 = vadd.f32 0.0, %v2782
      %v2784 = vpop.f32.mrf.mxu0
      %v2785 = vpop.f32.mrf.mxu0
      %v2786 = vadd.f32 0.0, %v2785
      %v2787 = vpop.f32.mrf.mxu0
      %2788 = vmatprep.mubr.bf16.mxu0 0
      %2789 = vmatmul.mubr.bf16.gmra.mxu0 %v2651
      %v2790 = vpop.f32.mrf.mxu0
      %v2791 = vadd.f32 0.0, %v2790
      %v2792 = vpop.f32.mrf.mxu0
      %v2793 = vpop.f32.mrf.mxu0
      %v2794 = vadd.f32 0.0, %v2793
      %v2795 = vpop.f32.mrf.mxu0
      %2796 = vmatprep.mubr.bf16.mxu0 0
      %2797 = vmatmul.mubr.bf16.gmra.mxu0 %v2654
      %v2798 = vpop.f32.mrf.mxu0
      %v2799 = vadd.f32 0.0, %v2798
      %v2800 = vpop.f32.mrf.mxu0
      %v2801 = vpop.f32.mrf.mxu0
      %v2802 = vadd.f32 0.0, %v2801
      %v2803 = vpop.f32.mrf.mxu0
      %2804 = vmatprep.mubr.bf16.mxu0 0
      %2805 = vmatmul.mubr.bf16.gmra.mxu0 %v2657
      %v2806 = vpop.f32.mrf.mxu0
      %v2807 = vadd.f32 0.0, %v2806
      %v2808 = vpop.f32.mrf.mxu0
      %v2809 = vpop.f32.mrf.mxu0
      %v2810 = vadd.f32 0.0, %v2809
      %v2811 = vpop.f32.mrf.mxu0
      %2812 = vmatprep.mubr.bf16.mxu0 0
      %2813 = vmatmul.mubr.bf16.gmra.mxu0 %v2660
      %v2814 = vpop.f32.mrf.mxu0
      %v2815 = vadd.f32 0.0, %v2814
      %v2816 = vpop.f32.mrf.mxu0
      %v2817 = vpop.f32.mrf.mxu0
      %v2818 = vadd.f32 0.0, %v2817
      %v2819 = vpop.f32.mrf.mxu0
      %2820 = vmatprep.mubr.bf16.mxu0 0
      %2821 = vmatmul.mubr.bf16.gmra.mxu0 %v2663
      %v2822 = vpop.f32.mrf.mxu0
      %v2823 = vadd.f32 0.0, %v2822
      %v2824 = vpop.f32.mrf.mxu0
      %v2825 = vpop.f32.mrf.mxu0
      %v2826 = vadd.f32 0.0, %v2825
      %v2827 = vpop.f32.mrf.mxu0
      %2828 = vdwg.mxu0
      %v2829 = vadd.f32 %v2103, %v2703
      %v2830 = vadd.f32 %v2104, %v2706
      %v2831 = vadd.f32 %v2105, %v2711
      %v2832 = vadd.f32 %v2106, %v2714
      %v2833 = vadd.f32 %v2107, %v2719
      %v2834 = vadd.f32 %v2108, %v2722
      %v2835 = vadd.f32 %v2109, %v2727
      %v2836 = vadd.f32 %v2110, %v2730
      %v2837 = vadd.f32 %v2111, %v2735
      %v2838 = vadd.f32 %v2112, %v2738
      %v2839 = vadd.f32 %v2113, %v2743
      %v2840 = vadd.f32 %v2114, %v2746
      %v2841 = vadd.f32 %v2115, %v2751
      %v2842 = vadd.f32 %v2116, %v2754
      %v2843 = vadd.f32 %v2117, %v2759
      %v2844 = vadd.f32 %v2118, %v2762
      %v2845 = vadd.f32 %v2119, %v2767
      %v2846 = vadd.f32 %v2120, %v2770
      %v2847 = vadd.f32 %v2121, %v2775
      %v2848 = vadd.f32 %v2122, %v2778
      %v2849 = vadd.f32 %v2123, %v2783
      %v2850 = vadd.f32 %v2124, %v2786
      %v2851 = vadd.f32 %v2125, %v2791
      %v2852 = vadd.f32 %v2126, %v2794
      %v2853 = vadd.f32 %v2127, %v2799
      %v2854 = vadd.f32 %v2128, %v2802
      %v2855 = vadd.f32 %v2129, %v2807
      %v2856 = vadd.f32 %v2130, %v2810
      %v2857 = vadd.f32 %v2131, %v2815
      %v2858 = vadd.f32 %v2132, %v2818
      %v2859 = vadd.f32 %v2133, %v2823
      %v2860 = vadd.f32 %v2134, %v2826
      %v2861 = vld [vmem:[%s1776] sm:$0xe]
      %v2862 = vld [vmem:[%s1776 + $0xc] sm:$0xe]
      %v2863 = vld [vmem:[%s1776 + $0x18] sm:$0xe]
      %v2864 = vld [vmem:[%s1776 + $0x24] sm:$0xe]
      %v2865 = vld [vmem:[%s1776 + $0x30] sm:$0xe]
      %v2866 = vld [vmem:[%s1776 + $0x3c] sm:$0xe]
      %v2867 = vld [vmem:[%s1776 + $0x48] sm:$0xe]
      %v2868 = vld [vmem:[%s1776 + $0x54] sm:$0xe]
      %v2869 = vld [vmem:[%s1776 + $0x60] sm:$0xe]
      %v2870 = vld [vmem:[%s1776 + $0x6c] sm:$0xe]
      %v2871 = vld [vmem:[%s1776 + $0x78] sm:$0xe]
      %v2872 = vld [vmem:[%s1776 + $0x84] sm:$0xe]
      %v2873 = vld [vmem:[%s1776 + $0x90] sm:$0xe]
      %v2874 = vld [vmem:[%s1776 + $0x9c] sm:$0xe]
      %v2875 = vld [vmem:[%s1776 + $0xa8] sm:$0xe]
      %v2876 = vld [vmem:[%s1776 + $0xb4] sm:$0xe]
      %v2925 = vrot.slane %v2861, 5
      %v2926 = vrot.slane %v2925, 4
      %v2927 = vrot.slane %v2136, 5
      %v2928 = vsel %vm1369, %v2926, %v2927
      %v2929 = vrot.slane %v2927, 4
      %v2930 = vrot.slane %v2137, 5
      %v2931 = vsel %vm1369, %v2929, %v2930
      %v2932 = vrot.slane %v2862, 5
      %v2933 = vrot.slane %v2932, 4
      %v2934 = vrot.slane %v2139, 5
      %v2935 = vsel %vm1369, %v2933, %v2934
      %v2936 = vrot.slane %v2934, 4
      %v2937 = vrot.slane %v2140, 5
      %v2938 = vsel %vm1369, %v2936, %v2937
      %v2939 = vrot.slane %v2863, 5
      %v2940 = vrot.slane %v2939, 4
      %v2941 = vrot.slane %v2142, 5
      %v2942 = vsel %vm1369, %v2940, %v2941
      %v2943 = vrot.slane %v2941, 4
      %v2944 = vrot.slane %v2143, 5
      %v2945 = vsel %vm1369, %v2943, %v2944
      %v2946 = vrot.slane %v2864, 5
      %v2947 = vrot.slane %v2946, 4
      %v2948 = vrot.slane %v2145, 5
      %v2949 = vsel %vm1369, %v2947, %v2948
      %v2950 = vrot.slane %v2948, 4
      %v2951 = vrot.slane %v2146, 5
      %v2952 = vsel %vm1369, %v2950, %v2951
      %v2953 = vrot.slane %v2865, 5
      %v2954 = vrot.slane %v2953, 4
      %v2955 = vrot.slane %v2148, 5
      %v2956 = vsel %vm1369, %v2954, %v2955
      %v2957 = vrot.slane %v2955, 4
      %v2958 = vrot.slane %v2149, 5
      %v2959 = vsel %vm1369, %v2957, %v2958
      %v2960 = vrot.slane %v2866, 5
      %v2961 = vrot.slane %v2960, 4
      %v2962 = vrot.slane %v2151, 5
      %v2963 = vsel %vm1369, %v2961, %v2962
      %v2964 = vrot.slane %v2962, 4
      %v2965 = vrot.slane %v2152, 5
      %v2966 = vsel %vm1369, %v2964, %v2965
      %v2967 = vrot.slane %v2867, 5
      %v2968 = vrot.slane %v2967, 4
      %v2969 = vrot.slane %v2154, 5
      %v2970 = vsel %vm1369, %v2968, %v2969
      %v2971 = vrot.slane %v2969, 4
      %v2972 = vrot.slane %v2155, 5
      %v2973 = vsel %vm1369, %v2971, %v2972
      %v2974 = vrot.slane %v2868, 5
      %v2975 = vrot.slane %v2974, 4
      %v2976 = vrot.slane %v2157, 5
      %v2977 = vsel %vm1369, %v2975, %v2976
      %v2978 = vrot.slane %v2976, 4
      %v2979 = vrot.slane %v2158, 5
      %v2980 = vsel %vm1369, %v2978, %v2979
      %v2981 = vrot.slane %v2869, 5
      %v2982 = vrot.slane %v2981, 4
      %v2983 = vrot.slane %v2160, 5
      %v2984 = vsel %vm1369, %v2982, %v2983
      %v2985 = vrot.slane %v2983, 4
      %v2986 = vrot.slane %v2161, 5
      %v2987 = vsel %vm1369, %v2985, %v2986
      %v2988 = vrot.slane %v2870, 5
      %v2989 = vrot.slane %v2988, 4
      %v2990 = vrot.slane %v2163, 5
      %v2991 = vsel %vm1369, %v2989, %v2990
      %v2992 = vrot.slane %v2990, 4
      %v2993 = vrot.slane %v2164, 5
      %v2994 = vsel %vm1369, %v2992, %v2993
      %v2995 = vrot.slane %v2871, 5
      %v2996 = vrot.slane %v2995, 4
      %v2997 = vrot.slane %v2166, 5
      %v2998 = vsel %vm1369, %v2996, %v2997
      %v2999 = vrot.slane %v2997, 4
      %v3000 = vrot.slane %v2167, 5
      %v3001 = vsel %vm1369, %v2999, %v3000
      %v3002 = vrot.slane %v2872, 5
      %v3003 = vrot.slane %v3002, 4
      %v3004 = vrot.slane %v2169, 5
      %v3005 = vsel %vm1369, %v3003, %v3004
      %v3006 = vrot.slane %v3004, 4
      %v3007 = vrot.slane %v2170, 5
      %v3008 = vsel %vm1369, %v3006, %v3007
      %v3009 = vrot.slane %v2873, 5
      %v3010 = vrot.slane %v3009, 4
      %v3011 = vrot.slane %v2172, 5
      %v3012 = vsel %vm1369, %v3010, %v3011
      %v3013 = vrot.slane %v3011, 4
      %v3014 = vrot.slane %v2173, 5
      %v3015 = vsel %vm1369, %v3013, %v3014
      %v3016 = vrot.slane %v2874, 5
      %v3017 = vrot.slane %v3016, 4
      %v3018 = vrot.slane %v2175, 5
      %v3019 = vsel %vm1369, %v3017, %v3018
      %v3020 = vrot.slane %v3018, 4
      %v3021 = vrot.slane %v2176, 5
      %v3022 = vsel %vm1369, %v3020, %v3021
      %v3023 = vrot.slane %v2875, 5
      %v3024 = vrot.slane %v3023, 4
      %v3025 = vrot.slane %v2178, 5
      %v3026 = vsel %vm1369, %v3024, %v3025
      %v3027 = vrot.slane %v3025, 4
      %v3028 = vrot.slane %v2179, 5
      %v3029 = vsel %vm1369, %v3027, %v3028
      %v3030 = vrot.slane %v2876, 5
      %v3031 = vrot.slane %v3030, 4
      %v3032 = vrot.slane %v2181, 5
      %v3033 = vsel %vm1369, %v3031, %v3032
      %v3034 = vrot.slane %v3032, 4
      %v3035 = vrot.slane %v2182, 5
      %v3036 = vsel %vm1369, %v3034, %v3035
      %s3037 = scalar_lea.vmem %s1, 10
      %v3038 = vld [vmem:[%s3037] sm:$0x3]
      %v3039 = vunpack.c.l.b16 %v2928
      %v3040 = vunpack.c.l.b16 %v2931
      %v3041 = vunpack.c.l.b16 %v2935
      %v3042 = vunpack.c.l.b16 %v2938
      %v3043 = vunpack.c.l.b16 %v2942
      %v3044 = vunpack.c.l.b16 %v2945
      %v3045 = vunpack.c.l.b16 %v2949
      %v3046 = vunpack.c.l.b16 %v2952
      %v3047 = vunpack.c.l.b16 %v2956
      %v3048 = vunpack.c.l.b16 %v2959
      %v3049 = vunpack.c.l.b16 %v2963
      %v3050 = vunpack.c.l.b16 %v2966
      %v3051 = vunpack.c.l.b16 %v2970
      %v3052 = vunpack.c.l.b16 %v2973
      %v3053 = vunpack.c.l.b16 %v2977
      %v3054 = vunpack.c.l.b16 %v2980
      %v3055 = vunpack.c.l.b16 %v2984
      %v3056 = vunpack.c.l.b16 %v2987
      %v3057 = vunpack.c.l.b16 %v2991
      %v3058 = vunpack.c.l.b16 %v2994
      %v3059 = vunpack.c.l.b16 %v2998
      %v3060 = vunpack.c.l.b16 %v3001
      %v3061 = vunpack.c.l.b16 %v3005
      %v3062 = vunpack.c.l.b16 %v3008
      %v3063 = vunpack.c.l.b16 %v3012
      %v3064 = vunpack.c.l.b16 %v3015
      %v3065 = vunpack.c.l.b16 %v3019
      %v3066 = vunpack.c.l.b16 %v3022
      %v3067 = vunpack.c.l.b16 %v3026
      %v3068 = vunpack.c.l.b16 %v3029
      %v3069 = vunpack.c.l.b16 %v3033
      %v3070 = vunpack.c.l.b16 %v3036
      %v3071 = vpack.c.b16 %v3040, %v3039
      %v3072 = vpack.c.b16 %v3042, %v3041
      %v3073 = vpack.c.b16 %v3044, %v3043
      %v3074 = vpack.c.b16 %v3046, %v3045
      %v3075 = vpack.c.b16 %v3048, %v3047
      %v3076 = vpack.c.b16 %v3050, %v3049
      %v3077 = vpack.c.b16 %v3052, %v3051
      %v3078 = vpack.c.b16 %v3054, %v3053
      %v3079 = vpack.c.b16 %v3056, %v3055
      %v3080 = vpack.c.b16 %v3058, %v3057
      %v3081 = vpack.c.b16 %v3060, %v3059
      %v3082 = vpack.c.b16 %v3062, %v3061
      %v3083 = vpack.c.b16 %v3064, %v3063
      %v3084 = vpack.c.b16 %v3066, %v3065
      %v3085 = vpack.c.b16 %v3068, %v3067
      %v3086 = vpack.c.b16 %v3070, %v3069
      %v3088 = vsel %vm813, %v3071, 0
      %v3091 = vsel %vm813, %v3072, 0
      %v3094 = vsel %vm813, %v3073, 0
      %v3097 = vsel %vm813, %v3074, 0
      %v3100 = vsel %vm813, %v3075, 0
      %v3103 = vsel %vm813, %v3076, 0
      %v3106 = vsel %vm813, %v3077, 0
      %v3109 = vsel %vm813, %v3078, 0
      %v3112 = vsel %vm813, %v3079, 0
      %v3115 = vsel %vm813, %v3080, 0
      %v3118 = vsel %vm813, %v3081, 0
      %v3121 = vsel %vm813, %v3082, 0
      %v3124 = vsel %vm813, %v3083, 0
      %v3127 = vsel %vm813, %v3084, 0
      %v3130 = vsel %vm813, %v3085, 0
      %v3133 = vsel %vm813, %v3086, 0
      %v3136 = vsel %vm862, %v3038, 0
      %3138 = vmatprep.subr.bf16.mxu0 0
      %3139 = vmatpush1.bf16.msra.mxu0 0
      %3140 = vmatprep.subr.bf16.mxu0 0
      %3141 = vmatpush1.bf16.msra.mxu0 0
      %3142 = vmatprep.subr.bf16.mxu0 0
      %3143 = vmatpush1.bf16.msra.mxu0 0
      %3144 = vmatprep.subr.bf16.mxu0 0
      %3145 = vmatpush1.bf16.msra.mxu0 0
      %3146 = vmatprep.subr.bf16.mxu0 0
      %3147 = vmatpush1.bf16.msra.mxu0 0
      %3148 = vmatprep.subr.bf16.mxu0 0
      %3149 = vmatpush1.bf16.msra.mxu0 0
      %3150 = vmatprep.subr.bf16.mxu0 0
      %3151 = vmatpush1.bf16.msra.mxu0 0
      %3152 = vmatprep.subr.bf16.mxu0 0
      %3153 = vmatpush1.bf16.msra.mxu0 %v3136
      %3154 = vmatprep.subr.bf16.mxu0 0
      %3155 = vmatpush2.bf16.msra.mxu0 0
      %3156 = vmatprep.subr.bf16.mxu0 0
      %3157 = vmatpush2.bf16.msra.mxu0 0
      %3158 = vmatprep.subr.bf16.mxu0 0
      %3159 = vmatpush2.bf16.msra.mxu0 0
      %3160 = vmatprep.subr.bf16.mxu0 0
      %3161 = vmatpush2.bf16.msra.mxu0 0
      %3162 = vmatprep.subr.bf16.mxu0 0
      %3163 = vmatpush2.bf16.msra.mxu0 0
      %3164 = vmatprep.subr.bf16.mxu0 0
      %3165 = vmatpush2.bf16.msra.mxu0 0
      %3166 = vmatprep.subr.bf16.mxu0 0
      %3167 = vmatpush2.bf16.msra.mxu0 0
      %3168 = vmatprep.subr.bf16.mxu0 0
      %3169 = vmatpush2.bf16.msra.mxu0 0
      %3170 = vmatprep.mubr.bf16.mxu0 0
      %3171 = vmatmul.mubr.bf16.gmra.mxu0 %v3088
      %v3172 = vpop.f32.mrf.mxu0
      %v3173 = vadd.f32 0.0, %v3172
      %v3174 = vpop.f32.mrf.mxu0
      %v3175 = vpop.f32.mrf.mxu0
      %v3176 = vadd.f32 0.0, %v3175
      %v3177 = vpop.f32.mrf.mxu0
      %3178 = vmatprep.mubr.bf16.mxu0 0
      %3179 = vmatmul.mubr.bf16.gmra.mxu0 %v3091
      %v3180 = vpop.f32.mrf.mxu0
      %v3181 = vadd.f32 0.0, %v3180
      %v3182 = vpop.f32.mrf.mxu0
      %v3183 = vpop.f32.mrf.mxu0
      %v3184 = vadd.f32 0.0, %v3183
      %v3185 = vpop.f32.mrf.mxu0
      %3186 = vmatprep.mubr.bf16.mxu0 0
      %3187 = vmatmul.mubr.bf16.gmra.mxu0 %v3094
      %v3188 = vpop.f32.mrf.mxu0
      %v3189 = vadd.f32 0.0, %v3188
      %v3190 = vpop.f32.mrf.mxu0
      %v3191 = vpop.f32.mrf.mxu0
      %v3192 = vadd.f32 0.0, %v3191
      %v3193 = vpop.f32.mrf.mxu0
      %3194 = vmatprep.mubr.bf16.mxu0 0
      %3195 = vmatmul.mubr.bf16.gmra.mxu0 %v3097
      %v3196 = vpop.f32.mrf.mxu0
      %v3197 = vadd.f32 0.0, %v3196
      %v3198 = vpop.f32.mrf.mxu0
      %v3199 = vpop.f32.mrf.mxu0
      %v3200 = vadd.f32 0.0, %v3199
      %v3201 = vpop.f32.mrf.mxu0
      %3202 = vmatprep.mubr.bf16.mxu0 0
      %3203 = vmatmul.mubr.bf16.gmra.mxu0 %v3100
      %v3204 = vpop.f32.mrf.mxu0
      %v3205 = vadd.f32 0.0, %v3204
      %v3206 = vpop.f32.mrf.mxu0
      %v3207 = vpop.f32.mrf.mxu0
      %v3208 = vadd.f32 0.0, %v3207
      %v3209 = vpop.f32.mrf.mxu0
      %3210 = vmatprep.mubr.bf16.mxu0 0
      %3211 = vmatmul.mubr.bf16.gmra.mxu0 %v3103
      %v3212 = vpop.f32.mrf.mxu0
      %v3213 = vadd.f32 0.0, %v3212
      %v3214 = vpop.f32.mrf.mxu0
      %v3215 = vpop.f32.mrf.mxu0
      %v3216 = vadd.f32 0.0, %v3215
      %v3217 = vpop.f32.mrf.mxu0
      %3218 = vmatprep.mubr.bf16.mxu0 0
      %3219 = vmatmul.mubr.bf16.gmra.mxu0 %v3106
      %v3220 = vpop.f32.mrf.mxu0
      %v3221 = vadd.f32 0.0, %v3220
      %v3222 = vpop.f32.mrf.mxu0
      %v3223 = vpop.f32.mrf.mxu0
      %v3224 = vadd.f32 0.0, %v3223
      %v3225 = vpop.f32.mrf.mxu0
      %3226 = vmatprep.mubr.bf16.mxu0 0
      %3227 = vmatmul.mubr.bf16.gmra.mxu0 %v3109
      %v3228 = vpop.f32.mrf.mxu0
      %v3229 = vadd.f32 0.0, %v3228
      %v3230 = vpop.f32.mrf.mxu0
      %v3231 = vpop.f32.mrf.mxu0
      %v3232 = vadd.f32 0.0, %v3231
      %v3233 = vpop.f32.mrf.mxu0
      %3234 = vmatprep.mubr.bf16.mxu0 0
      %3235 = vmatmul.mubr.bf16.gmra.mxu0 %v3112
      %v3236 = vpop.f32.mrf.mxu0
      %v3237 = vadd.f32 0.0, %v3236
      %v3238 = vpop.f32.mrf.mxu0
      %v3239 = vpop.f32.mrf.mxu0
      %v3240 = vadd.f32 0.0, %v3239
      %v3241 = vpop.f32.mrf.mxu0
      %3242 = vmatprep.mubr.bf16.mxu0 0
      %3243 = vmatmul.mubr.bf16.gmra.mxu0 %v3115
      %v3244 = vpop.f32.mrf.mxu0
      %v3245 = vadd.f32 0.0, %v3244
      %v3246 = vpop.f32.mrf.mxu0
      %v3247 = vpop.f32.mrf.mxu0
      %v3248 = vadd.f32 0.0, %v3247
      %v3249 = vpop.f32.mrf.mxu0
      %3250 = vmatprep.mubr.bf16.mxu0 0
      %3251 = vmatmul.mubr.bf16.gmra.mxu0 %v3118
      %v3252 = vpop.f32.mrf.mxu0
      %v3253 = vadd.f32 0.0, %v3252
      %v3254 = vpop.f32.mrf.mxu0
      %v3255 = vpop.f32.mrf.mxu0
      %v3256 = vadd.f32 0.0, %v3255
      %v3257 = vpop.f32.mrf.mxu0
      %3258 = vmatprep.mubr.bf16.mxu0 0
      %3259 = vmatmul.mubr.bf16.gmra.mxu0 %v3121
      %v3260 = vpop.f32.mrf.mxu0
      %v3261 = vadd.f32 0.0, %v3260
      %v3262 = vpop.f32.mrf.mxu0
      %v3263 = vpop.f32.mrf.mxu0
      %v3264 = vadd.f32 0.0, %v3263
      %v3265 = vpop.f32.mrf.mxu0
      %3266 = vmatprep.mubr.bf16.mxu0 0
      %3267 = vmatmul.mubr.bf16.gmra.mxu0 %v3124
      %v3268 = vpop.f32.mrf.mxu0
      %v3269 = vadd.f32 0.0, %v3268
      %v3270 = vpop.f32.mrf.mxu0
      %v3271 = vpop.f32.mrf.mxu0
      %v3272 = vadd.f32 0.0, %v3271
      %v3273 = vpop.f32.mrf.mxu0
      %3274 = vmatprep.mubr.bf16.mxu0 0
      %3275 = vmatmul.mubr.bf16.gmra.mxu0 %v3127
      %v3276 = vpop.f32.mrf.mxu0
      %v3277 = vadd.f32 0.0, %v3276
      %v3278 = vpop.f32.mrf.mxu0
      %v3279 = vpop.f32.mrf.mxu0
      %v3280 = vadd.f32 0.0, %v3279
      %v3281 = vpop.f32.mrf.mxu0
      %3282 = vmatprep.mubr.bf16.mxu0 0
      %3283 = vmatmul.mubr.bf16.gmra.mxu0 %v3130
      %v3284 = vpop.f32.mrf.mxu0
      %v3285 = vadd.f32 0.0, %v3284
      %v3286 = vpop.f32.mrf.mxu0
      %v3287 = vpop.f32.mrf.mxu0
      %v3288 = vadd.f32 0.0, %v3287
      %v3289 = vpop.f32.mrf.mxu0
      %3290 = vmatprep.mubr.bf16.mxu0 0
      %3291 = vmatmul.mubr.bf16.gmra.mxu0 %v3133
      %v3292 = vpop.f32.mrf.mxu0
      %v3293 = vadd.f32 0.0, %v3292
      %v3294 = vpop.f32.mrf.mxu0
      %v3295 = vpop.f32.mrf.mxu0
      %v3296 = vadd.f32 0.0, %v3295
      %v3297 = vpop.f32.mrf.mxu0
      %3298 = vdwg.mxu0
      %v3299 = vadd.f32 %v2829, %v3173
      %v3300 = vadd.f32 %v2830, %v3176
      %v3301 = vadd.f32 %v2831, %v3181
      %v3302 = vadd.f32 %v2832, %v3184
      %v3303 = vadd.f32 %v2833, %v3189
      %v3304 = vadd.f32 %v2834, %v3192
      %v3305 = vadd.f32 %v2835, %v3197
      %v3306 = vadd.f32 %v2836, %v3200
      %v3307 = vadd.f32 %v2837, %v3205
      %v3308 = vadd.f32 %v2838, %v3208
      %v3309 = vadd.f32 %v2839, %v3213
      %v3310 = vadd.f32 %v2840, %v3216
      %v3311 = vadd.f32 %v2841, %v3221
      %v3312 = vadd.f32 %v2842, %v3224
      %v3313 = vadd.f32 %v2843, %v3229
      %v3314 = vadd.f32 %v2844, %v3232
      %v3315 = vadd.f32 %v2845, %v3237
      %v3316 = vadd.f32 %v2846, %v3240
      %v3317 = vadd.f32 %v2847, %v3245
      %v3318 = vadd.f32 %v2848, %v3248
      %v3319 = vadd.f32 %v2849, %v3253
      %v3320 = vadd.f32 %v2850, %v3256
      %v3321 = vadd.f32 %v2851, %v3261
      %v3322 = vadd.f32 %v2852, %v3264
      %v3323 = vadd.f32 %v2853, %v3269
      %v3324 = vadd.f32 %v2854, %v3272
      %v3325 = vadd.f32 %v2855, %v3277
      %v3326 = vadd.f32 %v2856, %v3280
      %v3327 = vadd.f32 %v2857, %v3285
      %v3328 = vadd.f32 %v2858, %v3288
      %v3329 = vadd.f32 %v2859, %v3293
      %v3330 = vadd.f32 %v2860, %v3296
      %s3331 = scalar_lea.vmem %s315, 24
      %v3332 = vld [vmem:[%s3331] sm:$0xf]
      %v3333 = vld [vmem:[%s3331 + $0x4] sm:$0xf]
      %v3334 = vld [vmem:[%s3331 + $0xc] sm:$0xf]
      %v3335 = vld [vmem:[%s3331 + $0x10] sm:$0xf]
      %v3336 = vld [vmem:[%s3331 + $0x18] sm:$0xf]
      %v3337 = vld [vmem:[%s3331 + $0x1c] sm:$0xf]
      %v3338 = vld [vmem:[%s3331 + $0x24] sm:$0xf]
      %v3339 = vld [vmem:[%s3331 + $0x28] sm:$0xf]
      %v3340 = vld [vmem:[%s3331 + $0x30] sm:$0xf]
      %v3341 = vld [vmem:[%s3331 + $0x34] sm:$0xf]
      %v3342 = vld [vmem:[%s3331 + $0x3c] sm:$0xf]
      %v3343 = vld [vmem:[%s3331 + $0x40] sm:$0xf]
      %v3344 = vld [vmem:[%s3331 + $0x48] sm:$0xf]
      %v3345 = vld [vmem:[%s3331 + $0x4c] sm:$0xf]
      %v3346 = vld [vmem:[%s3331 + $0x54] sm:$0xf]
      %v3347 = vld [vmem:[%s3331 + $0x58] sm:$0xf]
      %v3348 = vld [vmem:[%s3331 + $0x60] sm:$0xf]
      %v3349 = vld [vmem:[%s3331 + $0x64] sm:$0xf]
      %v3350 = vld [vmem:[%s3331 + $0x6c] sm:$0xf]
      %v3351 = vld [vmem:[%s3331 + $0x70] sm:$0xf]
      %v3352 = vld [vmem:[%s3331 + $0x78] sm:$0xf]
      %v3353 = vld [vmem:[%s3331 + $0x7c] sm:$0xf]
      %v3354 = vld [vmem:[%s3331 + $0x84] sm:$0xf]
      %v3355 = vld [vmem:[%s3331 + $0x88] sm:$0xf]
      %v3356 = vld [vmem:[%s3331 + $0x90] sm:$0xf]
      %v3357 = vld [vmem:[%s3331 + $0x94] sm:$0xf]
      %v3358 = vld [vmem:[%s3331 + $0x9c] sm:$0xf]
      %v3359 = vld [vmem:[%s3331 + $0xa0] sm:$0xf]
      %v3360 = vld [vmem:[%s3331 + $0xa8] sm:$0xf]
      %v3361 = vld [vmem:[%s3331 + $0xac] sm:$0xf]
      %v3362 = vld [vmem:[%s3331 + $0xb4] sm:$0xf]
      %v3363 = vld [vmem:[%s3331 + $0xb8] sm:$0xf]
      %s3364 = scalar_lea.vmem %s1, 12
      %v3365 = vld [vmem:[%s3364] sm:$0x3]
      %v3398 = vunpack.c.l.b16 %v3332
      %v3399 = vunpack.c.l.b16 %v3333
      %v3400 = vunpack.c.l.b16 %v3334
      %v3401 = vunpack.c.l.b16 %v3335
      %v3402 = vunpack.c.l.b16 %v3336
      %v3403 = vunpack.c.l.b16 %v3337
      %v3404 = vunpack.c.l.b16 %v3338
      %v3405 = vunpack.c.l.b16 %v3339
      %v3406 = vunpack.c.l.b16 %v3340
      %v3407 = vunpack.c.l.b16 %v3341
      %v3408 = vunpack.c.l.b16 %v3342
      %v3409 = vunpack.c.l.b16 %v3343
      %v3410 = vunpack.c.l.b16 %v3344
      %v3411 = vunpack.c.l.b16 %v3345
      %v3412 = vunpack.c.l.b16 %v3346
      %v3413 = vunpack.c.l.b16 %v3347
      %v3414 = vunpack.c.l.b16 %v3348
      %v3415 = vunpack.c.l.b16 %v3349
      %v3416 = vunpack.c.l.b16 %v3350
      %v3417 = vunpack.c.l.b16 %v3351
      %v3418 = vunpack.c.l.b16 %v3352
      %v3419 = vunpack.c.l.b16 %v3353
      %v3420 = vunpack.c.l.b16 %v3354
      %v3421 = vunpack.c.l.b16 %v3355
      %v3422 = vunpack.c.l.b16 %v3356
      %v3423 = vunpack.c.l.b16 %v3357
      %v3424 = vunpack.c.l.b16 %v3358
      %v3425 = vunpack.c.l.b16 %v3359
      %v3426 = vunpack.c.l.b16 %v3360
      %v3427 = vunpack.c.l.b16 %v3361
      %v3428 = vunpack.c.l.b16 %v3362
      %v3429 = vunpack.c.l.b16 %v3363
      %v3430 = vpack.c.b16 %v3399, %v3398
      %v3431 = vpack.c.b16 %v3401, %v3400
      %v3432 = vpack.c.b16 %v3403, %v3402
      %v3433 = vpack.c.b16 %v3405, %v3404
      %v3434 = vpack.c.b16 %v3407, %v3406
      %v3435 = vpack.c.b16 %v3409, %v3408
      %v3436 = vpack.c.b16 %v3411, %v3410
      %v3437 = vpack.c.b16 %v3413, %v3412
      %v3438 = vpack.c.b16 %v3415, %v3414
      %v3439 = vpack.c.b16 %v3417, %v3416
      %v3440 = vpack.c.b16 %v3419, %v3418
      %v3441 = vpack.c.b16 %v3421, %v3420
      %v3442 = vpack.c.b16 %v3423, %v3422
      %v3443 = vpack.c.b16 %v3425, %v3424
      %v3444 = vpack.c.b16 %v3427, %v3426
      %v3445 = vpack.c.b16 %v3429, %v3428
      %v3447 = vsel %vm813, %v3430, 0
      %v3450 = vsel %vm813, %v3431, 0
      %v3453 = vsel %vm813, %v3432, 0
      %v3456 = vsel %vm813, %v3433, 0
      %v3459 = vsel %vm813, %v3434, 0
      %v3462 = vsel %vm813, %v3435, 0
      %v3465 = vsel %vm813, %v3436, 0
      %v3468 = vsel %vm813, %v3437, 0
      %v3471 = vsel %vm813, %v3438, 0
      %v3474 = vsel %vm813, %v3439, 0
      %v3477 = vsel %vm813, %v3440, 0
      %v3480 = vsel %vm813, %v3441, 0
      %v3483 = vsel %vm813, %v3442, 0
      %v3486 = vsel %vm813, %v3443, 0
      %v3489 = vsel %vm813, %v3444, 0
      %v3492 = vsel %vm813, %v3445, 0
      %v3495 = vsel %vm862, %v3365, 0
      %3497 = vmatprep.subr.bf16.mxu0 0
      %3498 = vmatpush1.bf16.msra.mxu0 0
      %3499 = vmatprep.subr.bf16.mxu0 0
      %3500 = vmatpush1.bf16.msra.mxu0 0
      %3501 = vmatprep.subr.bf16.mxu0 0
      %3502 = vmatpush1.bf16.msra.mxu0 0
      %3503 = vmatprep.subr.bf16.mxu0 0
      %3504 = vmatpush1.bf16.msra.mxu0 0
      %3505 = vmatprep.subr.bf16.mxu0 0
      %3506 = vmatpush1.bf16.msra.mxu0 0
      %3507 = vmatprep.subr.bf16.mxu0 0
      %3508 = vmatpush1.bf16.msra.mxu0 0
      %3509 = vmatprep.subr.bf16.mxu0 0
      %3510 = vmatpush1.bf16.msra.mxu0 0
      %3511 = vmatprep.subr.bf16.mxu0 0
      %3512 = vmatpush1.bf16.msra.mxu0 %v3495
      %3513 = vmatprep.subr.bf16.mxu0 0
      %3514 = vmatpush2.bf16.msra.mxu0 0
      %3515 = vmatprep.subr.bf16.mxu0 0
      %3516 = vmatpush2.bf16.msra.mxu0 0
      %3517 = vmatprep.subr.bf16.mxu0 0
      %3518 = vmatpush2.bf16.msra.mxu0 0
      %3519 = vmatprep.subr.bf16.mxu0 0
      %3520 = vmatpush2.bf16.msra.mxu0 0
      %3521 = vmatprep.subr.bf16.mxu0 0
      %3522 = vmatpush2.bf16.msra.mxu0 0
      %3523 = vmatprep.subr.bf16.mxu0 0
      %3524 = vmatpush2.bf16.msra.mxu0 0
      %3525 = vmatprep.subr.bf16.mxu0 0
      %3526 = vmatpush2.bf16.msra.mxu0 0
      %3527 = vmatprep.subr.bf16.mxu0 0
      %3528 = vmatpush2.bf16.msra.mxu0 0
      %3529 = vmatprep.mubr.bf16.mxu0 0
      %3530 = vmatmul.mubr.bf16.gmra.mxu0 %v3447
      %v3531 = vpop.f32.mrf.mxu0
      %v3532 = vadd.f32 0.0, %v3531
      %v3533 = vpop.f32.mrf.mxu0
      %v3534 = vpop.f32.mrf.mxu0
      %v3535 = vadd.f32 0.0, %v3534
      %v3536 = vpop.f32.mrf.mxu0
      %3537 = vmatprep.mubr.bf16.mxu0 0
      %3538 = vmatmul.mubr.bf16.gmra.mxu0 %v3450
      %v3539 = vpop.f32.mrf.mxu0
      %v3540 = vadd.f32 0.0, %v3539
      %v3541 = vpop.f32.mrf.mxu0
      %v3542 = vpop.f32.mrf.mxu0
      %v3543 = vadd.f32 0.0, %v3542
      %v3544 = vpop.f32.mrf.mxu0
      %3545 = vmatprep.mubr.bf16.mxu0 0
      %3546 = vmatmul.mubr.bf16.gmra.mxu0 %v3453
      %v3547 = vpop.f32.mrf.mxu0
      %v3548 = vadd.f32 0.0, %v3547
      %v3549 = vpop.f32.mrf.mxu0
      %v3550 = vpop.f32.mrf.mxu0
      %v3551 = vadd.f32 0.0, %v3550
      %v3552 = vpop.f32.mrf.mxu0
      %3553 = vmatprep.mubr.bf16.mxu0 0
      %3554 = vmatmul.mubr.bf16.gmra.mxu0 %v3456
      %v3555 = vpop.f32.mrf.mxu0
      %v3556 = vadd.f32 0.0, %v3555
      %v3557 = vpop.f32.mrf.mxu0
      %v3558 = vpop.f32.mrf.mxu0
      %v3559 = vadd.f32 0.0, %v3558
      %v3560 = vpop.f32.mrf.mxu0
      %3561 = vmatprep.mubr.bf16.mxu0 0
      %3562 = vmatmul.mubr.bf16.gmra.mxu0 %v3459
      %v3563 = vpop.f32.mrf.mxu0
      %v3564 = vadd.f32 0.0, %v3563
      %v3565 = vpop.f32.mrf.mxu0
      %v3566 = vpop.f32.mrf.mxu0
      %v3567 = vadd.f32 0.0, %v3566
      %v3568 = vpop.f32.mrf.mxu0
      %3569 = vmatprep.mubr.bf16.mxu0 0
      %3570 = vmatmul.mubr.bf16.gmra.mxu0 %v3462
      %v3571 = vpop.f32.mrf.mxu0
      %v3572 = vadd.f32 0.0, %v3571
      %v3573 = vpop.f32.mrf.mxu0
      %v3574 = vpop.f32.mrf.mxu0
      %v3575 = vadd.f32 0.0, %v3574
      %v3576 = vpop.f32.mrf.mxu0
      %3577 = vmatprep.mubr.bf16.mxu0 0
      %3578 = vmatmul.mubr.bf16.gmra.mxu0 %v3465
      %v3579 = vpop.f32.mrf.mxu0
      %v3580 = vadd.f32 0.0, %v3579
      %v3581 = vpop.f32.mrf.mxu0
      %v3582 = vpop.f32.mrf.mxu0
      %v3583 = vadd.f32 0.0, %v3582
      %v3584 = vpop.f32.mrf.mxu0
      %3585 = vmatprep.mubr.bf16.mxu0 0
      %3586 = vmatmul.mubr.bf16.gmra.mxu0 %v3468
      %v3587 = vpop.f32.mrf.mxu0
      %v3588 = vadd.f32 0.0, %v3587
      %v3589 = vpop.f32.mrf.mxu0
      %v3590 = vpop.f32.mrf.mxu0
      %v3591 = vadd.f32 0.0, %v3590
      %v3592 = vpop.f32.mrf.mxu0
      %3593 = vmatprep.mubr.bf16.mxu0 0
      %3594 = vmatmul.mubr.bf16.gmra.mxu0 %v3471
      %v3595 = vpop.f32.mrf.mxu0
      %v3596 = vadd.f32 0.0, %v3595
      %v3597 = vpop.f32.mrf.mxu0
      %v3598 = vpop.f32.mrf.mxu0
      %v3599 = vadd.f32 0.0, %v3598
      %v3600 = vpop.f32.mrf.mxu0
      %3601 = vmatprep.mubr.bf16.mxu0 0
      %3602 = vmatmul.mubr.bf16.gmra.mxu0 %v3474
      %v3603 = vpop.f32.mrf.mxu0
      %v3604 = vadd.f32 0.0, %v3603
      %v3605 = vpop.f32.mrf.mxu0
      %v3606 = vpop.f32.mrf.mxu0
      %v3607 = vadd.f32 0.0, %v3606
      %v3608 = vpop.f32.mrf.mxu0
      %3609 = vmatprep.mubr.bf16.mxu0 0
      %3610 = vmatmul.mubr.bf16.gmra.mxu0 %v3477
      %v3611 = vpop.f32.mrf.mxu0
      %v3612 = vadd.f32 0.0, %v3611
      %v3613 = vpop.f32.mrf.mxu0
      %v3614 = vpop.f32.mrf.mxu0
      %v3615 = vadd.f32 0.0, %v3614
      %v3616 = vpop.f32.mrf.mxu0
      %3617 = vmatprep.mubr.bf16.mxu0 0
      %3618 = vmatmul.mubr.bf16.gmra.mxu0 %v3480
      %v3619 = vpop.f32.mrf.mxu0
      %v3620 = vadd.f32 0.0, %v3619
      %v3621 = vpop.f32.mrf.mxu0
      %v3622 = vpop.f32.mrf.mxu0
      %v3623 = vadd.f32 0.0, %v3622
      %v3624 = vpop.f32.mrf.mxu0
      %3625 = vmatprep.mubr.bf16.mxu0 0
      %3626 = vmatmul.mubr.bf16.gmra.mxu0 %v3483
      %v3627 = vpop.f32.mrf.mxu0
      %v3628 = vadd.f32 0.0, %v3627
      %v3629 = vpop.f32.mrf.mxu0
      %v3630 = vpop.f32.mrf.mxu0
      %v3631 = vadd.f32 0.0, %v3630
      %v3632 = vpop.f32.mrf.mxu0
      %3633 = vmatprep.mubr.bf16.mxu0 0
      %3634 = vmatmul.mubr.bf16.gmra.mxu0 %v3486
      %v3635 = vpop.f32.mrf.mxu0
      %v3636 = vadd.f32 0.0, %v3635
      %v3637 = vpop.f32.mrf.mxu0
      %v3638 = vpop.f32.mrf.mxu0
      %v3639 = vadd.f32 0.0, %v3638
      %v3640 = vpop.f32.mrf.mxu0
      %3641 = vmatprep.mubr.bf16.mxu0 0
      %3642 = vmatmul.mubr.bf16.gmra.mxu0 %v3489
      %v3643 = vpop.f32.mrf.mxu0
      %v3644 = vadd.f32 0.0, %v3643
      %v3645 = vpop.f32.mrf.mxu0
      %v3646 = vpop.f32.mrf.mxu0
      %v3647 = vadd.f32 0.0, %v3646
      %v3648 = vpop.f32.mrf.mxu0
      %3649 = vmatprep.mubr.bf16.mxu0 0
      %3650 = vmatmul.mubr.bf16.gmra.mxu0 %v3492
      %v3651 = vpop.f32.mrf.mxu0
      %v3652 = vadd.f32 0.0, %v3651
      %v3653 = vpop.f32.mrf.mxu0
      %v3654 = vpop.f32.mrf.mxu0
      %v3655 = vadd.f32 0.0, %v3654
      %v3656 = vpop.f32.mrf.mxu0
      %3657 = vdwg.mxu0
      %v3658 = vadd.f32 %v3299, %v3532
      %v3659 = vadd.f32 %v3300, %v3535
      %v3660 = vadd.f32 %v3301, %v3540
      %v3661 = vadd.f32 %v3302, %v3543
      %v3662 = vadd.f32 %v3303, %v3548
      %v3663 = vadd.f32 %v3304, %v3551
      %v3664 = vadd.f32 %v3305, %v3556
      %v3665 = vadd.f32 %v3306, %v3559
      %v3666 = vadd.f32 %v3307, %v3564
      %v3667 = vadd.f32 %v3308, %v3567
      %v3668 = vadd.f32 %v3309, %v3572
      %v3669 = vadd.f32 %v3310, %v3575
      %v3670 = vadd.f32 %v3311, %v3580
      %v3671 = vadd.f32 %v3312, %v3583
      %v3672 = vadd.f32 %v3313, %v3588
      %v3673 = vadd.f32 %v3314, %v3591
      %v3674 = vadd.f32 %v3315, %v3596
      %v3675 = vadd.f32 %v3316, %v3599
      %v3676 = vadd.f32 %v3317, %v3604
      %v3677 = vadd.f32 %v3318, %v3607
      %v3678 = vadd.f32 %v3319, %v3612
      %v3679 = vadd.f32 %v3320, %v3615
      %v3680 = vadd.f32 %v3321, %v3620
      %v3681 = vadd.f32 %v3322, %v3623
      %v3682 = vadd.f32 %v3323, %v3628
      %v3683 = vadd.f32 %v3324, %v3631
      %v3684 = vadd.f32 %v3325, %v3636
      %v3685 = vadd.f32 %v3326, %v3639
      %v3686 = vadd.f32 %v3327, %v3644
      %v3687 = vadd.f32 %v3328, %v3647
      %v3688 = vadd.f32 %v3329, %v3652
      %v3689 = vadd.f32 %v3330, %v3655
      %v3690 = vld [vmem:[%s3331] sm:$0xf]
      %v3691 = vld [vmem:[%s3331 + $0x4] sm:$0xf]
      %v3692 = vld [vmem:[%s3331 + $0x8] sm:$0x1]
      %v3693 = vld [vmem:[%s3331 + $0xc] sm:$0xf]
      %v3694 = vld [vmem:[%s3331 + $0x10] sm:$0xf]
      %v3695 = vld [vmem:[%s3331 + $0x14] sm:$0x1]
      %v3696 = vld [vmem:[%s3331 + $0x18] sm:$0xf]
      %v3697 = vld [vmem:[%s3331 + $0x1c] sm:$0xf]
      %v3698 = vld [vmem:[%s3331 + $0x20] sm:$0x1]
      %v3699 = vld [vmem:[%s3331 + $0x24] sm:$0xf]
      %v3700 = vld [vmem:[%s3331 + $0x28] sm:$0xf]
      %v3701 = vld [vmem:[%s3331 + $0x2c] sm:$0x1]
      %v3702 = vld [vmem:[%s3331 + $0x30] sm:$0xf]
      %v3703 = vld [vmem:[%s3331 + $0x34] sm:$0xf]
      %v3704 = vld [vmem:[%s3331 + $0x38] sm:$0x1]
      %v3705 = vld [vmem:[%s3331 + $0x3c] sm:$0xf]
      %v3706 = vld [vmem:[%s3331 + $0x40] sm:$0xf]
      %v3707 = vld [vmem:[%s3331 + $0x44] sm:$0x1]
      %v3708 = vld [vmem:[%s3331 + $0x48] sm:$0xf]
      %v3709 = vld [vmem:[%s3331 + $0x4c] sm:$0xf]
      %v3710 = vld [vmem:[%s3331 + $0x50] sm:$0x1]
      %v3711 = vld [vmem:[%s3331 + $0x54] sm:$0xf]
      %v3712 = vld [vmem:[%s3331 + $0x58] sm:$0xf]
      %v3713 = vld [vmem:[%s3331 + $0x5c] sm:$0x1]
      %v3714 = vld [vmem:[%s3331 + $0x60] sm:$0xf]
      %v3715 = vld [vmem:[%s3331 + $0x64] sm:$0xf]
      %v3716 = vld [vmem:[%s3331 + $0x68] sm:$0x1]
      %v3717 = vld [vmem:[%s3331 + $0x6c] sm:$0xf]
      %v3718 = vld [vmem:[%s3331 + $0x70] sm:$0xf]
      %v3719 = vld [vmem:[%s3331 + $0x74] sm:$0x1]
      %v3720 = vld [vmem:[%s3331 + $0x78] sm:$0xf]
      %v3721 = vld [vmem:[%s3331 + $0x7c] sm:$0xf]
      %v3722 = vld [vmem:[%s3331 + $0x80] sm:$0x1]
      %v3723 = vld [vmem:[%s3331 + $0x84] sm:$0xf]
      %v3724 = vld [vmem:[%s3331 + $0x88] sm:$0xf]
      %v3725 = vld [vmem:[%s3331 + $0x8c] sm:$0x1]
      %v3726 = vld [vmem:[%s3331 + $0x90] sm:$0xf]
      %v3727 = vld [vmem:[%s3331 + $0x94] sm:$0xf]
      %v3728 = vld [vmem:[%s3331 + $0x98] sm:$0x1]
      %v3729 = vld [vmem:[%s3331 + $0x9c] sm:$0xf]
      %v3730 = vld [vmem:[%s3331 + $0xa0] sm:$0xf]
      %v3731 = vld [vmem:[%s3331 + $0xa4] sm:$0x1]
      %v3732 = vld [vmem:[%s3331 + $0xa8] sm:$0xf]
      %v3733 = vld [vmem:[%s3331 + $0xac] sm:$0xf]
      %v3734 = vld [vmem:[%s3331 + $0xb0] sm:$0x1]
      %v3735 = vld [vmem:[%s3331 + $0xb4] sm:$0xf]
      %v3736 = vld [vmem:[%s3331 + $0xb8] sm:$0xf]
      %v3737 = vld [vmem:[%s3331 + $0xbc] sm:$0x1]
      %v3739 = vshrl.u32 %v3690, 16
      %v3741 = vrot.slane %v3739, 4
      %v3742 = vshll.u32 %v3690, 16
      %v3744 = vrot.slane %v3742, 5
      %v3745 = vor.u32 %v3741, %v3744
      %v3746 = vrot.slane %v3745, 4
      %v3748 = vshll.u32 %v3691, 16
      %v3750 = vrot.slane %v3748, 5
      %v3751 = vsel %vm378, %v3746, %v3750
      %v3752 = vshrl.u32 %v3691, 16
      %v3754 = vrot.slane %v3752, 4
      %v3755 = vor.u32 %v3754, %v3750
      %v3756 = vrot.slane %v3755, 4
      %v3758 = vshll.u32 %v3692, 16
      %v3760 = vrot.slane %v3758, 5
      %v3761 = vsel %vm378, %v3756, %v3760
      %v3763 = vshrl.u32 %v3693, 16
      %v3765 = vrot.slane %v3763, 4
      %v3766 = vshll.u32 %v3693, 16
      %v3768 = vrot.slane %v3766, 5
      %v3769 = vor.u32 %v3765, %v3768
      %v3770 = vrot.slane %v3769, 4
      %v3772 = vshll.u32 %v3694, 16
      %v3774 = vrot.slane %v3772, 5
      %v3775 = vsel %vm378, %v3770, %v3774
      %v3776 = vshrl.u32 %v3694, 16
      %v3778 = vrot.slane %v3776, 4
      %v3779 = vor.u32 %v3778, %v3774
      %v3780 = vrot.slane %v3779, 4
      %v3782 = vshll.u32 %v3695, 16
      %v3784 = vrot.slane %v3782, 5
      %v3785 = vsel %vm378, %v3780, %v3784
      %v3787 = vshrl.u32 %v3696, 16
      %v3789 = vrot.slane %v3787, 4
      %v3790 = vshll.u32 %v3696, 16
      %v3792 = vrot.slane %v3790, 5
      %v3793 = vor.u32 %v3789, %v3792
      %v3794 = vrot.slane %v3793, 4
      %v3796 = vshll.u32 %v3697, 16
      %v3798 = vrot.slane %v3796, 5
      %v3799 = vsel %vm378, %v3794, %v3798
      %v3800 = vshrl.u32 %v3697, 16
      %v3802 = vrot.slane %v3800, 4
      %v3803 = vor.u32 %v3802, %v3798
      %v3804 = vrot.slane %v3803, 4
      %v3806 = vshll.u32 %v3698, 16
      %v3808 = vrot.slane %v3806, 5
      %v3809 = vsel %vm378, %v3804, %v3808
      %v3811 = vshrl.u32 %v3699, 16
      %v3813 = vrot.slane %v3811, 4
      %v3814 = vshll.u32 %v3699, 16
      %v3816 = vrot.slane %v3814, 5
      %v3817 = vor.u32 %v3813, %v3816
      %v3818 = vrot.slane %v3817, 4
      %v3820 = vshll.u32 %v3700, 16
      %v3822 = vrot.slane %v3820, 5
      %v3823 = vsel %vm378, %v3818, %v3822
      %v3824 = vshrl.u32 %v3700, 16
      %v3826 = vrot.slane %v3824, 4
      %v3827 = vor.u32 %v3826, %v3822
      %v3828 = vrot.slane %v3827, 4
      %v3830 = vshll.u32 %v3701, 16
      %v3832 = vrot.slane %v3830, 5
      %v3833 = vsel %vm378, %v3828, %v3832
      %v3835 = vshrl.u32 %v3702, 16
      %v3837 = vrot.slane %v3835, 4
      %v3838 = vshll.u32 %v3702, 16
      %v3840 = vrot.slane %v3838, 5
      %v3841 = vor.u32 %v3837, %v3840
      %v3842 = vrot.slane %v3841, 4
      %v3844 = vshll.u32 %v3703, 16
      %v3846 = vrot.slane %v3844, 5
      %v3847 = vsel %vm378, %v3842, %v3846
      %v3848 = vshrl.u32 %v3703, 16
      %v3850 = vrot.slane %v3848, 4
      %v3851 = vor.u32 %v3850, %v3846
      %v3852 = vrot.slane %v3851, 4
      %v3854 = vshll.u32 %v3704, 16
      %v3856 = vrot.slane %v3854, 5
      %v3857 = vsel %vm378, %v3852, %v3856
      %v3859 = vshrl.u32 %v3705, 16
      %v3861 = vrot.slane %v3859, 4
      %v3862 = vshll.u32 %v3705, 16
      %v3864 = vrot.slane %v3862, 5
      %v3865 = vor.u32 %v3861, %v3864
      %v3866 = vrot.slane %v3865, 4
      %v3868 = vshll.u32 %v3706, 16
      %v3870 = vrot.slane %v3868, 5
      %v3871 = vsel %vm378, %v3866, %v3870
      %v3872 = vshrl.u32 %v3706, 16
      %v3874 = vrot.slane %v3872, 4
      %v3875 = vor.u32 %v3874, %v3870
      %v3876 = vrot.slane %v3875, 4
      %v3878 = vshll.u32 %v3707, 16
      %v3880 = vrot.slane %v3878, 5
      %v3881 = vsel %vm378, %v3876, %v3880
      %v3883 = vshrl.u32 %v3708, 16
      %v3885 = vrot.slane %v3883, 4
      %v3886 = vshll.u32 %v3708, 16
      %v3888 = vrot.slane %v3886, 5
      %v3889 = vor.u32 %v3885, %v3888
      %v3890 = vrot.slane %v3889, 4
      %v3892 = vshll.u32 %v3709, 16
      %v3894 = vrot.slane %v3892, 5
      %v3895 = vsel %vm378, %v3890, %v3894
      %v3896 = vshrl.u32 %v3709, 16
      %v3898 = vrot.slane %v3896, 4
      %v3899 = vor.u32 %v3898, %v3894
      %v3900 = vrot.slane %v3899, 4
      %v3902 = vshll.u32 %v3710, 16
      %v3904 = vrot.slane %v3902, 5
      %v3905 = vsel %vm378, %v3900, %v3904
      %v3907 = vshrl.u32 %v3711, 16
      %v3909 = vrot.slane %v3907, 4
      %v3910 = vshll.u32 %v3711, 16
      %v3912 = vrot.slane %v3910, 5
      %v3913 = vor.u32 %v3909, %v3912
      %v3914 = vrot.slane %v3913, 4
      %v3916 = vshll.u32 %v3712, 16
      %v3918 = vrot.slane %v3916, 5
      %v3919 = vsel %vm378, %v3914, %v3918
      %v3920 = vshrl.u32 %v3712, 16
      %v3922 = vrot.slane %v3920, 4
      %v3923 = vor.u32 %v3922, %v3918
      %v3924 = vrot.slane %v3923, 4
      %v3926 = vshll.u32 %v3713, 16
      %v3928 = vrot.slane %v3926, 5
      %v3929 = vsel %vm378, %v3924, %v3928
      %v3931 = vshrl.u32 %v3714, 16
      %v3933 = vrot.slane %v3931, 4
      %v3934 = vshll.u32 %v3714, 16
      %v3936 = vrot.slane %v3934, 5
      %v3937 = vor.u32 %v3933, %v3936
      %v3938 = vrot.slane %v3937, 4
      %v3940 = vshll.u32 %v3715, 16
      %v3942 = vrot.slane %v3940, 5
      %v3943 = vsel %vm378, %v3938, %v3942
      %v3944 = vshrl.u32 %v3715, 16
      %v3946 = vrot.slane %v3944, 4
      %v3947 = vor.u32 %v3946, %v3942
      %v3948 = vrot.slane %v3947, 4
      %v3950 = vshll.u32 %v3716, 16
      %v3952 = vrot.slane %v3950, 5
      %v3953 = vsel %vm378, %v3948, %v3952
      %v3955 = vshrl.u32 %v3717, 16
      %v3957 = vrot.slane %v3955, 4
      %v3958 = vshll.u32 %v3717, 16
      %v3960 = vrot.slane %v3958, 5
      %v3961 = vor.u32 %v3957, %v3960
      %v3962 = vrot.slane %v3961, 4
      %v3964 = vshll.u32 %v3718, 16
      %v3966 = vrot.slane %v3964, 5
      %v3967 = vsel %vm378, %v3962, %v3966
      %v3968 = vshrl.u32 %v3718, 16
      %v3970 = vrot.slane %v3968, 4
      %v3971 = vor.u32 %v3970, %v3966
      %v3972 = vrot.slane %v3971, 4
      %v3974 = vshll.u32 %v3719, 16
      %v3976 = vrot.slane %v3974, 5
      %v3977 = vsel %vm378, %v3972, %v3976
      %v3979 = vshrl.u32 %v3720, 16
      %v3981 = vrot.slane %v3979, 4
      %v3982 = vshll.u32 %v3720, 16
      %v3984 = vrot.slane %v3982, 5
      %v3985 = vor.u32 %v3981, %v3984
      %v3986 = vrot.slane %v3985, 4
      %v3988 = vshll.u32 %v3721, 16
      %v3990 = vrot.slane %v3988, 5
      %v3991 = vsel %vm378, %v3986, %v3990
      %v3992 = vshrl.u32 %v3721, 16
      %v3994 = vrot.slane %v3992, 4
      %v3995 = vor.u32 %v3994, %v3990
      %v3996 = vrot.slane %v3995, 4
      %v3998 = vshll.u32 %v3722, 16
      %v4000 = vrot.slane %v3998, 5
      %v4001 = vsel %vm378, %v3996, %v4000
      %v4003 = vshrl.u32 %v3723, 16
      %v4005 = vrot.slane %v4003, 4
      %v4006 = vshll.u32 %v3723, 16
      %v4008 = vrot.slane %v4006, 5
      %v4009 = vor.u32 %v4005, %v4008
      %v4010 = vrot.slane %v4009, 4
      %v4012 = vshll.u32 %v3724, 16
      %v4014 = vrot.slane %v4012, 5
      %v4015 = vsel %vm378, %v4010, %v4014
      %v4016 = vshrl.u32 %v3724, 16
      %v4018 = vrot.slane %v4016, 4
      %v4019 = vor.u32 %v4018, %v4014
      %v4020 = vrot.slane %v4019, 4
      %v4022 = vshll.u32 %v3725, 16
      %v4024 = vrot.slane %v4022, 5
      %v4025 = vsel %vm378, %v4020, %v4024
      %v4027 = vshrl.u32 %v3726, 16
      %v4029 = vrot.slane %v4027, 4
      %v4030 = vshll.u32 %v3726, 16
      %v4032 = vrot.slane %v4030, 5
      %v4033 = vor.u32 %v4029, %v4032
      %v4034 = vrot.slane %v4033, 4
      %v4036 = vshll.u32 %v3727, 16
      %v4038 = vrot.slane %v4036, 5
      %v4039 = vsel %vm378, %v4034, %v4038
      %v4040 = vshrl.u32 %v3727, 16
      %v4042 = vrot.slane %v4040, 4
      %v4043 = vor.u32 %v4042, %v4038
      %v4044 = vrot.slane %v4043, 4
      %v4046 = vshll.u32 %v3728, 16
      %v4048 = vrot.slane %v4046, 5
      %v4049 = vsel %vm378, %v4044, %v4048
      %v4051 = vshrl.u32 %v3729, 16
      %v4053 = vrot.slane %v4051, 4
      %v4054 = vshll.u32 %v3729, 16
      %v4056 = vrot.slane %v4054, 5
      %v4057 = vor.u32 %v4053, %v4056
      %v4058 = vrot.slane %v4057, 4
      %v4060 = vshll.u32 %v3730, 16
      %v4062 = vrot.slane %v4060, 5
      %v4063 = vsel %vm378, %v4058, %v4062
      %v4064 = vshrl.u32 %v3730, 16
      %v4066 = vrot.slane %v4064, 4
      %v4067 = vor.u32 %v4066, %v4062
      %v4068 = vrot.slane %v4067, 4
      %v4070 = vshll.u32 %v3731, 16
      %v4072 = vrot.slane %v4070, 5
      %v4073 = vsel %vm378, %v4068, %v4072
      %v4075 = vshrl.u32 %v3732, 16
      %v4077 = vrot.slane %v4075, 4
      %v4078 = vshll.u32 %v3732, 16
      %v4080 = vrot.slane %v4078, 5
      %v4081 = vor.u32 %v4077, %v4080
      %v4082 = vrot.slane %v4081, 4
      %v4084 = vshll.u32 %v3733, 16
      %v4086 = vrot.slane %v4084, 5
      %v4087 = vsel %vm378, %v4082, %v4086
      %v4088 = vshrl.u32 %v3733, 16
      %v4090 = vrot.slane %v4088, 4
      %v4091 = vor.u32 %v4090, %v4086
      %v4092 = vrot.slane %v4091, 4
      %v4094 = vshll.u32 %v3734, 16
      %v4096 = vrot.slane %v4094, 5
      %v4097 = vsel %vm378, %v4092, %v4096
      %v4099 = vshrl.u32 %v3735, 16
      %v4101 = vrot.slane %v4099, 4
      %v4102 = vshll.u32 %v3735, 16
      %v4104 = vrot.slane %v4102, 5
      %v4105 = vor.u32 %v4101, %v4104
      %v4106 = vrot.slane %v4105, 4
      %v4108 = vshll.u32 %v3736, 16
      %v4110 = vrot.slane %v4108, 5
      %v4111 = vsel %vm378, %v4106, %v4110
      %v4112 = vshrl.u32 %v3736, 16
      %v4114 = vrot.slane %v4112, 4
      %v4115 = vor.u32 %v4114, %v4110
      %v4116 = vrot.slane %v4115, 4
      %v4118 = vshll.u32 %v3737, 16
      %v4120 = vrot.slane %v4118, 5
      %v4121 = vsel %vm378, %v4116, %v4120
      %s4122 = scalar_lea.vmem %s1, 14
      %v4123 = vld [vmem:[%s4122] sm:$0x3]
      %v4124 = vunpack.c.l.b16 %v3751
      %v4125 = vunpack.c.l.b16 %v3761
      %v4126 = vunpack.c.l.b16 %v3775
      %v4127 = vunpack.c.l.b16 %v3785
      %v4128 = vunpack.c.l.b16 %v3799
      %v4129 = vunpack.c.l.b16 %v3809
      %v4130 = vunpack.c.l.b16 %v3823
      %v4131 = vunpack.c.l.b16 %v3833
      %v4132 = vunpack.c.l.b16 %v3847
      %v4133 = vunpack.c.l.b16 %v3857
      %v4134 = vunpack.c.l.b16 %v3871
      %v4135 = vunpack.c.l.b16 %v3881
      %v4136 = vunpack.c.l.b16 %v3895
      %v4137 = vunpack.c.l.b16 %v3905
      %v4138 = vunpack.c.l.b16 %v3919
      %v4139 = vunpack.c.l.b16 %v3929
      %v4140 = vunpack.c.l.b16 %v3943
      %v4141 = vunpack.c.l.b16 %v3953
      %v4142 = vunpack.c.l.b16 %v3967
      %v4143 = vunpack.c.l.b16 %v3977
      %v4144 = vunpack.c.l.b16 %v3991
      %v4145 = vunpack.c.l.b16 %v4001
      %v4146 = vunpack.c.l.b16 %v4015
      %v4147 = vunpack.c.l.b16 %v4025
      %v4148 = vunpack.c.l.b16 %v4039
      %v4149 = vunpack.c.l.b16 %v4049
      %v4150 = vunpack.c.l.b16 %v4063
      %v4151 = vunpack.c.l.b16 %v4073
      %v4152 = vunpack.c.l.b16 %v4087
      %v4153 = vunpack.c.l.b16 %v4097
      %v4154 = vunpack.c.l.b16 %v4111
      %v4155 = vunpack.c.l.b16 %v4121
      %v4156 = vpack.c.b16 %v4125, %v4124
      %v4157 = vpack.c.b16 %v4127, %v4126
      %v4158 = vpack.c.b16 %v4129, %v4128
      %v4159 = vpack.c.b16 %v4131, %v4130
      %v4160 = vpack.c.b16 %v4133, %v4132
      %v4161 = vpack.c.b16 %v4135, %v4134
      %v4162 = vpack.c.b16 %v4137, %v4136
      %v4163 = vpack.c.b16 %v4139, %v4138
      %v4164 = vpack.c.b16 %v4141, %v4140
      %v4165 = vpack.c.b16 %v4143, %v4142
      %v4166 = vpack.c.b16 %v4145, %v4144
      %v4167 = vpack.c.b16 %v4147, %v4146
      %v4168 = vpack.c.b16 %v4149, %v4148
      %v4169 = vpack.c.b16 %v4151, %v4150
      %v4170 = vpack.c.b16 %v4153, %v4152
      %v4171 = vpack.c.b16 %v4155, %v4154
      %v4173 = vsel %vm813, %v4156, 0
      %v4176 = vsel %vm813, %v4157, 0
      %v4179 = vsel %vm813, %v4158, 0
      %v4182 = vsel %vm813, %v4159, 0
      %v4185 = vsel %vm813, %v4160, 0
      %v4188 = vsel %vm813, %v4161, 0
      %v4191 = vsel %vm813, %v4162, 0
      %v4194 = vsel %vm813, %v4163, 0
      %v4197 = vsel %vm813, %v4164, 0
      %v4200 = vsel %vm813, %v4165, 0
      %v4203 = vsel %vm813, %v4166, 0
      %v4206 = vsel %vm813, %v4167, 0
      %v4209 = vsel %vm813, %v4168, 0
      %v4212 = vsel %vm813, %v4169, 0
      %v4215 = vsel %vm813, %v4170, 0
      %v4218 = vsel %vm813, %v4171, 0
      %v4221 = vsel %vm862, %v4123, 0
      %4223 = vmatprep.subr.bf16.mxu0 0
      %4224 = vmatpush1.bf16.msra.mxu0 0
      %4225 = vmatprep.subr.bf16.mxu0 0
      %4226 = vmatpush1.bf16.msra.mxu0 0
      %4227 = vmatprep.subr.bf16.mxu0 0
      %4228 = vmatpush1.bf16.msra.mxu0 0
      %4229 = vmatprep.subr.bf16.mxu0 0
      %4230 = vmatpush1.bf16.msra.mxu0 0
      %4231 = vmatprep.subr.bf16.mxu0 0
      %4232 = vmatpush1.bf16.msra.mxu0 0
      %4233 = vmatprep.subr.bf16.mxu0 0
      %4234 = vmatpush1.bf16.msra.mxu0 0
      %4235 = vmatprep.subr.bf16.mxu0 0
      %4236 = vmatpush1.bf16.msra.mxu0 0
      %4237 = vmatprep.subr.bf16.mxu0 0
      %4238 = vmatpush1.bf16.msra.mxu0 %v4221
      %4239 = vmatprep.subr.bf16.mxu0 0
      %4240 = vmatpush2.bf16.msra.mxu0 0
      %4241 = vmatprep.subr.bf16.mxu0 0
      %4242 = vmatpush2.bf16.msra.mxu0 0
      %4243 = vmatprep.subr.bf16.mxu0 0
      %4244 = vmatpush2.bf16.msra.mxu0 0
      %4245 = vmatprep.subr.bf16.mxu0 0
      %4246 = vmatpush2.bf16.msra.mxu0 0
      %4247 = vmatprep.subr.bf16.mxu0 0
      %4248 = vmatpush2.bf16.msra.mxu0 0
      %4249 = vmatprep.subr.bf16.mxu0 0
      %4250 = vmatpush2.bf16.msra.mxu0 0
      %4251 = vmatprep.subr.bf16.mxu0 0
      %4252 = vmatpush2.bf16.msra.mxu0 0
      %4253 = vmatprep.subr.bf16.mxu0 0
      %4254 = vmatpush2.bf16.msra.mxu0 0
      %4255 = vmatprep.mubr.bf16.mxu0 0
      %4256 = vmatmul.mubr.bf16.gmra.mxu0 %v4173
      %v4257 = vpop.f32.mrf.mxu0
      %v4258 = vadd.f32 0.0, %v4257
      %v4259 = vpop.f32.mrf.mxu0
      %v4260 = vpop.f32.mrf.mxu0
      %v4261 = vadd.f32 0.0, %v4260
      %v4262 = vpop.f32.mrf.mxu0
      %4263 = vmatprep.mubr.bf16.mxu0 0
      %4264 = vmatmul.mubr.bf16.gmra.mxu0 %v4176
      %v4265 = vpop.f32.mrf.mxu0
      %v4266 = vadd.f32 0.0, %v4265
      %v4267 = vpop.f32.mrf.mxu0
      %v4268 = vpop.f32.mrf.mxu0
      %v4269 = vadd.f32 0.0, %v4268
      %v4270 = vpop.f32.mrf.mxu0
      %4271 = vmatprep.mubr.bf16.mxu0 0
      %4272 = vmatmul.mubr.bf16.gmra.mxu0 %v4179
      %v4273 = vpop.f32.mrf.mxu0
      %v4274 = vadd.f32 0.0, %v4273
      %v4275 = vpop.f32.mrf.mxu0
      %v4276 = vpop.f32.mrf.mxu0
      %v4277 = vadd.f32 0.0, %v4276
      %v4278 = vpop.f32.mrf.mxu0
      %4279 = vmatprep.mubr.bf16.mxu0 0
      %4280 = vmatmul.mubr.bf16.gmra.mxu0 %v4182
      %v4281 = vpop.f32.mrf.mxu0
      %v4282 = vadd.f32 0.0, %v4281
      %v4283 = vpop.f32.mrf.mxu0
      %v4284 = vpop.f32.mrf.mxu0
      %v4285 = vadd.f32 0.0, %v4284
      %v4286 = vpop.f32.mrf.mxu0
      %4287 = vmatprep.mubr.bf16.mxu0 0
      %4288 = vmatmul.mubr.bf16.gmra.mxu0 %v4185
      %v4289 = vpop.f32.mrf.mxu0
      %v4290 = vadd.f32 0.0, %v4289
      %v4291 = vpop.f32.mrf.mxu0
      %v4292 = vpop.f32.mrf.mxu0
      %v4293 = vadd.f32 0.0, %v4292
      %v4294 = vpop.f32.mrf.mxu0
      %4295 = vmatprep.mubr.bf16.mxu0 0
      %4296 = vmatmul.mubr.bf16.gmra.mxu0 %v4188
      %v4297 = vpop.f32.mrf.mxu0
      %v4298 = vadd.f32 0.0, %v4297
      %v4299 = vpop.f32.mrf.mxu0
      %v4300 = vpop.f32.mrf.mxu0
      %v4301 = vadd.f32 0.0, %v4300
      %v4302 = vpop.f32.mrf.mxu0
      %4303 = vmatprep.mubr.bf16.mxu0 0
      %4304 = vmatmul.mubr.bf16.gmra.mxu0 %v4191
      %v4305 = vpop.f32.mrf.mxu0
      %v4306 = vadd.f32 0.0, %v4305
      %v4307 = vpop.f32.mrf.mxu0
      %v4308 = vpop.f32.mrf.mxu0
      %v4309 = vadd.f32 0.0, %v4308
      %v4310 = vpop.f32.mrf.mxu0
      %4311 = vmatprep.mubr.bf16.mxu0 0
      %4312 = vmatmul.mubr.bf16.gmra.mxu0 %v4194
      %v4313 = vpop.f32.mrf.mxu0
      %v4314 = vadd.f32 0.0, %v4313
      %v4315 = vpop.f32.mrf.mxu0
      %v4316 = vpop.f32.mrf.mxu0
      %v4317 = vadd.f32 0.0, %v4316
      %v4318 = vpop.f32.mrf.mxu0
      %4319 = vmatprep.mubr.bf16.mxu0 0
      %4320 = vmatmul.mubr.bf16.gmra.mxu0 %v4197
      %v4321 = vpop.f32.mrf.mxu0
      %v4322 = vadd.f32 0.0, %v4321
      %v4323 = vpop.f32.mrf.mxu0
      %v4324 = vpop.f32.mrf.mxu0
      %v4325 = vadd.f32 0.0, %v4324
      %v4326 = vpop.f32.mrf.mxu0
      %4327 = vmatprep.mubr.bf16.mxu0 0
      %4328 = vmatmul.mubr.bf16.gmra.mxu0 %v4200
      %v4329 = vpop.f32.mrf.mxu0
      %v4330 = vadd.f32 0.0, %v4329
      %v4331 = vpop.f32.mrf.mxu0
      %v4332 = vpop.f32.mrf.mxu0
      %v4333 = vadd.f32 0.0, %v4332
      %v4334 = vpop.f32.mrf.mxu0
      %4335 = vmatprep.mubr.bf16.mxu0 0
      %4336 = vmatmul.mubr.bf16.gmra.mxu0 %v4203
      %v4337 = vpop.f32.mrf.mxu0
      %v4338 = vadd.f32 0.0, %v4337
      %v4339 = vpop.f32.mrf.mxu0
      %v4340 = vpop.f32.mrf.mxu0
      %v4341 = vadd.f32 0.0, %v4340
      %v4342 = vpop.f32.mrf.mxu0
      %4343 = vmatprep.mubr.bf16.mxu0 0
      %4344 = vmatmul.mubr.bf16.gmra.mxu0 %v4206
      %v4345 = vpop.f32.mrf.mxu0
      %v4346 = vadd.f32 0.0, %v4345
      %v4347 = vpop.f32.mrf.mxu0
      %v4348 = vpop.f32.mrf.mxu0
      %v4349 = vadd.f32 0.0, %v4348
      %v4350 = vpop.f32.mrf.mxu0
      %4351 = vmatprep.mubr.bf16.mxu0 0
      %4352 = vmatmul.mubr.bf16.gmra.mxu0 %v4209
      %v4353 = vpop.f32.mrf.mxu0
      %v4354 = vadd.f32 0.0, %v4353
      %v4355 = vpop.f32.mrf.mxu0
      %v4356 = vpop.f32.mrf.mxu0
      %v4357 = vadd.f32 0.0, %v4356
      %v4358 = vpop.f32.mrf.mxu0
      %4359 = vmatprep.mubr.bf16.mxu0 0
      %4360 = vmatmul.mubr.bf16.gmra.mxu0 %v4212
      %v4361 = vpop.f32.mrf.mxu0
      %v4362 = vadd.f32 0.0, %v4361
      %v4363 = vpop.f32.mrf.mxu0
      %v4364 = vpop.f32.mrf.mxu0
      %v4365 = vadd.f32 0.0, %v4364
      %v4366 = vpop.f32.mrf.mxu0
      %4367 = vmatprep.mubr.bf16.mxu0 0
      %4368 = vmatmul.mubr.bf16.gmra.mxu0 %v4215
      %v4369 = vpop.f32.mrf.mxu0
      %v4370 = vadd.f32 0.0, %v4369
      %v4371 = vpop.f32.mrf.mxu0
      %v4372 = vpop.f32.mrf.mxu0
      %v4373 = vadd.f32 0.0, %v4372
      %v4374 = vpop.f32.mrf.mxu0
      %4375 = vmatprep.mubr.bf16.mxu0 0
      %4376 = vmatmul.mubr.bf16.gmra.mxu0 %v4218
      %v4377 = vpop.f32.mrf.mxu0
      %v4378 = vadd.f32 0.0, %v4377
      %v4379 = vpop.f32.mrf.mxu0
      %v4380 = vpop.f32.mrf.mxu0
      %v4381 = vadd.f32 0.0, %v4380
      %v4382 = vpop.f32.mrf.mxu0
      %4383 = vdwg.mxu0
      %v4384 = vadd.f32 %v3658, %v4258
      %v4385 = vadd.f32 %v3659, %v4261
      %v4386 = vadd.f32 %v3660, %v4266
      %v4387 = vadd.f32 %v3661, %v4269
      %v4388 = vadd.f32 %v3662, %v4274
      %v4389 = vadd.f32 %v3663, %v4277
      %v4390 = vadd.f32 %v3664, %v4282
      %v4391 = vadd.f32 %v3665, %v4285
      %v4392 = vadd.f32 %v3666, %v4290
      %v4393 = vadd.f32 %v3667, %v4293
      %v4394 = vadd.f32 %v3668, %v4298
      %v4395 = vadd.f32 %v3669, %v4301
      %v4396 = vadd.f32 %v3670, %v4306
      %v4397 = vadd.f32 %v3671, %v4309
      %v4398 = vadd.f32 %v3672, %v4314
      %v4399 = vadd.f32 %v3673, %v4317
      %v4400 = vadd.f32 %v3674, %v4322
      %v4401 = vadd.f32 %v3675, %v4325
      %v4402 = vadd.f32 %v3676, %v4330
      %v4403 = vadd.f32 %v3677, %v4333
      %v4404 = vadd.f32 %v3678, %v4338
      %v4405 = vadd.f32 %v3679, %v4341
      %v4406 = vadd.f32 %v3680, %v4346
      %v4407 = vadd.f32 %v3681, %v4349
      %v4408 = vadd.f32 %v3682, %v4354
      %v4409 = vadd.f32 %v3683, %v4357
      %v4410 = vadd.f32 %v3684, %v4362
      %v4411 = vadd.f32 %v3685, %v4365
      %v4412 = vadd.f32 %v3686, %v4370
      %v4413 = vadd.f32 %v3687, %v4373
      %v4414 = vadd.f32 %v3688, %v4378
      %v4415 = vadd.f32 %v3689, %v4381
      %v4416 = vld [vmem:[%s3331] sm:$0xe]
      %v4417 = vld [vmem:[%s3331 + $0xc] sm:$0xe]
      %v4418 = vld [vmem:[%s3331 + $0x18] sm:$0xe]
      %v4419 = vld [vmem:[%s3331 + $0x24] sm:$0xe]
      %v4420 = vld [vmem:[%s3331 + $0x30] sm:$0xe]
      %v4421 = vld [vmem:[%s3331 + $0x3c] sm:$0xe]
      %v4422 = vld [vmem:[%s3331 + $0x48] sm:$0xe]
      %v4423 = vld [vmem:[%s3331 + $0x54] sm:$0xe]
      %v4424 = vld [vmem:[%s3331 + $0x60] sm:$0xe]
      %v4425 = vld [vmem:[%s3331 + $0x6c] sm:$0xe]
      %v4426 = vld [vmem:[%s3331 + $0x78] sm:$0xe]
      %v4427 = vld [vmem:[%s3331 + $0x84] sm:$0xe]
      %v4428 = vld [vmem:[%s3331 + $0x90] sm:$0xe]
      %v4429 = vld [vmem:[%s3331 + $0x9c] sm:$0xe]
      %v4430 = vld [vmem:[%s3331 + $0xa8] sm:$0xe]
      %v4431 = vld [vmem:[%s3331 + $0xb4] sm:$0xe]
      %v4480 = vrot.slane %v4416, 5
      %v4481 = vrot.slane %v4480, 4
      %v4482 = vrot.slane %v3691, 5
      %v4483 = vsel %vm1369, %v4481, %v4482
      %v4484 = vrot.slane %v4482, 4
      %v4485 = vrot.slane %v3692, 5
      %v4486 = vsel %vm1369, %v4484, %v4485
      %v4487 = vrot.slane %v4417, 5
      %v4488 = vrot.slane %v4487, 4
      %v4489 = vrot.slane %v3694, 5
      %v4490 = vsel %vm1369, %v4488, %v4489
      %v4491 = vrot.slane %v4489, 4
      %v4492 = vrot.slane %v3695, 5
      %v4493 = vsel %vm1369, %v4491, %v4492
      %v4494 = vrot.slane %v4418, 5
      %v4495 = vrot.slane %v4494, 4
      %v4496 = vrot.slane %v3697, 5
      %v4497 = vsel %vm1369, %v4495, %v4496
      %v4498 = vrot.slane %v4496, 4
      %v4499 = vrot.slane %v3698, 5
      %v4500 = vsel %vm1369, %v4498, %v4499
      %v4501 = vrot.slane %v4419, 5
      %v4502 = vrot.slane %v4501, 4
      %v4503 = vrot.slane %v3700, 5
      %v4504 = vsel %vm1369, %v4502, %v4503
      %v4505 = vrot.slane %v4503, 4
      %v4506 = vrot.slane %v3701, 5
      %v4507 = vsel %vm1369, %v4505, %v4506
      %v4508 = vrot.slane %v4420, 5
      %v4509 = vrot.slane %v4508, 4
      %v4510 = vrot.slane %v3703, 5
      %v4511 = vsel %vm1369, %v4509, %v4510
      %v4512 = vrot.slane %v4510, 4
      %v4513 = vrot.slane %v3704, 5
      %v4514 = vsel %vm1369, %v4512, %v4513
      %v4515 = vrot.slane %v4421, 5
      %v4516 = vrot.slane %v4515, 4
      %v4517 = vrot.slane %v3706, 5
      %v4518 = vsel %vm1369, %v4516, %v4517
      %v4519 = vrot.slane %v4517, 4
      %v4520 = vrot.slane %v3707, 5
      %v4521 = vsel %vm1369, %v4519, %v4520
      %v4522 = vrot.slane %v4422, 5
      %v4523 = vrot.slane %v4522, 4
      %v4524 = vrot.slane %v3709, 5
      %v4525 = vsel %vm1369, %v4523, %v4524
      %v4526 = vrot.slane %v4524, 4
      %v4527 = vrot.slane %v3710, 5
      %v4528 = vsel %vm1369, %v4526, %v4527
      %v4529 = vrot.slane %v4423, 5
      %v4530 = vrot.slane %v4529, 4
      %v4531 = vrot.slane %v3712, 5
      %v4532 = vsel %vm1369, %v4530, %v4531
      %v4533 = vrot.slane %v4531, 4
      %v4534 = vrot.slane %v3713, 5
      %v4535 = vsel %vm1369, %v4533, %v4534
      %v4536 = vrot.slane %v4424, 5
      %v4537 = vrot.slane %v4536, 4
      %v4538 = vrot.slane %v3715, 5
      %v4539 = vsel %vm1369, %v4537, %v4538
      %v4540 = vrot.slane %v4538, 4
      %v4541 = vrot.slane %v3716, 5
      %v4542 = vsel %vm1369, %v4540, %v4541
      %v4543 = vrot.slane %v4425, 5
      %v4544 = vrot.slane %v4543, 4
      %v4545 = vrot.slane %v3718, 5
      %v4546 = vsel %vm1369, %v4544, %v4545
      %v4547 = vrot.slane %v4545, 4
      %v4548 = vrot.slane %v3719, 5
      %v4549 = vsel %vm1369, %v4547, %v4548
      %v4550 = vrot.slane %v4426, 5
      %v4551 = vrot.slane %v4550, 4
      %v4552 = vrot.slane %v3721, 5
      %v4553 = vsel %vm1369, %v4551, %v4552
      %v4554 = vrot.slane %v4552, 4
      %v4555 = vrot.slane %v3722, 5
      %v4556 = vsel %vm1369, %v4554, %v4555
      %v4557 = vrot.slane %v4427, 5
      %v4558 = vrot.slane %v4557, 4
      %v4559 = vrot.slane %v3724, 5
      %v4560 = vsel %vm1369, %v4558, %v4559
      %v4561 = vrot.slane %v4559, 4
      %v4562 = vrot.slane %v3725, 5
      %v4563 = vsel %vm1369, %v4561, %v4562
      %v4564 = vrot.slane %v4428, 5
      %v4565 = vrot.slane %v4564, 4
      %v4566 = vrot.slane %v3727, 5
      %v4567 = vsel %vm1369, %v4565, %v4566
      %v4568 = vrot.slane %v4566, 4
      %v4569 = vrot.slane %v3728, 5
      %v4570 = vsel %vm1369, %v4568, %v4569
      %v4571 = vrot.slane %v4429, 5
      %v4572 = vrot.slane %v4571, 4
      %v4573 = vrot.slane %v3730, 5
      %v4574 = vsel %vm1369, %v4572, %v4573
      %v4575 = vrot.slane %v4573, 4
      %v4576 = vrot.slane %v3731, 5
      %v4577 = vsel %vm1369, %v4575, %v4576
      %v4578 = vrot.slane %v4430, 5
      %v4579 = vrot.slane %v4578, 4
      %v4580 = vrot.slane %v3733, 5
      %v4581 = vsel %vm1369, %v4579, %v4580
      %v4582 = vrot.slane %v4580, 4
      %v4583 = vrot.slane %v3734, 5
      %v4584 = vsel %vm1369, %v4582, %v4583
      %v4585 = vrot.slane %v4431, 5
      %v4586 = vrot.slane %v4585, 4
      %v4587 = vrot.slane %v3736, 5
      %v4588 = vsel %vm1369, %v4586, %v4587
      %v4589 = vrot.slane %v4587, 4
      %v4590 = vrot.slane %v3737, 5
      %v4591 = vsel %vm1369, %v4589, %v4590
      %s4592 = scalar_lea.vmem %s1, 16
      %v4593 = vld [vmem:[%s4592] sm:$0x3]
      %v4594 = vunpack.c.l.b16 %v4483
      %v4595 = vunpack.c.l.b16 %v4486
      %v4596 = vunpack.c.l.b16 %v4490
      %v4597 = vunpack.c.l.b16 %v4493
      %v4598 = vunpack.c.l.b16 %v4497
      %v4599 = vunpack.c.l.b16 %v4500
      %v4600 = vunpack.c.l.b16 %v4504
      %v4601 = vunpack.c.l.b16 %v4507
      %v4602 = vunpack.c.l.b16 %v4511
      %v4603 = vunpack.c.l.b16 %v4514
      %v4604 = vunpack.c.l.b16 %v4518
      %v4605 = vunpack.c.l.b16 %v4521
      %v4606 = vunpack.c.l.b16 %v4525
      %v4607 = vunpack.c.l.b16 %v4528
      %v4608 = vunpack.c.l.b16 %v4532
      %v4609 = vunpack.c.l.b16 %v4535
      %v4610 = vunpack.c.l.b16 %v4539
      %v4611 = vunpack.c.l.b16 %v4542
      %v4612 = vunpack.c.l.b16 %v4546
      %v4613 = vunpack.c.l.b16 %v4549
      %v4614 = vunpack.c.l.b16 %v4553
      %v4615 = vunpack.c.l.b16 %v4556
      %v4616 = vunpack.c.l.b16 %v4560
      %v4617 = vunpack.c.l.b16 %v4563
      %v4618 = vunpack.c.l.b16 %v4567
      %v4619 = vunpack.c.l.b16 %v4570
      %v4620 = vunpack.c.l.b16 %v4574
      %v4621 = vunpack.c.l.b16 %v4577
      %v4622 = vunpack.c.l.b16 %v4581
      %v4623 = vunpack.c.l.b16 %v4584
      %v4624 = vunpack.c.l.b16 %v4588
      %v4625 = vunpack.c.l.b16 %v4591
      %v4626 = vpack.c.b16 %v4595, %v4594
      %v4627 = vpack.c.b16 %v4597, %v4596
      %v4628 = vpack.c.b16 %v4599, %v4598
      %v4629 = vpack.c.b16 %v4601, %v4600
      %v4630 = vpack.c.b16 %v4603, %v4602
      %v4631 = vpack.c.b16 %v4605, %v4604
      %v4632 = vpack.c.b16 %v4607, %v4606
      %v4633 = vpack.c.b16 %v4609, %v4608
      %v4634 = vpack.c.b16 %v4611, %v4610
      %v4635 = vpack.c.b16 %v4613, %v4612
      %v4636 = vpack.c.b16 %v4615, %v4614
      %v4637 = vpack.c.b16 %v4617, %v4616
      %v4638 = vpack.c.b16 %v4619, %v4618
      %v4639 = vpack.c.b16 %v4621, %v4620
      %v4640 = vpack.c.b16 %v4623, %v4622
      %v4641 = vpack.c.b16 %v4625, %v4624
      %v4643 = vsel %vm813, %v4626, 0
      %v4646 = vsel %vm813, %v4627, 0
      %v4649 = vsel %vm813, %v4628, 0
      %v4652 = vsel %vm813, %v4629, 0
      %v4655 = vsel %vm813, %v4630, 0
      %v4658 = vsel %vm813, %v4631, 0
      %v4661 = vsel %vm813, %v4632, 0
      %v4664 = vsel %vm813, %v4633, 0
      %v4667 = vsel %vm813, %v4634, 0
      %v4670 = vsel %vm813, %v4635, 0
      %v4673 = vsel %vm813, %v4636, 0
      %v4676 = vsel %vm813, %v4637, 0
      %v4679 = vsel %vm813, %v4638, 0
      %v4682 = vsel %vm813, %v4639, 0
      %v4685 = vsel %vm813, %v4640, 0
      %v4688 = vsel %vm813, %v4641, 0
      %v4691 = vsel %vm862, %v4593, 0
      %4693 = vmatprep.subr.bf16.mxu0 0
      %4694 = vmatpush1.bf16.msra.mxu0 0
      %4695 = vmatprep.subr.bf16.mxu0 0
      %4696 = vmatpush1.bf16.msra.mxu0 0
      %4697 = vmatprep.subr.bf16.mxu0 0
      %4698 = vmatpush1.bf16.msra.mxu0 0
      %4699 = vmatprep.subr.bf16.mxu0 0
      %4700 = vmatpush1.bf16.msra.mxu0 0
      %4701 = vmatprep.subr.bf16.mxu0 0
      %4702 = vmatpush1.bf16.msra.mxu0 0
      %4703 = vmatprep.subr.bf16.mxu0 0
      %4704 = vmatpush1.bf16.msra.mxu0 0
      %4705 = vmatprep.subr.bf16.mxu0 0
      %4706 = vmatpush1.bf16.msra.mxu0 0
      %4707 = vmatprep.subr.bf16.mxu0 0
      %4708 = vmatpush1.bf16.msra.mxu0 %v4691
      %4709 = vmatprep.subr.bf16.mxu0 0
      %4710 = vmatpush2.bf16.msra.mxu0 0
      %4711 = vmatprep.subr.bf16.mxu0 0
      %4712 = vmatpush2.bf16.msra.mxu0 0
      %4713 = vmatprep.subr.bf16.mxu0 0
      %4714 = vmatpush2.bf16.msra.mxu0 0
      %4715 = vmatprep.subr.bf16.mxu0 0
      %4716 = vmatpush2.bf16.msra.mxu0 0
      %4717 = vmatprep.subr.bf16.mxu0 0
      %4718 = vmatpush2.bf16.msra.mxu0 0
      %4719 = vmatprep.subr.bf16.mxu0 0
      %4720 = vmatpush2.bf16.msra.mxu0 0
      %4721 = vmatprep.subr.bf16.mxu0 0
      %4722 = vmatpush2.bf16.msra.mxu0 0
      %4723 = vmatprep.subr.bf16.mxu0 0
      %4724 = vmatpush2.bf16.msra.mxu0 0
      %4725 = vmatprep.mubr.bf16.mxu0 0
      %4726 = vmatmul.mubr.bf16.gmra.mxu0 %v4643
      %v4727 = vpop.f32.mrf.mxu0
      %v4728 = vadd.f32 0.0, %v4727
      %v4729 = vpop.f32.mrf.mxu0
      %v4730 = vpop.f32.mrf.mxu0
      %v4731 = vadd.f32 0.0, %v4730
      %v4732 = vpop.f32.mrf.mxu0
      %4733 = vmatprep.mubr.bf16.mxu0 0
      %4734 = vmatmul.mubr.bf16.gmra.mxu0 %v4646
      %v4735 = vpop.f32.mrf.mxu0
      %v4736 = vadd.f32 0.0, %v4735
      %v4737 = vpop.f32.mrf.mxu0
      %v4738 = vpop.f32.mrf.mxu0
      %v4739 = vadd.f32 0.0, %v4738
      %v4740 = vpop.f32.mrf.mxu0
      %4741 = vmatprep.mubr.bf16.mxu0 0
      %4742 = vmatmul.mubr.bf16.gmra.mxu0 %v4649
      %v4743 = vpop.f32.mrf.mxu0
      %v4744 = vadd.f32 0.0, %v4743
      %v4745 = vpop.f32.mrf.mxu0
      %v4746 = vpop.f32.mrf.mxu0
      %v4747 = vadd.f32 0.0, %v4746
      %v4748 = vpop.f32.mrf.mxu0
      %4749 = vmatprep.mubr.bf16.mxu0 0
      %4750 = vmatmul.mubr.bf16.gmra.mxu0 %v4652
      %v4751 = vpop.f32.mrf.mxu0
      %v4752 = vadd.f32 0.0, %v4751
      %v4753 = vpop.f32.mrf.mxu0
      %v4754 = vpop.f32.mrf.mxu0
      %v4755 = vadd.f32 0.0, %v4754
      %v4756 = vpop.f32.mrf.mxu0
      %4757 = vmatprep.mubr.bf16.mxu0 0
      %4758 = vmatmul.mubr.bf16.gmra.mxu0 %v4655
      %v4759 = vpop.f32.mrf.mxu0
      %v4760 = vadd.f32 0.0, %v4759
      %v4761 = vpop.f32.mrf.mxu0
      %v4762 = vpop.f32.mrf.mxu0
      %v4763 = vadd.f32 0.0, %v4762
      %v4764 = vpop.f32.mrf.mxu0
      %4765 = vmatprep.mubr.bf16.mxu0 0
      %4766 = vmatmul.mubr.bf16.gmra.mxu0 %v4658
      %v4767 = vpop.f32.mrf.mxu0
      %v4768 = vadd.f32 0.0, %v4767
      %v4769 = vpop.f32.mrf.mxu0
      %v4770 = vpop.f32.mrf.mxu0
      %v4771 = vadd.f32 0.0, %v4770
      %v4772 = vpop.f32.mrf.mxu0
      %4773 = vmatprep.mubr.bf16.mxu0 0
      %4774 = vmatmul.mubr.bf16.gmra.mxu0 %v4661
      %v4775 = vpop.f32.mrf.mxu0
      %v4776 = vadd.f32 0.0, %v4775
      %v4777 = vpop.f32.mrf.mxu0
      %v4778 = vpop.f32.mrf.mxu0
      %v4779 = vadd.f32 0.0, %v4778
      %v4780 = vpop.f32.mrf.mxu0
      %4781 = vmatprep.mubr.bf16.mxu0 0
      %4782 = vmatmul.mubr.bf16.gmra.mxu0 %v4664
      %v4783 = vpop.f32.mrf.mxu0
      %v4784 = vadd.f32 0.0, %v4783
      %v4785 = vpop.f32.mrf.mxu0
      %v4786 = vpop.f32.mrf.mxu0
      %v4787 = vadd.f32 0.0, %v4786
      %v4788 = vpop.f32.mrf.mxu0
      %4789 = vmatprep.mubr.bf16.mxu0 0
      %4790 = vmatmul.mubr.bf16.gmra.mxu0 %v4667
      %v4791 = vpop.f32.mrf.mxu0
      %v4792 = vadd.f32 0.0, %v4791
      %v4793 = vpop.f32.mrf.mxu0
      %v4794 = vpop.f32.mrf.mxu0
      %v4795 = vadd.f32 0.0, %v4794
      %v4796 = vpop.f32.mrf.mxu0
      %4797 = vmatprep.mubr.bf16.mxu0 0
      %4798 = vmatmul.mubr.bf16.gmra.mxu0 %v4670
      %v4799 = vpop.f32.mrf.mxu0
      %v4800 = vadd.f32 0.0, %v4799
      %v4801 = vpop.f32.mrf.mxu0
      %v4802 = vpop.f32.mrf.mxu0
      %v4803 = vadd.f32 0.0, %v4802
      %v4804 = vpop.f32.mrf.mxu0
      %4805 = vmatprep.mubr.bf16.mxu0 0
      %4806 = vmatmul.mubr.bf16.gmra.mxu0 %v4673
      %v4807 = vpop.f32.mrf.mxu0
      %v4808 = vadd.f32 0.0, %v4807
      %v4809 = vpop.f32.mrf.mxu0
      %v4810 = vpop.f32.mrf.mxu0
      %v4811 = vadd.f32 0.0, %v4810
      %v4812 = vpop.f32.mrf.mxu0
      %4813 = vmatprep.mubr.bf16.mxu0 0
      %4814 = vmatmul.mubr.bf16.gmra.mxu0 %v4676
      %v4815 = vpop.f32.mrf.mxu0
      %v4816 = vadd.f32 0.0, %v4815
      %v4817 = vpop.f32.mrf.mxu0
      %v4818 = vpop.f32.mrf.mxu0
      %v4819 = vadd.f32 0.0, %v4818
      %v4820 = vpop.f32.mrf.mxu0
      %4821 = vmatprep.mubr.bf16.mxu0 0
      %4822 = vmatmul.mubr.bf16.gmra.mxu0 %v4679
      %v4823 = vpop.f32.mrf.mxu0
      %v4824 = vadd.f32 0.0, %v4823
      %v4825 = vpop.f32.mrf.mxu0
      %v4826 = vpop.f32.mrf.mxu0
      %v4827 = vadd.f32 0.0, %v4826
      %v4828 = vpop.f32.mrf.mxu0
      %4829 = vmatprep.mubr.bf16.mxu0 0
      %4830 = vmatmul.mubr.bf16.gmra.mxu0 %v4682
      %v4831 = vpop.f32.mrf.mxu0
      %v4832 = vadd.f32 0.0, %v4831
      %v4833 = vpop.f32.mrf.mxu0
      %v4834 = vpop.f32.mrf.mxu0
      %v4835 = vadd.f32 0.0, %v4834
      %v4836 = vpop.f32.mrf.mxu0
      %4837 = vmatprep.mubr.bf16.mxu0 0
      %4838 = vmatmul.mubr.bf16.gmra.mxu0 %v4685
      %v4839 = vpop.f32.mrf.mxu0
      %v4840 = vadd.f32 0.0, %v4839
      %v4841 = vpop.f32.mrf.mxu0
      %v4842 = vpop.f32.mrf.mxu0
      %v4843 = vadd.f32 0.0, %v4842
      %v4844 = vpop.f32.mrf.mxu0
      %4845 = vmatprep.mubr.bf16.mxu0 0
      %4846 = vmatmul.mubr.bf16.gmra.mxu0 %v4688
      %v4847 = vpop.f32.mrf.mxu0
      %v4848 = vadd.f32 0.0, %v4847
      %v4849 = vpop.f32.mrf.mxu0
      %v4850 = vpop.f32.mrf.mxu0
      %v4851 = vadd.f32 0.0, %v4850
      %v4852 = vpop.f32.mrf.mxu0
      %4853 = vdwg.mxu0
      %v4854 = vadd.f32 %v4384, %v4728
      %v4855 = vadd.f32 %v4385, %v4731
      %v4856 = vadd.f32 %v4386, %v4736
      %v4857 = vadd.f32 %v4387, %v4739
      %v4858 = vadd.f32 %v4388, %v4744
      %v4859 = vadd.f32 %v4389, %v4747
      %v4860 = vadd.f32 %v4390, %v4752
      %v4861 = vadd.f32 %v4391, %v4755
      %v4862 = vadd.f32 %v4392, %v4760
      %v4863 = vadd.f32 %v4393, %v4763
      %v4864 = vadd.f32 %v4394, %v4768
      %v4865 = vadd.f32 %v4395, %v4771
      %v4866 = vadd.f32 %v4396, %v4776
      %v4867 = vadd.f32 %v4397, %v4779
      %v4868 = vadd.f32 %v4398, %v4784
      %v4869 = vadd.f32 %v4399, %v4787
      %v4870 = vadd.f32 %v4400, %v4792
      %v4871 = vadd.f32 %v4401, %v4795
      %v4872 = vadd.f32 %v4402, %v4800
      %v4873 = vadd.f32 %v4403, %v4803
      %v4874 = vadd.f32 %v4404, %v4808
      %v4875 = vadd.f32 %v4405, %v4811
      %v4876 = vadd.f32 %v4406, %v4816
      %v4877 = vadd.f32 %v4407, %v4819
      %v4878 = vadd.f32 %v4408, %v4824
      %v4879 = vadd.f32 %v4409, %v4827
      %v4880 = vadd.f32 %v4410, %v4832
      %v4881 = vadd.f32 %v4411, %v4835
      %v4882 = vadd.f32 %v4412, %v4840
      %v4883 = vadd.f32 %v4413, %v4843
      %v4884 = vadd.f32 %v4414, %v4848
      %v4885 = vadd.f32 %v4415, %v4851
      %v4886 = vld [vmem:[%s2] sm:$0x1]
      %v4888 = vlaneseq
      %v4889 = vshrl.u32 %v4888, 7
      %v4890 = vsub.s32 0, %v4889
      %v4891 = vrot.slane %v4886, %v4890
      %v4893 = vadd.f32 %v4854, %v4891
      %v4894 = vadd.f32 %v4855, %v4891
      %v4895 = vadd.f32 %v4856, %v4891
      %v4896 = vadd.f32 %v4857, %v4891
      %v4897 = vadd.f32 %v4858, %v4891
      %v4898 = vadd.f32 %v4859, %v4891
      %v4899 = vadd.f32 %v4860, %v4891
      %v4900 = vadd.f32 %v4861, %v4891
      %v4901 = vadd.f32 %v4862, %v4891
      %v4902 = vadd.f32 %v4863, %v4891
      %v4903 = vadd.f32 %v4864, %v4891
      %v4904 = vadd.f32 %v4865, %v4891
      %v4905 = vadd.f32 %v4866, %v4891
      %v4906 = vadd.f32 %v4867, %v4891
      %v4907 = vadd.f32 %v4868, %v4891
      %v4908 = vadd.f32 %v4869, %v4891
      %v4909 = vadd.f32 %v4870, %v4891
      %v4910 = vadd.f32 %v4871, %v4891
      %v4911 = vadd.f32 %v4872, %v4891
      %v4912 = vadd.f32 %v4873, %v4891
      %v4913 = vadd.f32 %v4874, %v4891
      %v4914 = vadd.f32 %v4875, %v4891
      %v4915 = vadd.f32 %v4876, %v4891
      %v4916 = vadd.f32 %v4877, %v4891
      %v4917 = vadd.f32 %v4878, %v4891
      %v4918 = vadd.f32 %v4879, %v4891
      %v4919 = vadd.f32 %v4880, %v4891
      %v4920 = vadd.f32 %v4881, %v4891
      %v4921 = vadd.f32 %v4882, %v4891
      %v4922 = vadd.f32 %v4883, %v4891
      %v4923 = vadd.f32 %v4884, %v4891
      %v4924 = vadd.f32 %v4885, %v4891
      %v4925 = vmax.f32 %v4893, 0.0
      %v4926 = vmax.f32 %v4894, 0.0
      %v4927 = vmax.f32 %v4895, 0.0
      %v4928 = vmax.f32 %v4896, 0.0
      %v4929 = vmax.f32 %v4897, 0.0
      %v4930 = vmax.f32 %v4898, 0.0
      %v4931 = vmax.f32 %v4899, 0.0
      %v4932 = vmax.f32 %v4900, 0.0
      %v4933 = vmax.f32 %v4901, 0.0
      %v4934 = vmax.f32 %v4902, 0.0
      %v4935 = vmax.f32 %v4903, 0.0
      %v4936 = vmax.f32 %v4904, 0.0
      %v4937 = vmax.f32 %v4905, 0.0
      %v4938 = vmax.f32 %v4906, 0.0
      %v4939 = vmax.f32 %v4907, 0.0
      %v4940 = vmax.f32 %v4908, 0.0
      %v4941 = vmax.f32 %v4909, 0.0
      %v4942 = vmax.f32 %v4910, 0.0
      %v4943 = vmax.f32 %v4911, 0.0
      %v4944 = vmax.f32 %v4912, 0.0
      %v4945 = vmax.f32 %v4913, 0.0
      %v4946 = vmax.f32 %v4914, 0.0
      %v4947 = vmax.f32 %v4915, 0.0
      %v4948 = vmax.f32 %v4916, 0.0
      %v4949 = vmax.f32 %v4917, 0.0
      %v4950 = vmax.f32 %v4918, 0.0
      %v4951 = vmax.f32 %v4919, 0.0
      %v4952 = vmax.f32 %v4920, 0.0
      %v4953 = vmax.f32 %v4921, 0.0
      %v4954 = vmax.f32 %v4922, 0.0
      %v4955 = vmax.f32 %v4923, 0.0
      %v4956 = vmax.f32 %v4924, 0.0
      %v4957 = vpack.c.bf16 %v4926, %v4925
      %v4958 = vpack.c.bf16 %v4928, %v4927
      %v4959 = vpack.c.bf16 %v4930, %v4929
      %v4960 = vpack.c.bf16 %v4932, %v4931
      %v4961 = vpack.c.bf16 %v4934, %v4933
      %v4962 = vpack.c.bf16 %v4936, %v4935
      %v4963 = vpack.c.bf16 %v4938, %v4937
      %v4964 = vpack.c.bf16 %v4940, %v4939
      %v4965 = vpack.c.bf16 %v4942, %v4941
      %v4966 = vpack.c.bf16 %v4944, %v4943
      %v4967 = vpack.c.bf16 %v4946, %v4945
      %v4968 = vpack.c.bf16 %v4948, %v4947
      %v4969 = vpack.c.bf16 %v4950, %v4949
      %v4970 = vpack.c.bf16 %v4952, %v4951
      %v4971 = vpack.c.bf16 %v4954, %v4953
      %v4972 = vpack.c.bf16 %v4956, %v4955
      %v4973 = vld [vmem:[%s3] sm:$0x3]
      %v4974 = vld [vmem:[%s4] sm:$0x1]
      %v4976 = vlaneseq
      %v4977 = vshrl.u32 %v4976, 7
      %v4978 = vsub.s32 0, %v4977
      %v4979 = vrot.slane %v4974, %v4978
      %v4982 = vsel %vm813, %v4957, 0
      %v4985 = vsel %vm813, %v4958, 0
      %v4988 = vsel %vm813, %v4959, 0
      %v4991 = vsel %vm813, %v4960, 0
      %v4994 = vsel %vm813, %v4961, 0
      %v4997 = vsel %vm813, %v4962, 0
      %v5000 = vsel %vm813, %v4963, 0
      %v5003 = vsel %vm813, %v4964, 0
      %v5006 = vsel %vm813, %v4965, 0
      %v5009 = vsel %vm813, %v4966, 0
      %v5012 = vsel %vm813, %v4967, 0
      %v5015 = vsel %vm813, %v4968, 0
      %v5018 = vsel %vm813, %v4969, 0
      %v5021 = vsel %vm813, %v4970, 0
      %v5024 = vsel %vm813, %v4971, 0
      %v5027 = vsel %vm813, %v4972, 0
      %v5030 = vsel %vm862, %v4973, 0
      %5032 = vmatprep.subr.bf16.mxu0 0
      %5033 = vmatpush1.bf16.msra.mxu0 0
      %5034 = vmatprep.subr.bf16.mxu0 0
      %5035 = vmatpush1.bf16.msra.mxu0 0
      %5036 = vmatprep.subr.bf16.mxu0 0
      %5037 = vmatpush1.bf16.msra.mxu0 0
      %5038 = vmatprep.subr.bf16.mxu0 0
      %5039 = vmatpush1.bf16.msra.mxu0 0
      %5040 = vmatprep.subr.bf16.mxu0 0
      %5041 = vmatpush1.bf16.msra.mxu0 0
      %5042 = vmatprep.subr.bf16.mxu0 0
      %5043 = vmatpush1.bf16.msra.mxu0 0
      %5044 = vmatprep.subr.bf16.mxu0 0
      %5045 = vmatpush1.bf16.msra.mxu0 0
      %5046 = vmatprep.subr.bf16.mxu0 0
      %5047 = vmatpush1.bf16.msra.mxu0 %v5030
      %5048 = vmatprep.subr.bf16.mxu0 0
      %5049 = vmatpush2.bf16.msra.mxu0 0
      %5050 = vmatprep.subr.bf16.mxu0 0
      %5051 = vmatpush2.bf16.msra.mxu0 0
      %5052 = vmatprep.subr.bf16.mxu0 0
      %5053 = vmatpush2.bf16.msra.mxu0 0
      %5054 = vmatprep.subr.bf16.mxu0 0
      %5055 = vmatpush2.bf16.msra.mxu0 0
      %5056 = vmatprep.subr.bf16.mxu0 0
      %5057 = vmatpush2.bf16.msra.mxu0 0
      %5058 = vmatprep.subr.bf16.mxu0 0
      %5059 = vmatpush2.bf16.msra.mxu0 0
      %5060 = vmatprep.subr.bf16.mxu0 0
      %5061 = vmatpush2.bf16.msra.mxu0 0
      %5062 = vmatprep.subr.bf16.mxu0 0
      %5063 = vmatpush2.bf16.msra.mxu0 0
      %5064 = vmatprep.mubr.bf16.mxu0 0
      %5065 = vmatmul.mubr.bf16.gmra.mxu0 %v4982
      %v5066 = vpop.f32.mrf.mxu0
      %v5067 = vadd.f32 %v4979, %v5066
      %v5068 = vpop.f32.mrf.mxu0
      %v5069 = vpop.f32.mrf.mxu0
      %v5070 = vadd.f32 %v4979, %v5069
      %v5071 = vpop.f32.mrf.mxu0
      %5072 = vmatprep.mubr.bf16.mxu0 0
      %5073 = vmatmul.mubr.bf16.gmra.mxu0 %v4985
      %v5074 = vpop.f32.mrf.mxu0
      %v5075 = vadd.f32 %v4979, %v5074
      %v5076 = vpop.f32.mrf.mxu0
      %v5077 = vpop.f32.mrf.mxu0
      %v5078 = vadd.f32 %v4979, %v5077
      %v5079 = vpop.f32.mrf.mxu0
      %5080 = vmatprep.mubr.bf16.mxu0 0
      %5081 = vmatmul.mubr.bf16.gmra.mxu0 %v4988
      %v5082 = vpop.f32.mrf.mxu0
      %v5083 = vadd.f32 %v4979, %v5082
      %v5084 = vpop.f32.mrf.mxu0
      %v5085 = vpop.f32.mrf.mxu0
      %v5086 = vadd.f32 %v4979, %v5085
      %v5087 = vpop.f32.mrf.mxu0
      %5088 = vmatprep.mubr.bf16.mxu0 0
      %5089 = vmatmul.mubr.bf16.gmra.mxu0 %v4991
      %v5090 = vpop.f32.mrf.mxu0
      %v5091 = vadd.f32 %v4979, %v5090
      %v5092 = vpop.f32.mrf.mxu0
      %v5093 = vpop.f32.mrf.mxu0
      %v5094 = vadd.f32 %v4979, %v5093
      %v5095 = vpop.f32.mrf.mxu0
      %5096 = vmatprep.mubr.bf16.mxu0 0
      %5097 = vmatmul.mubr.bf16.gmra.mxu0 %v4994
      %v5098 = vpop.f32.mrf.mxu0
      %v5099 = vadd.f32 %v4979, %v5098
      %v5100 = vpop.f32.mrf.mxu0
      %v5101 = vpop.f32.mrf.mxu0
      %v5102 = vadd.f32 %v4979, %v5101
      %v5103 = vpop.f32.mrf.mxu0
      %5104 = vmatprep.mubr.bf16.mxu0 0
      %5105 = vmatmul.mubr.bf16.gmra.mxu0 %v4997
      %v5106 = vpop.f32.mrf.mxu0
      %v5107 = vadd.f32 %v4979, %v5106
      %v5108 = vpop.f32.mrf.mxu0
      %v5109 = vpop.f32.mrf.mxu0
      %v5110 = vadd.f32 %v4979, %v5109
      %v5111 = vpop.f32.mrf.mxu0
      %5112 = vmatprep.mubr.bf16.mxu0 0
      %5113 = vmatmul.mubr.bf16.gmra.mxu0 %v5000
      %v5114 = vpop.f32.mrf.mxu0
      %v5115 = vadd.f32 %v4979, %v5114
      %v5116 = vpop.f32.mrf.mxu0
      %v5117 = vpop.f32.mrf.mxu0
      %v5118 = vadd.f32 %v4979, %v5117
      %v5119 = vpop.f32.mrf.mxu0
      %5120 = vmatprep.mubr.bf16.mxu0 0
      %5121 = vmatmul.mubr.bf16.gmra.mxu0 %v5003
      %v5122 = vpop.f32.mrf.mxu0
      %v5123 = vadd.f32 %v4979, %v5122
      %v5124 = vpop.f32.mrf.mxu0
      %v5125 = vpop.f32.mrf.mxu0
      %v5126 = vadd.f32 %v4979, %v5125
      %v5127 = vpop.f32.mrf.mxu0
      %5128 = vmatprep.mubr.bf16.mxu0 0
      %5129 = vmatmul.mubr.bf16.gmra.mxu0 %v5006
      %v5130 = vpop.f32.mrf.mxu0
      %v5131 = vadd.f32 %v4979, %v5130
      %v5132 = vpop.f32.mrf.mxu0
      %v5133 = vpop.f32.mrf.mxu0
      %v5134 = vadd.f32 %v4979, %v5133
      %v5135 = vpop.f32.mrf.mxu0
      %5136 = vmatprep.mubr.bf16.mxu0 0
      %5137 = vmatmul.mubr.bf16.gmra.mxu0 %v5009
      %v5138 = vpop.f32.mrf.mxu0
      %v5139 = vadd.f32 %v4979, %v5138
      %v5140 = vpop.f32.mrf.mxu0
      %v5141 = vpop.f32.mrf.mxu0
      %v5142 = vadd.f32 %v4979, %v5141
      %v5143 = vpop.f32.mrf.mxu0
      %5144 = vmatprep.mubr.bf16.mxu0 0
      %5145 = vmatmul.mubr.bf16.gmra.mxu0 %v5012
      %v5146 = vpop.f32.mrf.mxu0
      %v5147 = vadd.f32 %v4979, %v5146
      %v5148 = vpop.f32.mrf.mxu0
      %v5149 = vpop.f32.mrf.mxu0
      %v5150 = vadd.f32 %v4979, %v5149
      %v5151 = vpop.f32.mrf.mxu0
      %5152 = vmatprep.mubr.bf16.mxu0 0
      %5153 = vmatmul.mubr.bf16.gmra.mxu0 %v5015
      %v5154 = vpop.f32.mrf.mxu0
      %v5155 = vadd.f32 %v4979, %v5154
      %v5156 = vpop.f32.mrf.mxu0
      %v5157 = vpop.f32.mrf.mxu0
      %v5158 = vadd.f32 %v4979, %v5157
      %v5159 = vpop.f32.mrf.mxu0
      %5160 = vmatprep.mubr.bf16.mxu0 0
      %5161 = vmatmul.mubr.bf16.gmra.mxu0 %v5018
      %v5162 = vpop.f32.mrf.mxu0
      %v5163 = vadd.f32 %v4979, %v5162
      %v5164 = vpop.f32.mrf.mxu0
      %v5165 = vpop.f32.mrf.mxu0
      %v5166 = vadd.f32 %v4979, %v5165
      %v5167 = vpop.f32.mrf.mxu0
      %5168 = vmatprep.mubr.bf16.mxu0 0
      %5169 = vmatmul.mubr.bf16.gmra.mxu0 %v5021
      %v5170 = vpop.f32.mrf.mxu0
      %v5171 = vadd.f32 %v4979, %v5170
      %v5172 = vpop.f32.mrf.mxu0
      %v5173 = vpop.f32.mrf.mxu0
      %v5174 = vadd.f32 %v4979, %v5173
      %v5175 = vpop.f32.mrf.mxu0
      %5176 = vmatprep.mubr.bf16.mxu0 0
      %5177 = vmatmul.mubr.bf16.gmra.mxu0 %v5024
      %v5178 = vpop.f32.mrf.mxu0
      %v5179 = vadd.f32 %v4979, %v5178
      %v5180 = vpop.f32.mrf.mxu0
      %v5181 = vpop.f32.mrf.mxu0
      %v5182 = vadd.f32 %v4979, %v5181
      %v5183 = vpop.f32.mrf.mxu0
      %5184 = vmatprep.mubr.bf16.mxu0 0
      %5185 = vmatmul.mubr.bf16.gmra.mxu0 %v5027
      %v5186 = vpop.f32.mrf.mxu0
      %v5187 = vadd.f32 %v4979, %v5186
      %v5188 = vpop.f32.mrf.mxu0
      %v5189 = vpop.f32.mrf.mxu0
      %v5190 = vadd.f32 %v4979, %v5189
      %v5191 = vpop.f32.mrf.mxu0
      %5192 = vdwg.mxu0
      %v5193 = vld [vmem:[%s320] sm:$0xf]
      %v5194 = vld [vmem:[%s320 + $0x4] sm:$0xf]
      %v5195 = vld [vmem:[%s320 + $0x8] sm:$0xf]
      %v5196 = vld [vmem:[%s320 + $0xc] sm:$0xf]
      %v5197 = vld [vmem:[%s320 + $0x10] sm:$0xf]
      %v5198 = vld [vmem:[%s320 + $0x14] sm:$0xf]
      %v5199 = vld [vmem:[%s320 + $0x18] sm:$0xf]
      %v5200 = vld [vmem:[%s320 + $0x1c] sm:$0xf]
      %v5201 = vld [vmem:[%s320 + $0x20] sm:$0xf]
      %v5202 = vld [vmem:[%s320 + $0x24] sm:$0xf]
      %v5203 = vld [vmem:[%s320 + $0x28] sm:$0xf]
      %v5204 = vld [vmem:[%s320 + $0x2c] sm:$0xf]
      %v5205 = vld [vmem:[%s320 + $0x30] sm:$0xf]
      %v5206 = vld [vmem:[%s320 + $0x34] sm:$0xf]
      %v5207 = vld [vmem:[%s320 + $0x38] sm:$0xf]
      %v5208 = vld [vmem:[%s320 + $0x3c] sm:$0xf]
      %v5209 = vld [vmem:[%s320 + $0x40] sm:$0xf]
      %v5210 = vld [vmem:[%s320 + $0x44] sm:$0xf]
      %v5211 = vld [vmem:[%s320 + $0x48] sm:$0xf]
      %v5212 = vld [vmem:[%s320 + $0x4c] sm:$0xf]
      %v5213 = vld [vmem:[%s320 + $0x50] sm:$0xf]
      %v5214 = vld [vmem:[%s320 + $0x54] sm:$0xf]
      %v5215 = vld [vmem:[%s320 + $0x58] sm:$0xf]
      %v5216 = vld [vmem:[%s320 + $0x5c] sm:$0xf]
      %v5217 = vld [vmem:[%s320 + $0x60] sm:$0xf]
      %v5218 = vld [vmem:[%s320 + $0x64] sm:$0xf]
      %v5219 = vld [vmem:[%s320 + $0x68] sm:$0xf]
      %v5220 = vld [vmem:[%s320 + $0x6c] sm:$0xf]
      %v5221 = vld [vmem:[%s320 + $0x70] sm:$0xf]
      %v5222 = vld [vmem:[%s320 + $0x74] sm:$0xf]
      %v5223 = vld [vmem:[%s320 + $0x78] sm:$0xf]
      %v5224 = vld [vmem:[%s320 + $0x7c] sm:$0xf]
      %v5225 = vld [vmem:[%s6] sm:$0x3]
      %v5226 = vld [vmem:[%s7] sm:$0x1]
      %v5228 = vlaneseq
      %v5229 = vshrl.u32 %v5228, 7
      %v5230 = vsub.s32 0, %v5229
      %v5231 = vrot.slane %v5226, %v5230
      %v5265 = vunpack.c.l.b16 %v5193
      %v5266 = vunpack.c.l.b16 %v5194
      %v5267 = vunpack.c.l.b16 %v5195
      %v5268 = vunpack.c.l.b16 %v5196
      %v5269 = vunpack.c.l.b16 %v5197
      %v5270 = vunpack.c.l.b16 %v5198
      %v5271 = vunpack.c.l.b16 %v5199
      %v5272 = vunpack.c.l.b16 %v5200
      %v5273 = vunpack.c.l.b16 %v5201
      %v5274 = vunpack.c.l.b16 %v5202
      %v5275 = vunpack.c.l.b16 %v5203
      %v5276 = vunpack.c.l.b16 %v5204
      %v5277 = vunpack.c.l.b16 %v5205
      %v5278 = vunpack.c.l.b16 %v5206
      %v5279 = vunpack.c.l.b16 %v5207
      %v5280 = vunpack.c.l.b16 %v5208
      %v5281 = vunpack.c.l.b16 %v5209
      %v5282 = vunpack.c.l.b16 %v5210
      %v5283 = vunpack.c.l.b16 %v5211
      %v5284 = vunpack.c.l.b16 %v5212
      %v5285 = vunpack.c.l.b16 %v5213
      %v5286 = vunpack.c.l.b16 %v5214
      %v5287 = vunpack.c.l.b16 %v5215
      %v5288 = vunpack.c.l.b16 %v5216
      %v5289 = vunpack.c.l.b16 %v5217
      %v5290 = vunpack.c.l.b16 %v5218
      %v5291 = vunpack.c.l.b16 %v5219
      %v5292 = vunpack.c.l.b16 %v5220
      %v5293 = vunpack.c.l.b16 %v5221
      %v5294 = vunpack.c.l.b16 %v5222
      %v5295 = vunpack.c.l.b16 %v5223
      %v5296 = vunpack.c.l.b16 %v5224
      %v5297 = vpack.c.b16 %v5266, %v5265
      %v5298 = vpack.c.b16 %v5268, %v5267
      %v5299 = vpack.c.b16 %v5270, %v5269
      %v5300 = vpack.c.b16 %v5272, %v5271
      %v5301 = vpack.c.b16 %v5274, %v5273
      %v5302 = vpack.c.b16 %v5276, %v5275
      %v5303 = vpack.c.b16 %v5278, %v5277
      %v5304 = vpack.c.b16 %v5280, %v5279
      %v5305 = vpack.c.b16 %v5282, %v5281
      %v5306 = vpack.c.b16 %v5284, %v5283
      %v5307 = vpack.c.b16 %v5286, %v5285
      %v5308 = vpack.c.b16 %v5288, %v5287
      %v5309 = vpack.c.b16 %v5290, %v5289
      %v5310 = vpack.c.b16 %v5292, %v5291
      %v5311 = vpack.c.b16 %v5294, %v5293
      %v5312 = vpack.c.b16 %v5296, %v5295
      %v5314 = vsel %vm813, %v5297, 0
      %v5317 = vsel %vm813, %v5298, 0
      %v5320 = vsel %vm813, %v5299, 0
      %v5323 = vsel %vm813, %v5300, 0
      %v5326 = vsel %vm813, %v5301, 0
      %v5329 = vsel %vm813, %v5302, 0
      %v5332 = vsel %vm813, %v5303, 0
      %v5335 = vsel %vm813, %v5304, 0
      %v5338 = vsel %vm813, %v5305, 0
      %v5341 = vsel %vm813, %v5306, 0
      %v5344 = vsel %vm813, %v5307, 0
      %v5347 = vsel %vm813, %v5308, 0
      %v5350 = vsel %vm813, %v5309, 0
      %v5353 = vsel %vm813, %v5310, 0
      %v5356 = vsel %vm813, %v5311, 0
      %v5359 = vsel %vm813, %v5312, 0
      %v5362 = vsel %vm862, %v5225, 0
      %5364 = vmatprep.subr.bf16.mxu0 0
      %5365 = vmatpush1.bf16.msra.mxu0 0
      %5366 = vmatprep.subr.bf16.mxu0 0
      %5367 = vmatpush1.bf16.msra.mxu0 0
      %5368 = vmatprep.subr.bf16.mxu0 0
      %5369 = vmatpush1.bf16.msra.mxu0 0
      %5370 = vmatprep.subr.bf16.mxu0 0
      %5371 = vmatpush1.bf16.msra.mxu0 0
      %5372 = vmatprep.subr.bf16.mxu0 0
      %5373 = vmatpush1.bf16.msra.mxu0 0
      %5374 = vmatprep.subr.bf16.mxu0 0
      %5375 = vmatpush1.bf16.msra.mxu0 0
      %5376 = vmatprep.subr.bf16.mxu0 0
      %5377 = vmatpush1.bf16.msra.mxu0 0
      %5378 = vmatprep.subr.bf16.mxu0 0
      %5379 = vmatpush1.bf16.msra.mxu0 %v5362
      %5380 = vmatprep.subr.bf16.mxu0 0
      %5381 = vmatpush2.bf16.msra.mxu0 0
      %5382 = vmatprep.subr.bf16.mxu0 0
      %5383 = vmatpush2.bf16.msra.mxu0 0
      %5384 = vmatprep.subr.bf16.mxu0 0
      %5385 = vmatpush2.bf16.msra.mxu0 0
      %5386 = vmatprep.subr.bf16.mxu0 0
      %5387 = vmatpush2.bf16.msra.mxu0 0
      %5388 = vmatprep.subr.bf16.mxu0 0
      %5389 = vmatpush2.bf16.msra.mxu0 0
      %5390 = vmatprep.subr.bf16.mxu0 0
      %5391 = vmatpush2.bf16.msra.mxu0 0
      %5392 = vmatprep.subr.bf16.mxu0 0
      %5393 = vmatpush2.bf16.msra.mxu0 0
      %5394 = vmatprep.subr.bf16.mxu0 0
      %5395 = vmatpush2.bf16.msra.mxu0 0
      %5396 = vmatprep.mubr.bf16.mxu0 0
      %5397 = vmatmul.mubr.bf16.gmra.mxu0 %v5314
      %v5398 = vpop.f32.mrf.mxu0
      %v5399 = vadd.f32 %v5231, %v5398
      %v5400 = vpop.f32.mrf.mxu0
      %v5401 = vpop.f32.mrf.mxu0
      %v5402 = vadd.f32 %v5231, %v5401
      %v5403 = vpop.f32.mrf.mxu0
      %5404 = vmatprep.mubr.bf16.mxu0 0
      %5405 = vmatmul.mubr.bf16.gmra.mxu0 %v5317
      %v5406 = vpop.f32.mrf.mxu0
      %v5407 = vadd.f32 %v5231, %v5406
      %v5408 = vpop.f32.mrf.mxu0
      %v5409 = vpop.f32.mrf.mxu0
      %v5410 = vadd.f32 %v5231, %v5409
      %v5411 = vpop.f32.mrf.mxu0
      %5412 = vmatprep.mubr.bf16.mxu0 0
      %5413 = vmatmul.mubr.bf16.gmra.mxu0 %v5320
      %v5414 = vpop.f32.mrf.mxu0
      %v5415 = vadd.f32 %v5231, %v5414
      %v5416 = vpop.f32.mrf.mxu0
      %v5417 = vpop.f32.mrf.mxu0
      %v5418 = vadd.f32 %v5231, %v5417
      %v5419 = vpop.f32.mrf.mxu0
      %5420 = vmatprep.mubr.bf16.mxu0 0
      %5421 = vmatmul.mubr.bf16.gmra.mxu0 %v5323
      %v5422 = vpop.f32.mrf.mxu0
      %v5423 = vadd.f32 %v5231, %v5422
      %v5424 = vpop.f32.mrf.mxu0
      %v5425 = vpop.f32.mrf.mxu0
      %v5426 = vadd.f32 %v5231, %v5425
      %v5427 = vpop.f32.mrf.mxu0
      %5428 = vmatprep.mubr.bf16.mxu0 0
      %5429 = vmatmul.mubr.bf16.gmra.mxu0 %v5326
      %v5430 = vpop.f32.mrf.mxu0
      %v5431 = vadd.f32 %v5231, %v5430
      %v5432 = vpop.f32.mrf.mxu0
      %v5433 = vpop.f32.mrf.mxu0
      %v5434 = vadd.f32 %v5231, %v5433
      %v5435 = vpop.f32.mrf.mxu0
      %5436 = vmatprep.mubr.bf16.mxu0 0
      %5437 = vmatmul.mubr.bf16.gmra.mxu0 %v5329
      %v5438 = vpop.f32.mrf.mxu0
      %v5439 = vadd.f32 %v5231, %v5438
      %v5440 = vpop.f32.mrf.mxu0
      %v5441 = vpop.f32.mrf.mxu0
      %v5442 = vadd.f32 %v5231, %v5441
      %v5443 = vpop.f32.mrf.mxu0
      %5444 = vmatprep.mubr.bf16.mxu0 0
      %5445 = vmatmul.mubr.bf16.gmra.mxu0 %v5332
      %v5446 = vpop.f32.mrf.mxu0
      %v5447 = vadd.f32 %v5231, %v5446
      %v5448 = vpop.f32.mrf.mxu0
      %v5449 = vpop.f32.mrf.mxu0
      %v5450 = vadd.f32 %v5231, %v5449
      %v5451 = vpop.f32.mrf.mxu0
      %5452 = vmatprep.mubr.bf16.mxu0 0
      %5453 = vmatmul.mubr.bf16.gmra.mxu0 %v5335
      %v5454 = vpop.f32.mrf.mxu0
      %v5455 = vadd.f32 %v5231, %v5454
      %v5456 = vpop.f32.mrf.mxu0
      %v5457 = vpop.f32.mrf.mxu0
      %v5458 = vadd.f32 %v5231, %v5457
      %v5459 = vpop.f32.mrf.mxu0
      %5460 = vmatprep.mubr.bf16.mxu0 0
      %5461 = vmatmul.mubr.bf16.gmra.mxu0 %v5338
      %v5462 = vpop.f32.mrf.mxu0
      %v5463 = vadd.f32 %v5231, %v5462
      %v5464 = vpop.f32.mrf.mxu0
      %v5465 = vpop.f32.mrf.mxu0
      %v5466 = vadd.f32 %v5231, %v5465
      %v5467 = vpop.f32.mrf.mxu0
      %5468 = vmatprep.mubr.bf16.mxu0 0
      %5469 = vmatmul.mubr.bf16.gmra.mxu0 %v5341
      %v5470 = vpop.f32.mrf.mxu0
      %v5471 = vadd.f32 %v5231, %v5470
      %v5472 = vpop.f32.mrf.mxu0
      %v5473 = vpop.f32.mrf.mxu0
      %v5474 = vadd.f32 %v5231, %v5473
      %v5475 = vpop.f32.mrf.mxu0
      %5476 = vmatprep.mubr.bf16.mxu0 0
      %5477 = vmatmul.mubr.bf16.gmra.mxu0 %v5344
      %v5478 = vpop.f32.mrf.mxu0
      %v5479 = vadd.f32 %v5231, %v5478
      %v5480 = vpop.f32.mrf.mxu0
      %v5481 = vpop.f32.mrf.mxu0
      %v5482 = vadd.f32 %v5231, %v5481
      %v5483 = vpop.f32.mrf.mxu0
      %5484 = vmatprep.mubr.bf16.mxu0 0
      %5485 = vmatmul.mubr.bf16.gmra.mxu0 %v5347
      %v5486 = vpop.f32.mrf.mxu0
      %v5487 = vadd.f32 %v5231, %v5486
      %v5488 = vpop.f32.mrf.mxu0
      %v5489 = vpop.f32.mrf.mxu0
      %v5490 = vadd.f32 %v5231, %v5489
      %v5491 = vpop.f32.mrf.mxu0
      %5492 = vmatprep.mubr.bf16.mxu0 0
      %5493 = vmatmul.mubr.bf16.gmra.mxu0 %v5350
      %v5494 = vpop.f32.mrf.mxu0
      %v5495 = vadd.f32 %v5231, %v5494
      %v5496 = vpop.f32.mrf.mxu0
      %v5497 = vpop.f32.mrf.mxu0
      %v5498 = vadd.f32 %v5231, %v5497
      %v5499 = vpop.f32.mrf.mxu0
      %5500 = vmatprep.mubr.bf16.mxu0 0
      %5501 = vmatmul.mubr.bf16.gmra.mxu0 %v5353
      %v5502 = vpop.f32.mrf.mxu0
      %v5503 = vadd.f32 %v5231, %v5502
      %v5504 = vpop.f32.mrf.mxu0
      %v5505 = vpop.f32.mrf.mxu0
      %v5506 = vadd.f32 %v5231, %v5505
      %v5507 = vpop.f32.mrf.mxu0
      %5508 = vmatprep.mubr.bf16.mxu0 0
      %5509 = vmatmul.mubr.bf16.gmra.mxu0 %v5356
      %v5510 = vpop.f32.mrf.mxu0
      %v5511 = vadd.f32 %v5231, %v5510
      %v5512 = vpop.f32.mrf.mxu0
      %v5513 = vpop.f32.mrf.mxu0
      %v5514 = vadd.f32 %v5231, %v5513
      %v5515 = vpop.f32.mrf.mxu0
      %5516 = vmatprep.mubr.bf16.mxu0 0
      %5517 = vmatmul.mubr.bf16.gmra.mxu0 %v5359
      %v5518 = vpop.f32.mrf.mxu0
      %v5519 = vadd.f32 %v5231, %v5518
      %v5520 = vpop.f32.mrf.mxu0
      %v5521 = vpop.f32.mrf.mxu0
      %v5522 = vadd.f32 %v5231, %v5521
      %v5523 = vpop.f32.mrf.mxu0
      %5524 = vdwg.mxu0
      %v5525 = vadd.f32 %v5067, %v5399
      %v5526 = vadd.f32 %v5070, %v5402
      %v5527 = vadd.f32 %v5075, %v5407
      %v5528 = vadd.f32 %v5078, %v5410
      %v5529 = vadd.f32 %v5083, %v5415
      %v5530 = vadd.f32 %v5086, %v5418
      %v5531 = vadd.f32 %v5091, %v5423
      %v5532 = vadd.f32 %v5094, %v5426
      %v5533 = vadd.f32 %v5099, %v5431
      %v5534 = vadd.f32 %v5102, %v5434
      %v5535 = vadd.f32 %v5107, %v5439
      %v5536 = vadd.f32 %v5110, %v5442
      %v5537 = vadd.f32 %v5115, %v5447
      %v5538 = vadd.f32 %v5118, %v5450
      %v5539 = vadd.f32 %v5123, %v5455
      %v5540 = vadd.f32 %v5126, %v5458
      %v5541 = vadd.f32 %v5131, %v5463
      %v5542 = vadd.f32 %v5134, %v5466
      %v5543 = vadd.f32 %v5139, %v5471
      %v5544 = vadd.f32 %v5142, %v5474
      %v5545 = vadd.f32 %v5147, %v5479
      %v5546 = vadd.f32 %v5150, %v5482
      %v5547 = vadd.f32 %v5155, %v5487
      %v5548 = vadd.f32 %v5158, %v5490
      %v5549 = vadd.f32 %v5163, %v5495
      %v5550 = vadd.f32 %v5166, %v5498
      %v5551 = vadd.f32 %v5171, %v5503
      %v5552 = vadd.f32 %v5174, %v5506
      %v5553 = vadd.f32 %v5179, %v5511
      %v5554 = vadd.f32 %v5182, %v5514
      %v5555 = vadd.f32 %v5187, %v5519
      %v5556 = vadd.f32 %v5190, %v5522
      %v5557 = vmax.f32 %v5525, 0.0
      %v5558 = vmax.f32 %v5526, 0.0
      %v5559 = vmax.f32 %v5527, 0.0
      %v5560 = vmax.f32 %v5528, 0.0
      %v5561 = vmax.f32 %v5529, 0.0
      %v5562 = vmax.f32 %v5530, 0.0
      %v5563 = vmax.f32 %v5531, 0.0
      %v5564 = vmax.f32 %v5532, 0.0
      %v5565 = vmax.f32 %v5533, 0.0
      %v5566 = vmax.f32 %v5534, 0.0
      %v5567 = vmax.f32 %v5535, 0.0
      %v5568 = vmax.f32 %v5536, 0.0
      %v5569 = vmax.f32 %v5537, 0.0
      %v5570 = vmax.f32 %v5538, 0.0
      %v5571 = vmax.f32 %v5539, 0.0
      %v5572 = vmax.f32 %v5540, 0.0
      %v5573 = vmax.f32 %v5541, 0.0
      %v5574 = vmax.f32 %v5542, 0.0
      %v5575 = vmax.f32 %v5543, 0.0
      %v5576 = vmax.f32 %v5544, 0.0
      %v5577 = vmax.f32 %v5545, 0.0
      %v5578 = vmax.f32 %v5546, 0.0
      %v5579 = vmax.f32 %v5547, 0.0
      %v5580 = vmax.f32 %v5548, 0.0
      %v5581 = vmax.f32 %v5549, 0.0
      %v5582 = vmax.f32 %v5550, 0.0
      %v5583 = vmax.f32 %v5551, 0.0
      %v5584 = vmax.f32 %v5552, 0.0
      %v5585 = vmax.f32 %v5553, 0.0
      %v5586 = vmax.f32 %v5554, 0.0
      %v5587 = vmax.f32 %v5555, 0.0
      %v5588 = vmax.f32 %v5556, 0.0
      %vm5589 = vcmask 130048
      %5590 = vst.msk [vmem:[%s325] sm:$0xff] %vm5589, %v5557
      %5591 = vst.msk [vmem:[%s325 + $0x8] sm:$0xff] %vm5589, %v5558
      %5592 = vst.msk [vmem:[%s325 + $0x10] sm:$0xff] %vm5589, %v5559
      %5593 = vst.msk [vmem:[%s325 + $0x18] sm:$0xff] %vm5589, %v5560
      %5594 = vst.msk [vmem:[%s325 + $0x20] sm:$0xff] %vm5589, %v5561
      %5595 = vst.msk [vmem:[%s325 + $0x28] sm:$0xff] %vm5589, %v5562
      %5596 = vst.msk [vmem:[%s325 + $0x30] sm:$0xff] %vm5589, %v5563
      %5597 = vst.msk [vmem:[%s325 + $0x38] sm:$0xff] %vm5589, %v5564
      %5598 = vst.msk [vmem:[%s325 + $0x40] sm:$0xff] %vm5589, %v5565
      %5599 = vst.msk [vmem:[%s325 + $0x48] sm:$0xff] %vm5589, %v5566
      %5600 = vst.msk [vmem:[%s325 + $0x50] sm:$0xff] %vm5589, %v5567
      %5601 = vst.msk [vmem:[%s325 + $0x58] sm:$0xff] %vm5589, %v5568
      %5602 = vst.msk [vmem:[%s325 + $0x60] sm:$0xff] %vm5589, %v5569
      %5603 = vst.msk [vmem:[%s325 + $0x68] sm:$0xff] %vm5589, %v5570
      %5604 = vst.msk [vmem:[%s325 + $0x70] sm:$0xff] %vm5589, %v5571
      %5605 = vst.msk [vmem:[%s325 + $0x78] sm:$0xff] %vm5589, %v5572
      %5606 = vst.msk [vmem:[%s325 + $0x80] sm:$0xff] %vm5589, %v5573
      %5607 = vst.msk [vmem:[%s325 + $0x88] sm:$0xff] %vm5589, %v5574
      %5608 = vst.msk [vmem:[%s325 + $0x90] sm:$0xff] %vm5589, %v5575
      %5609 = vst.msk [vmem:[%s325 + $0x98] sm:$0xff] %vm5589, %v5576
      %5610 = vst.msk [vmem:[%s325 + $0xa0] sm:$0xff] %vm5589, %v5577
      %5611 = vst.msk [vmem:[%s325 + $0xa8] sm:$0xff] %vm5589, %v5578
      %5612 = vst.msk [vmem:[%s325 + $0xb0] sm:$0xff] %vm5589, %v5579
      %5613 = vst.msk [vmem:[%s325 + $0xb8] sm:$0xff] %vm5589, %v5580
      %5614 = vst.msk [vmem:[%s325 + $0xc0] sm:$0xff] %vm5589, %v5581
      %5615 = vst.msk [vmem:[%s325 + $0xc8] sm:$0xff] %vm5589, %v5582
      %5616 = vst.msk [vmem:[%s325 + $0xd0] sm:$0xff] %vm5589, %v5583
      %5617 = vst.msk [vmem:[%s325 + $0xd8] sm:$0xff] %vm5589, %v5584
      %5618 = vst.msk [vmem:[%s325 + $0xe0] sm:$0xff] %vm5589, %v5585
      %5619 = vst.msk [vmem:[%s325 + $0xe8] sm:$0xff] %vm5589, %v5586
      %5620 = vst.msk [vmem:[%s325 + $0xf0] sm:$0xff] %vm5589, %v5587
      %5621 = vst.msk [vmem:[%s325 + $0xf8] sm:$0xff] %vm5589, %v5588
      %p5622 = scmp.lt.s32.totalorder %s19, 1
      %s5623 = scalar_select %p5622, %s19, 1
      %s5624 = smul.addr %s5623, 32
      %s5625 = smul.addr %s5624, 8
      %s5626 = scalar_lea.vmem %s8, %s5625
      // Predicated region
      $region53: #{bottleneck_forward.3} parent=51 // pred_check
        %p5627 = pneg %p215
      $region54: #{bottleneck_forward.3} parent=51 // pred_check_branch
        %5629 = sbr.rel (%p5627) target = $region56
      $region55: #{bottleneck_forward.3} parent=51 // pred_region
        _
      $region56: #{bottleneck_forward.3} parent=51 // pred_fallthru
        _
    $region52: #{bottleneck_forward.3} parent=5 // pred_fallthru
      _
    %p5630 = scmp.le.s32.totalorder 2, %s14
    // Predicated region
    $region57: #{bottleneck_forward.3} parent=5 // pred_check
      %p5631 = pneg %p5630
    $region58: #{bottleneck_forward.3} parent=5 // pred_check_branch
      %5633 = sbr.rel (%p5631) target = $region60
    $region59: #{bottleneck_forward.3} parent=5 // pred_region
      %s5634 = ssub.s32 %s14, 2
      // Predicated region
      $region61: #{bottleneck_forward.3} parent=59 // pred_check
        %p5635 = pneg %p221
      $region62: #{bottleneck_forward.3} parent=59 // pred_check_branch
        %5637 = sbr.rel (%p5635) target = $region64
      $region63: #{bottleneck_forward.3} parent=59 // pred_region
        %p5638 = scmp.lt.s32.totalorder %s20, 1
        %s5639 = scalar_select %p5638, %s20, 1
        %s5640 = smul.addr %s5639, 32
        %s5641 = smul.addr %s5640, 8
        %s5642 = scalar_lea.vmem %s8, %s5641
      $region64: #{bottleneck_forward.3} parent=59 // pred_fallthru
        _
    $region60: #{bottleneck_forward.3} parent=5 // pred_fallthru
      _
  $region6: #{bottleneck_forward.3} parent=0 // loop_footer
    %s18 = sadd.s32 1, %s14
  $region7: #{bottleneck_forward.3} parent=0 // loop_footer_branch
    %13 = sbr.rel target = $region3
  $region8: #{bottleneck_forward.3} parent=0 // loop_exit
    _

</llo_original>
